<compile_context>
chip_gen: v6e
topology: v6e:2x2x1
jax: 0.10.0
libtpu: 0.0.40
codegen_flags: <defaults>
</compile_context>

<pallas_src>
import functools

import numpy as np
import jax
import jax.numpy as jnp
from jax.experimental import pallas as pl
from jax.experimental.pallas import tpu as pltpu


# ----------------------------------------------------------------------------
# Single fused kernel: MLP head + all ConvTranspose2d(k=4, s=2, p=1) layers.
#
# Per layer (4-phase sub-pixel formulation, vertical phases only):
#   slab[py, 0:128]   = out[2*py  , :] = xpad[py+0]@b00 + xpad[py+1]@b01 + bias
#   slab[py, 128:256] = out[2*py+1, :] = xpad[py+1]@b10 + xpad[py+2]@b11 + bias
# where xpad[j] = x[j-1] (rows 0 / H+1 are the zero halo) and the banded
# matrices already contain the horizontal pad + sub-pixel structure, so every
# matmul is a native (H, 128) x (128, 256) bf16 MXU op.
# ----------------------------------------------------------------------------
def _generator_kernel(z_ref, w1_ref, b1_ref, w2_ref, b2_ref, cmat_ref, cbias_ref,
                      o_ref, xpad_ref, *, base_hw, n_layers):
    # Zero the shared padded-activation scratch once per batch element.  Row 0
    # and each layer's "one past the end" halo row then stay zero (all data
    # writes below are monotone in row index), giving the H zero-pad for free.
    xpad_ref[...] = jnp.zeros_like(xpad_ref)

    # ---- MLP head: ReLU(ReLU(z@W1+b1)@W2+b2), bf16 MXU operands, f32 accum ----
    zb = z_ref[0].astype(jnp.bfloat16)                                    # (1, K)
    h = jnp.dot(zb, w1_ref[...], preferred_element_type=jnp.float32) + b1_ref[...]
    h = jnp.maximum(h, 0.0).astype(jnp.bfloat16)                          # (1, hidden)
    h = jnp.dot(h, w2_ref[...], preferred_element_type=jnp.float32) + b2_ref[...]
    h = jnp.maximum(h, 0.0).astype(jnp.bfloat16)                          # (1, H0*W0*C0)

    # W2 columns were pre-permuted to (h, w, c) order, so PyTorch's NCHW Reshape
    # is just scattering 128-lane chunks into base-map rows 1..base_hw.
    for r in range(base_hw):
        xpad_ref[1 + r, :] = h[0, r * 128:(r + 1) * 128]

    # ---- n_layers x ConvTranspose2d(4, stride=2, pad=1) + ReLU / final Tanh ----
    H = base_hw
    for l in range(n_layers):
        x0 = xpad_ref[0:H, :]          # padded rows py + 0   (K = W*Cin = 128)
        x1 = xpad_ref[1:H + 1, :]      # padded rows py + 1
        x2 = xpad_ref[2:H + 2, :]      # padded rows py + 2
        slab = (jnp.dot(x0, cmat_ref[l, 0], preferred_element_type=jnp.float32)
                + jnp.dot(x1, cmat_ref[l, 1], preferred_element_type=jnp.float32)
                + jnp.dot(x2, cmat_ref[l, 2], preferred_element_type=jnp.float32)
                + cbias_ref[l])
        # slab[:, :128] = even output rows, slab[:, 128:] = odd output rows.
        if l < n_layers - 1:
            act = jnp.maximum(slab, 0.0).astype(jnp.bfloat16)
            # Interleave the two row parities into the next layer's padded
            # input rows 1..2H (stays entirely in VMEM).
            for p in range(H):
                xpad_ref[1 + 2 * p, :] = act[p, 0:128]
                xpad_ref[2 + 2 * p, :] = act[p, 128:256]
            H *= 2
        else:
            # Final layer (Cout == 1): the (H, 256) slab is the lane-dense pair
            # of image rows (2*py, 2*py+1); (B, H, 256) -> (B, 1, 2H, 128) is a
            # free reshape in the wrapper.
            o_ref[0] = jnp.tanh(slab)


# ----------------------------------------------------------------------------
# Forward pass wrapper (one pallas_call for the whole network)
# ----------------------------------------------------------------------------
def generator_forward(params, z, features=None):
    if features is not None:
        z = jnp.concatenate([z, features], axis=1)        # torch.cat([z, features], 1)
    B, K = z.shape
    base_hw = params["base_hw"]
    n_layers = params["n_layers"]
    hidden = params["w1"].shape[1]
    n2 = params["w2"].shape[1]
    half_h = base_hw * 2 ** (n_layers - 1)                 # rows of the final slab
    scratch_rows = half_h + 2

    # Advisory cost estimate (tiny network: ~25 MFLOP / ~1 MB per call).
    sum_h = base_hw * (2 ** n_layers - 1)
    flops = 2 * B * (K * hidden + hidden * n2 + 3 * 128 * 256 * sum_h)
    transcendentals = B * 2 * half_h * 128                 # tanh on the output image
    weight_bytes = ((params["w1"].size + params["w2"].size + params["cmats"].size) * 2
                    + (params["b1"].size + params["b2"].size + params["cbias"].size) * 4)
    bytes_accessed = int(weight_bytes + B * (K * 4 + half_h * 256 * 4))

    out = pl.pallas_call(
        functools.partial(_generator_kernel, base_hw=base_hw, n_layers=n_layers),
        out_shape=jax.ShapeDtypeStruct((B, half_h, 256), jnp.float32),
        grid_spec=pltpu.PrefetchScalarGridSpec(
            num_scalar_prefetch=0,
            grid=(B,),                                     # one step per batch element
            in_specs=[
                pl.BlockSpec((1, 1, K), lambda b: (b, 0, 0)),
                pl.BlockSpec(params["w1"].shape, lambda b: (0, 0)),
                pl.BlockSpec(params["b1"].shape, lambda b: (0, 0)),
                pl.BlockSpec(params["w2"].shape, lambda b: (0, 0)),
                pl.BlockSpec(params["b2"].shape, lambda b: (0, 0)),
                pl.BlockSpec(params["cmats"].shape, lambda b: (0, 0, 0, 0)),
                pl.BlockSpec(params["cbias"].shape, lambda b: (0, 0, 0)),
            ],
            out_specs=pl.BlockSpec((1, half_h, 256), lambda b: (b, 0, 0)),
            scratch_shapes=[pltpu.VMEM((scratch_rows, 128), jnp.bfloat16)],
        ),
        compiler_params=pltpu.CompilerParams(
            dimension_semantics=("parallel",)),            # megacore: batch across TCs
        cost_estimate=pl.CostEstimate(
            flops=int(flops), transcendentals=int(transcendentals),
            bytes_accessed=bytes_accessed),
    )(z.reshape(B, 1, K), params["w1"], params["b1"], params["w2"], params["b2"],
      params["cmats"], params["cbias"])

    # free (py, parity) -> oy merge, then NCHW view like img.view(B, *img_shape)
    return out.reshape(B, *params["img_shape"])


# ----------------------------------------------------------------------------
# Parameter construction (banded weights precomputed once with numpy)
# ----------------------------------------------------------------------------
def _phase_mats(wt, W):
    """{(ry, dy): (W*Cin, 2*W*Cout)} banded matrices for ConvTranspose2d(4,2,1).

    The horizontal zero-pad is baked in (rows of the padded columns dropped),
    so the contraction dim is exactly W*Cin.
      B[(ry,dy)][w*Cin+ci, (2*px+rx)*Cout+co] = wt[ci, co, 3-ry-2*dy, 3-rx-2*dx]
      with w = px + rx + dx - 1 required to lie in [0, W-1].
    """
    wt = np.asarray(wt, np.float32)
    Cin, Cout = wt.shape[0], wt.shape[1]
    Wo = 2 * W
    px = np.arange(W)
    mats = {}
    for ry in (0, 1):
        for dy in (0, 1):
            kh = 3 - ry - 2 * dy
            Bm = np.zeros((W, Cin, Wo, Cout), np.float32)
            for rx in (0, 1):
                for dx in (0, 1):
                    kw = 3 - rx - 2 * dx
                    w = px + rx + dx - 1
                    valid = (w >= 0) & (w < W)
                    Bm[w[valid], :, 2 * px[valid] + rx, :] = wt[:, :, kh, kw]
            mats[(ry, dy)] = Bm.reshape(W * Cin, Wo * Cout)
    return mats


def init_params(key, input_features=0, latent_dim=32, hidden=64,
                base_channels=32, base_hw=4):
    chans = [base_channels, base_channels // 2, base_channels // 4,
             base_channels // 8, base_channels // 16, 1]      # 32->16->8->4->2->1
    n_up = len(chans) - 1
    img_hw = base_hw * 2 ** n_up

    def uniform(k, shape, fan_in):
        bound = 1.0 / np.sqrt(fan_in)
        return jax.random.uniform(k, shape, jnp.float32, -bound, bound)

    keys = jax.random.split(key, 4 + 2 * n_up)
    in1 = input_features + latent_dim
    C0c, H0, W0 = chans[0], base_hw, base_hw
    n2 = C0c * H0 * W0

    w1 = uniform(keys[0], (in1, hidden), in1)
    b1 = uniform(keys[1], (hidden,), in1)
    w2 = uniform(keys[2], (hidden, n2), hidden)
    b2 = uniform(keys[3], (n2,), hidden)

    # Permute Linear-2 output columns from NCHW-flat (c,h,w) to NHWC-flat (h,w,c)
    # so PyTorch's Reshape becomes a free reshape into the conv kernels' layout.
    perm = np.arange(n2).reshape(C0c, H0, W0).transpose(1, 2, 0).reshape(-1)
    w2p = np.asarray(w2)[:, perm]
    b2p = np.asarray(b2)[perm]

    cmats, cbias, raw_convs = [], [], []
    hw = base_hw
    ki = 4
    for cin, cout in zip(chans[:-1], chans[1:]):
        # K = W*Cin and N = 2*W*Cout are exactly 128 at every layer by design.
        assert hw * cin == 128 and 2 * hw * cout == 128, (hw, cin, cout)
        fan = cin * 4 * 4
        wt = uniform(keys[ki], (cin, cout, 4, 4), fan)     # PyTorch ConvT weight layout
        bc = uniform(keys[ki + 1], (cout,), fan)
        ki += 2

        m = _phase_mats(np.asarray(wt), hw)
        zero = np.zeros((128, 128), np.float32)
        c0 = np.concatenate([m[(0, 0)], zero], axis=1)     # x0 feeds even rows only
        c1 = np.concatenate([m[(0, 1)], m[(1, 0)]], axis=1)
        c2 = np.concatenate([zero, m[(1, 1)]], axis=1)     # x2 feeds odd rows only
        cmats.append(np.stack([c0, c1, c2]))               # (3, 128, 256)

        bias_row = np.tile(np.asarray(bc), 2 * hw)         # (128,): bias[co] over (px,rx)
        cbias.append(np.concatenate([bias_row, bias_row])[None, :])   # (1, 256)

        raw_convs.append((wt, bc))
        hw *= 2

    return {
        "w1": jnp.asarray(w1, jnp.bfloat16),
        "b1": jnp.asarray(np.asarray(b1)[None, :], jnp.float32),
        "w2": jnp.asarray(w2p, jnp.bfloat16),
        "b2": jnp.asarray(b2p[None, :], jnp.float32),
        "cmats": jnp.asarray(np.stack(cmats), jnp.bfloat16),   # (5, 3, 128, 256)
        "cbias": jnp.asarray(np.stack(cbias), jnp.float32),    # (5, 1, 256)
        "base_hw": base_hw,
        "n_layers": n_up,
        "base_shape": (C0c, H0, W0),
        "img_shape": (1, img_hw, img_hw),
        "raw": {"w1": w1, "b1": b1, "w2": w2, "b2": b2, "convs": raw_convs},
    }


# ----------------------------------------------------------------------------
# Plain-JAX f32 reference (for a runtime self-check)
# ----------------------------------------------------------------------------
def _ref_conv_transpose(x_nhwc, wt, bc):
    B, H, W, Cin = x_nhwc.shape
    Cout = wt.shape[1]
    Ho, Wo = 2 * H, 2 * W
    xd = jnp.zeros((B, 2 * H - 1, 2 * W - 1, Cin), x_nhwc.dtype)
    xd = xd.at[:, ::2, ::2, :].set(x_nhwc)
    xd = jnp.pad(xd, ((0, 0), (2, 2), (2, 2), (0, 0)))
    patches = jnp.stack([xd[:, kh:kh + Ho, kw:kw + Wo, :]
                         for kh in range(4) for kw in range(4)], axis=3)
    patches = patches.reshape(B * Ho * Wo, 16 * Cin)
    wm = jnp.transpose(jnp.flip(wt, axis=(2, 3)), (2, 3, 0, 1)).reshape(16 * Cin, Cout)
    return (patches @ wm + bc).reshape(B, Ho, Wo, Cout)


def reference_forward(params, z):
    raw = params["raw"]
    B = z.shape[0]
    h = jnp.maximum(z @ raw["w1"] + raw["b1"], 0.0)
    h = jnp.maximum(h @ raw["w2"] + raw["b2"], 0.0)
    C0c, H0, W0 = params["base_shape"]
    x = h.reshape(B, C0c, H0, W0).transpose(0, 2, 3, 1)
    acts = ["relu"] * (params["n_layers"] - 1) + ["tanh"]
    for (wt, bc), a in zip(raw["convs"], acts):
        x = _ref_conv_transpose(x, wt, bc)
        x = jnp.maximum(x, 0.0) if a == "relu" else jnp.tanh(x)
    return x.transpose(0, 3, 1, 2).reshape(B, *params["img_shape"])


if __name__ == "__main__":
    key = jax.random.PRNGKey(0)
    pkey, zkey = jax.random.split(key)

    latent_dim = 32
    params = init_params(pkey, input_features=0, latent_dim=latent_dim,
                         hidden=64, base_channels=32, base_hw=4)

    B = 2
    z = jax.random.normal(zkey, (B, latent_dim), jnp.float32)

    fwd = jax.jit(lambda zz: generator_forward(params, zz))
    img = jax.block_until_ready(fwd(z))

    assert img.shape == (B, 1, 128, 128), img.shape
    assert img.dtype == jnp.float32, img.dtype
    assert bool(jnp.all(jnp.isfinite(img)))
    assert bool(jnp.all(jnp.abs(img) <= 1.0 + 1e-5))      # tanh output range

    # self-check against a plain-JAX f32 reference (loose: kernel uses bf16 MXU inputs)
    ref = jax.block_until_ready(jax.jit(lambda zz: reference_forward(params, zz))(z))
    err = float(jnp.max(jnp.abs(img - ref)))
    scale = float(jnp.max(jnp.abs(ref)))
    assert err <= 0.1 * scale + 1e-3, (err, scale)

    print("KERNEL_OK")
</pallas_src>

<mosaic_0001>
module attributes {stable_mosaic.version = 11 : i64} {
  func.func @_generator_kernel(%arg0: i32, %arg1: memref<1x1x32xf32, #tpu.memory_space<vmem>>, %arg2: memref<32x64xbf16, #tpu.memory_space<vmem>>, %arg3: memref<1x64xf32, #tpu.memory_space<vmem>>, %arg4: memref<64x512xbf16, #tpu.memory_space<vmem>>, %arg5: memref<1x512xf32, #tpu.memory_space<vmem>>, %arg6: memref<5x3x128x256xbf16, #tpu.memory_space<vmem>>, %arg7: memref<5x1x256xf32, #tpu.memory_space<vmem>>, %arg8: memref<1x64x256xf32, #tpu.memory_space<vmem>>, %arg9: memref<66x128xbf16, #tpu.memory_space<vmem>>) attributes {dimension_semantics = [#tpu.dimension_semantics<parallel>], iteration_bounds = array<i64: 2>, scalar_prefetch = 0 : i64, scratch_operands = 1 : i64, tpu.core_type = #tpu.core_type<tc>, window_params = [{transform_indices = @transform_0, window_bounds = array<i64: 1, 1, 32>}, {pipeline_mode = #tpu.pipeline_mode<synchronous>, transform_indices = @transform_1, window_bounds = array<i64: 32, 64>}, {pipeline_mode = #tpu.pipeline_mode<synchronous>, transform_indices = @transform_2, window_bounds = array<i64: 1, 64>}, {pipeline_mode = #tpu.pipeline_mode<synchronous>, transform_indices = @transform_3, window_bounds = array<i64: 64, 512>}, {pipeline_mode = #tpu.pipeline_mode<synchronous>, transform_indices = @transform_4, window_bounds = array<i64: 1, 512>}, {pipeline_mode = #tpu.pipeline_mode<synchronous>, transform_indices = @transform_5, window_bounds = array<i64: 5, 3, 128, 256>}, {pipeline_mode = #tpu.pipeline_mode<synchronous>, transform_indices = @transform_6, window_bounds = array<i64: 5, 1, 256>}, {transform_indices = @transform_7, window_bounds = array<i64: 1, 64, 256>}]} {
    %cst = arith.constant 0.000000e+00 : bf16
    %0 = vector.broadcast %cst : bf16 to vector<66x128xbf16>
    %c0 = arith.constant 0 : index
    %c0_0 = arith.constant 0 : index
    %1 = vector.load %arg9[%c0, %c0_0] : memref<66x128xbf16, #tpu.memory_space<vmem>>, vector<66x128xbf16>
    tpu.vector_store %arg9[%c0, %c0_0], %0 {strides = array<i32>} : memref<66x128xbf16, #tpu.memory_space<vmem>>, vector<66x128xbf16>,
    %c0_1 = arith.constant 0 : index
    %c0_2 = arith.constant 0 : index
    %c0_3 = arith.constant 0 : index
    %2 = vector.load %arg1[%c0_1, %c0_2, %c0_3] : memref<1x1x32xf32, #tpu.memory_space<vmem>>, vector<1x1x32xf32>
    %3 = vector.shape_cast %2 : vector<1x1x32xf32> to vector<1x32xf32>
    %4 = arith.truncf %3 : vector<1x32xf32> to vector<1x32xbf16>
    %c0_4 = arith.constant 0 : index
    %c0_5 = arith.constant 0 : index
    %5 = vector.load %arg2[%c0_4, %c0_5] : memref<32x64xbf16, #tpu.memory_space<vmem>>, vector<32x64xbf16>
    %cst_6 = arith.constant dense<0.000000e+00> : vector<1x64xf32>
    %6 = tpu.matmul %4, %5, %cst_6 {dimension_numbers = #tpu.dot_dimension_numbers<[1], [0], [0], [1], [0, 0, 1, 1], [], []>} : vector<1x32xbf16>, vector<32x64xbf16>, vector<1x64xf32> -> vector<1x64xf32>
    %c0_7 = arith.constant 0 : index
    %c0_8 = arith.constant 0 : index
    %7 = vector.load %arg3[%c0_7, %c0_8] : memref<1x64xf32, #tpu.memory_space<vmem>>, vector<1x64xf32>
    %8 = arith.addf %6, %7 : vector<1x64xf32>
    %cst_9 = arith.constant 0.000000e+00 : f32
    %9 = vector.broadcast %cst_9 : f32 to vector<1x64xf32>
    %10 = arith.maximumf %8, %9 : vector<1x64xf32>
    %11 = arith.truncf %10 : vector<1x64xf32> to vector<1x64xbf16>
    %c0_10 = arith.constant 0 : index
    %c0_11 = arith.constant 0 : index
    %12 = vector.load %arg4[%c0_10, %c0_11] : memref<64x512xbf16, #tpu.memory_space<vmem>>, vector<64x512xbf16>
    %cst_12 = arith.constant dense<0.000000e+00> : vector<1x512xf32>
    %13 = tpu.matmul %11, %12, %cst_12 {dimension_numbers = #tpu.dot_dimension_numbers<[1], [0], [0], [1], [0, 0, 1, 1], [], []>} : vector<1x64xbf16>, vector<64x512xbf16>, vector<1x512xf32> -> vector<1x512xf32>
    %c0_13 = arith.constant 0 : index
    %c0_14 = arith.constant 0 : index
    %14 = vector.load %arg5[%c0_13, %c0_14] : memref<1x512xf32, #tpu.memory_space<vmem>>, vector<1x512xf32>
    %15 = arith.addf %13, %14 : vector<1x512xf32>
    %cst_15 = arith.constant 0.000000e+00 : f32
    %16 = vector.broadcast %cst_15 : f32 to vector<1x512xf32>
    %17 = arith.maximumf %15, %16 : vector<1x512xf32>
    %18 = arith.truncf %17 : vector<1x512xf32> to vector<1x512xbf16>
    %19 = vector.extract_strided_slice %18 {offsets = [0, 0], sizes = [1, 128], strides = [1, 1]} : vector<1x512xbf16> to vector<1x128xbf16>
    %20 = vector.shape_cast %19 : vector<1x128xbf16> to vector<128xbf16>
    %c1 = arith.constant 1 : index
    %c0_16 = arith.constant 0 : index
    %21 = vector.load %arg9[%c1, %c0_16] : memref<66x128xbf16, #tpu.memory_space<vmem>>, vector<1x128xbf16>
    %22 = vector.shape_cast %21 : vector<1x128xbf16> to vector<128xbf16>
    %23 = vector.shape_cast %20 : vector<128xbf16> to vector<1x128xbf16>
    tpu.vector_store %arg9[%c1, %c0_16], %23 {strides = array<i32>} : memref<66x128xbf16, #tpu.memory_space<vmem>>, vector<1x128xbf16>,
    %24 = vector.extract_strided_slice %18 {offsets = [0, 128], sizes = [1, 128], strides = [1, 1]} : vector<1x512xbf16> to vector<1x128xbf16>
    %25 = vector.shape_cast %24 : vector<1x128xbf16> to vector<128xbf16>
    %c2 = arith.constant 2 : index
    %c0_17 = arith.constant 0 : index
    %26 = vector.load %arg9[%c2, %c0_17] : memref<66x128xbf16, #tpu.memory_space<vmem>>, vector<1x128xbf16>
    %27 = vector.shape_cast %26 : vector<1x128xbf16> to vector<128xbf16>
    %28 = vector.shape_cast %25 : vector<128xbf16> to vector<1x128xbf16>
    tpu.vector_store %arg9[%c2, %c0_17], %28 {strides = array<i32>} : memref<66x128xbf16, #tpu.memory_space<vmem>>, vector<1x128xbf16>,
    %29 = vector.extract_strided_slice %18 {offsets = [0, 256], sizes = [1, 128], strides = [1, 1]} : vector<1x512xbf16> to vector<1x128xbf16>
    %30 = vector.shape_cast %29 : vector<1x128xbf16> to vector<128xbf16>
    %c3 = arith.constant 3 : index
    %c0_18 = arith.constant 0 : index
    %31 = vector.load %arg9[%c3, %c0_18] : memref<66x128xbf16, #tpu.memory_space<vmem>>, vector<1x128xbf16>
    %32 = vector.shape_cast %31 : vector<1x128xbf16> to vector<128xbf16>
    %33 = vector.shape_cast %30 : vector<128xbf16> to vector<1x128xbf16>
    tpu.vector_store %arg9[%c3, %c0_18], %33 {strides = array<i32>} : memref<66x128xbf16, #tpu.memory_space<vmem>>, vector<1x128xbf16>,
    %34 = vector.extract_strided_slice %18 {offsets = [0, 384], sizes = [1, 128], strides = [1, 1]} : vector<1x512xbf16> to vector<1x128xbf16>
    %35 = vector.shape_cast %34 : vector<1x128xbf16> to vector<128xbf16>
    %c4 = arith.constant 4 : index
    %c0_19 = arith.constant 0 : index
    %36 = vector.load %arg9[%c4, %c0_19] : memref<66x128xbf16, #tpu.memory_space<vmem>>, vector<1x128xbf16>
    %37 = vector.shape_cast %36 : vector<1x128xbf16> to vector<128xbf16>
    %38 = vector.shape_cast %35 : vector<128xbf16> to vector<1x128xbf16>
    tpu.vector_store %arg9[%c4, %c0_19], %38 {strides = array<i32>} : memref<66x128xbf16, #tpu.memory_space<vmem>>, vector<1x128xbf16>,
    %c0_20 = arith.constant 0 : index
    %c0_21 = arith.constant 0 : index
    %39 = vector.load %arg9[%c0_20, %c0_21] : memref<66x128xbf16, #tpu.memory_space<vmem>>, vector<4x128xbf16>
    %c1_22 = arith.constant 1 : index
    %c0_23 = arith.constant 0 : index
    %40 = vector.load %arg9[%c1_22, %c0_23] : memref<66x128xbf16, #tpu.memory_space<vmem>>, vector<4x128xbf16>
    %c2_24 = arith.constant 2 : index
    %c0_25 = arith.constant 0 : index
    %41 = vector.load %arg9[%c2_24, %c0_25] : memref<66x128xbf16, #tpu.memory_space<vmem>>, vector<4x128xbf16>
    %c0_26 = arith.constant 0 : index
    %c0_27 = arith.constant 0 : index
    %c0_28 = arith.constant 0 : index
    %c0_29 = arith.constant 0 : index
    %42 = vector.load %arg6[%c0_26, %c0_27, %c0_28, %c0_29] : memref<5x3x128x256xbf16, #tpu.memory_space<vmem>>, vector<1x1x128x256xbf16>
    %43 = vector.shape_cast %42 : vector<1x1x128x256xbf16> to vector<128x256xbf16>
    %cst_30 = arith.constant dense<0.000000e+00> : vector<4x256xf32>
    %44 = tpu.matmul %39, %43, %cst_30 {dimension_numbers = #tpu.dot_dimension_numbers<[1], [0], [0], [1], [0, 0, 1, 1], [], []>} : vector<4x128xbf16>, vector<128x256xbf16>, vector<4x256xf32> -> vector<4x256xf32>
    %c0_31 = arith.constant 0 : index
    %c1_32 = arith.constant 1 : index
    %c0_33 = arith.constant 0 : index
    %c0_34 = arith.constant 0 : index
    %45 = vector.load %arg6[%c0_31, %c1_32, %c0_33, %c0_34] : memref<5x3x128x256xbf16, #tpu.memory_space<vmem>>, vector<1x1x128x256xbf16>
    %46 = vector.shape_cast %45 : vector<1x1x128x256xbf16> to vector<128x256xbf16>
    %cst_35 = arith.constant dense<0.000000e+00> : vector<4x256xf32>
    %47 = tpu.matmul %40, %46, %cst_35 {dimension_numbers = #tpu.dot_dimension_numbers<[1], [0], [0], [1], [0, 0, 1, 1], [], []>} : vector<4x128xbf16>, vector<128x256xbf16>, vector<4x256xf32> -> vector<4x256xf32>
    %48 = arith.addf %44, %47 : vector<4x256xf32>
    %c0_36 = arith.constant 0 : index
    %c2_37 = arith.constant 2 : index
    %c0_38 = arith.constant 0 : index
    %c0_39 = arith.constant 0 : index
    %49 = vector.load %arg6[%c0_36, %c2_37, %c0_38, %c0_39] : memref<5x3x128x256xbf16, #tpu.memory_space<vmem>>, vector<1x1x128x256xbf16>
    %50 = vector.shape_cast %49 : vector<1x1x128x256xbf16> to vector<128x256xbf16>
    %cst_40 = arith.constant dense<0.000000e+00> : vector<4x256xf32>
    %51 = tpu.matmul %41, %50, %cst_40 {dimension_numbers = #tpu.dot_dimension_numbers<[1], [0], [0], [1], [0, 0, 1, 1], [], []>} : vector<4x128xbf16>, vector<128x256xbf16>, vector<4x256xf32> -> vector<4x256xf32>
    %52 = arith.addf %48, %51 : vector<4x256xf32>
    %c0_41 = arith.constant 0 : index
    %c0_42 = arith.constant 0 : index
    %c0_43 = arith.constant 0 : index
    %53 = vector.load %arg7[%c0_41, %c0_42, %c0_43] : memref<5x1x256xf32, #tpu.memory_space<vmem>>, vector<1x1x256xf32>
    %54 = vector.shape_cast %53 : vector<1x1x256xf32> to vector<1x256xf32>
    %55 = vector.broadcast %54 : vector<1x256xf32> to vector<4x256xf32>
    %56 = arith.addf %52, %55 : vector<4x256xf32>
    %cst_44 = arith.constant 0.000000e+00 : f32
    %57 = vector.broadcast %cst_44 : f32 to vector<4x256xf32>
    %58 = arith.maximumf %56, %57 : vector<4x256xf32>
    %59 = arith.truncf %58 : vector<4x256xf32> to vector<4x256xbf16>
    %60 = vector.extract_strided_slice %59 {offsets = [0, 0], sizes = [1, 128], strides = [1, 1]} : vector<4x256xbf16> to vector<1x128xbf16>
    %61 = vector.shape_cast %60 : vector<1x128xbf16> to vector<128xbf16>
    %c1_45 = arith.constant 1 : index
    %c0_46 = arith.constant 0 : index
    %62 = vector.load %arg9[%c1_45, %c0_46] : memref<66x128xbf16, #tpu.memory_space<vmem>>, vector<1x128xbf16>
    %63 = vector.shape_cast %62 : vector<1x128xbf16> to vector<128xbf16>
    %64 = vector.shape_cast %61 : vector<128xbf16> to vector<1x128xbf16>
    tpu.vector_store %arg9[%c1_45, %c0_46], %64 {strides = array<i32>} : memref<66x128xbf16, #tpu.memory_space<vmem>>, vector<1x128xbf16>,
    %65 = vector.extract_strided_slice %59 {offsets = [0, 128], sizes = [1, 128], strides = [1, 1]} : vector<4x256xbf16> to vector<1x128xbf16>
    %66 = vector.shape_cast %65 : vector<1x128xbf16> to vector<128xbf16>
    %c2_47 = arith.constant 2 : index
    %c0_48 = arith.constant 0 : index
    %67 = vector.load %arg9[%c2_47, %c0_48] : memref<66x128xbf16, #tpu.memory_space<vmem>>, vector<1x128xbf16>
    %68 = vector.shape_cast %67 : vector<1x128xbf16> to vector<128xbf16>
    %69 = vector.shape_cast %66 : vector<128xbf16> to vector<1x128xbf16>
    tpu.vector_store %arg9[%c2_47, %c0_48], %69 {strides = array<i32>} : memref<66x128xbf16, #tpu.memory_space<vmem>>, vector<1x128xbf16>,
    %70 = vector.extract_strided_slice %59 {offsets = [1, 0], sizes = [1, 128], strides = [1, 1]} : vector<4x256xbf16> to vector<1x128xbf16>
    %71 = vector.shape_cast %70 : vector<1x128xbf16> to vector<128xbf16>
    %c3_49 = arith.constant 3 : index
    %c0_50 = arith.constant 0 : index
    %72 = vector.load %arg9[%c3_49, %c0_50] : memref<66x128xbf16, #tpu.memory_space<vmem>>, vector<1x128xbf16>
    %73 = vector.shape_cast %72 : vector<1x128xbf16> to vector<128xbf16>
    %74 = vector.shape_cast %71 : vector<128xbf16> to vector<1x128xbf16>
    tpu.vector_store %arg9[%c3_49, %c0_50], %74 {strides = array<i32>} : memref<66x128xbf16, #tpu.memory_space<vmem>>, vector<1x128xbf16>,
    %75 = vector.extract_strided_slice %59 {offsets = [1, 128], sizes = [1, 128], strides = [1, 1]} : vector<4x256xbf16> to vector<1x128xbf16>
    %76 = vector.shape_cast %75 : vector<1x128xbf16> to vector<128xbf16>
    %c4_51 = arith.constant 4 : index
    %c0_52 = arith.constant 0 : index
    %77 = vector.load %arg9[%c4_51, %c0_52] : memref<66x128xbf16, #tpu.memory_space<vmem>>, vector<1x128xbf16>
    %78 = vector.shape_cast %77 : vector<1x128xbf16> to vector<128xbf16>
    %79 = vector.shape_cast %76 : vector<128xbf16> to vector<1x128xbf16>
    tpu.vector_store %arg9[%c4_51, %c0_52], %79 {strides = array<i32>} : memref<66x128xbf16, #tpu.memory_space<vmem>>, vector<1x128xbf16>,
    %80 = vector.extract_strided_slice %59 {offsets = [2, 0], sizes = [1, 128], strides = [1, 1]} : vector<4x256xbf16> to vector<1x128xbf16>
    %81 = vector.shape_cast %80 : vector<1x128xbf16> to vector<128xbf16>
    %c5 = arith.constant 5 : index
    %c0_53 = arith.constant 0 : index
    %82 = vector.load %arg9[%c5, %c0_53] : memref<66x128xbf16, #tpu.memory_space<vmem>>, vector<1x128xbf16>
    %83 = vector.shape_cast %82 : vector<1x128xbf16> to vector<128xbf16>
    %84 = vector.shape_cast %81 : vector<128xbf16> to vector<1x128xbf16>
    tpu.vector_store %arg9[%c5, %c0_53], %84 {strides = array<i32>} : memref<66x128xbf16, #tpu.memory_space<vmem>>, vector<1x128xbf16>,
    %85 = vector.extract_strided_slice %59 {offsets = [2, 128], sizes = [1, 128], strides = [1, 1]} : vector<4x256xbf16> to vector<1x128xbf16>
    %86 = vector.shape_cast %85 : vector<1x128xbf16> to vector<128xbf16>
    %c6 = arith.constant 6 : index
    %c0_54 = arith.constant 0 : index
    %87 = vector.load %arg9[%c6, %c0_54] : memref<66x128xbf16, #tpu.memory_space<vmem>>, vector<1x128xbf16>
    %88 = vector.shape_cast %87 : vector<1x128xbf16> to vector<128xbf16>
    %89 = vector.shape_cast %86 : vector<128xbf16> to vector<1x128xbf16>
    tpu.vector_store %arg9[%c6, %c0_54], %89 {strides = array<i32>} : memref<66x128xbf16, #tpu.memory_space<vmem>>, vector<1x128xbf16>,
    %90 = vector.extract_strided_slice %59 {offsets = [3, 0], sizes = [1, 128], strides = [1, 1]} : vector<4x256xbf16> to vector<1x128xbf16>
    %91 = vector.shape_cast %90 : vector<1x128xbf16> to vector<128xbf16>
    %c7 = arith.constant 7 : index
    %c0_55 = arith.constant 0 : index
    %92 = vector.load %arg9[%c7, %c0_55] : memref<66x128xbf16, #tpu.memory_space<vmem>>, vector<1x128xbf16>
    %93 = vector.shape_cast %92 : vector<1x128xbf16> to vector<128xbf16>
    %94 = vector.shape_cast %91 : vector<128xbf16> to vector<1x128xbf16>
    tpu.vector_store %arg9[%c7, %c0_55], %94 {strides = array<i32>} : memref<66x128xbf16, #tpu.memory_space<vmem>>, vector<1x128xbf16>,
    %95 = vector.extract_strided_slice %59 {offsets = [3, 128], sizes = [1, 128], strides = [1, 1]} : vector<4x256xbf16> to vector<1x128xbf16>
    %96 = vector.shape_cast %95 : vector<1x128xbf16> to vector<128xbf16>
    %c8 = arith.constant 8 : index
    %c0_56 = arith.constant 0 : index
    %97 = vector.load %arg9[%c8, %c0_56] : memref<66x128xbf16, #tpu.memory_space<vmem>>, vector<1x128xbf16>
    %98 = vector.shape_cast %97 : vector<1x128xbf16> to vector<128xbf16>
    %99 = vector.shape_cast %96 : vector<128xbf16> to vector<1x128xbf16>
    tpu.vector_store %arg9[%c8, %c0_56], %99 {strides = array<i32>} : memref<66x128xbf16, #tpu.memory_space<vmem>>, vector<1x128xbf16>,
    %c0_57 = arith.constant 0 : index
    %c0_58 = arith.constant 0 : index
    %100 = vector.load %arg9[%c0_57, %c0_58] : memref<66x128xbf16, #tpu.memory_space<vmem>>, vector<8x128xbf16>
    %c1_59 = arith.constant 1 : index
    %c0_60 = arith.constant 0 : index
    %101 = vector.load %arg9[%c1_59, %c0_60] : memref<66x128xbf16, #tpu.memory_space<vmem>>, vector<8x128xbf16>
    %c2_61 = arith.constant 2 : index
    %c0_62 = arith.constant 0 : index
    %102 = vector.load %arg9[%c2_61, %c0_62] : memref<66x128xbf16, #tpu.memory_space<vmem>>, vector<8x128xbf16>
    %c1_63 = arith.constant 1 : index
    %c0_64 = arith.constant 0 : index
    %c0_65 = arith.constant 0 : index
    %c0_66 = arith.constant 0 : index
    %103 = vector.load %arg6[%c1_63, %c0_64, %c0_65, %c0_66] : memref<5x3x128x256xbf16, #tpu.memory_space<vmem>>, vector<1x1x128x256xbf16>
    %104 = vector.shape_cast %103 : vector<1x1x128x256xbf16> to vector<128x256xbf16>
    %cst_67 = arith.constant dense<0.000000e+00> : vector<8x256xf32>
    %105 = tpu.matmul %100, %104, %cst_67 {dimension_numbers = #tpu.dot_dimension_numbers<[1], [0], [0], [1], [0, 0, 1, 1], [], []>} : vector<8x128xbf16>, vector<128x256xbf16>, vector<8x256xf32> -> vector<8x256xf32>
    %c1_68 = arith.constant 1 : index
    %c1_69 = arith.constant 1 : index
    %c0_70 = arith.constant 0 : index
    %c0_71 = arith.constant 0 : index
    %106 = vector.load %arg6[%c1_68, %c1_69, %c0_70, %c0_71] : memref<5x3x128x256xbf16, #tpu.memory_space<vmem>>, vector<1x1x128x256xbf16>
    %107 = vector.shape_cast %106 : vector<1x1x128x256xbf16> to vector<128x256xbf16>
    %cst_72 = arith.constant dense<0.000000e+00> : vector<8x256xf32>
    %108 = tpu.matmul %101, %107, %cst_72 {dimension_numbers = #tpu.dot_dimension_numbers<[1], [0], [0], [1], [0, 0, 1, 1], [], []>} : vector<8x128xbf16>, vector<128x256xbf16>, vector<8x256xf32> -> vector<8x256xf32>
    %109 = arith.addf %105, %108 : vector<8x256xf32>
    %c1_73 = arith.constant 1 : index
    %c2_74 = arith.constant 2 : index
    %c0_75 = arith.constant 0 : index
    %c0_76 = arith.constant 0 : index
    %110 = vector.load %arg6[%c1_73, %c2_74, %c0_75, %c0_76] : memref<5x3x128x256xbf16, #tpu.memory_space<vmem>>, vector<1x1x128x256xbf16>
    %111 = vector.shape_cast %110 : vector<1x1x128x256xbf16> to vector<128x256xbf16>
    %cst_77 = arith.constant dense<0.000000e+00> : vector<8x256xf32>
    %112 = tpu.matmul %102, %111, %cst_77 {dimension_numbers = #tpu.dot_dimension_numbers<[1], [0], [0], [1], [0, 0, 1, 1], [], []>} : vector<8x128xbf16>, vector<128x256xbf16>, vector<8x256xf32> -> vector<8x256xf32>
    %113 = arith.addf %109, %112 : vector<8x256xf32>
    %c1_78 = arith.constant 1 : index
    %c0_79 = arith.constant 0 : index
    %c0_80 = arith.constant 0 : index
    %114 = vector.load %arg7[%c1_78, %c0_79, %c0_80] : memref<5x1x256xf32, #tpu.memory_space<vmem>>, vector<1x1x256xf32>
    %115 = vector.shape_cast %114 : vector<1x1x256xf32> to vector<1x256xf32>
    %116 = vector.broadcast %115 : vector<1x256xf32> to vector<8x256xf32>
    %117 = arith.addf %113, %116 : vector<8x256xf32>
    %cst_81 = arith.constant 0.000000e+00 : f32
    %118 = vector.broadcast %cst_81 : f32 to vector<8x256xf32>
    %119 = arith.maximumf %117, %118 : vector<8x256xf32>
    %120 = arith.truncf %119 : vector<8x256xf32> to vector<8x256xbf16>
    %121 = vector.extract_strided_slice %120 {offsets = [0, 0], sizes = [1, 128], strides = [1, 1]} : vector<8x256xbf16> to vector<1x128xbf16>
    %122 = vector.shape_cast %121 : vector<1x128xbf16> to vector<128xbf16>
    %c1_82 = arith.constant 1 : index
    %c0_83 = arith.constant 0 : index
    %123 = vector.load %arg9[%c1_82, %c0_83] : memref<66x128xbf16, #tpu.memory_space<vmem>>, vector<1x128xbf16>
    %124 = vector.shape_cast %123 : vector<1x128xbf16> to vector<128xbf16>
    %125 = vector.shape_cast %122 : vector<128xbf16> to vector<1x128xbf16>
    tpu.vector_store %arg9[%c1_82, %c0_83], %125 {strides = array<i32>} : memref<66x128xbf16, #tpu.memory_space<vmem>>, vector<1x128xbf16>,
    %126 = vector.extract_strided_slice %120 {offsets = [0, 128], sizes = [1, 128], strides = [1, 1]} : vector<8x256xbf16> to vector<1x128xbf16>
    %127 = vector.shape_cast %126 : vector<1x128xbf16> to vector<128xbf16>
    %c2_84 = arith.constant 2 : index
    %c0_85 = arith.constant 0 : index
    %128 = vector.load %arg9[%c2_84, %c0_85] : memref<66x128xbf16, #tpu.memory_space<vmem>>, vector<1x128xbf16>
    %129 = vector.shape_cast %128 : vector<1x128xbf16> to vector<128xbf16>
    %130 = vector.shape_cast %127 : vector<128xbf16> to vector<1x128xbf16>
    tpu.vector_store %arg9[%c2_84, %c0_85], %130 {strides = array<i32>} : memref<66x128xbf16, #tpu.memory_space<vmem>>, vector<1x128xbf16>,
    %131 = vector.extract_strided_slice %120 {offsets = [1, 0], sizes = [1, 128], strides = [1, 1]} : vector<8x256xbf16> to vector<1x128xbf16>
    %132 = vector.shape_cast %131 : vector<1x128xbf16> to vector<128xbf16>
    %c3_86 = arith.constant 3 : index
    %c0_87 = arith.constant 0 : index
    %133 = vector.load %arg9[%c3_86, %c0_87] : memref<66x128xbf16, #tpu.memory_space<vmem>>, vector<1x128xbf16>
    %134 = vector.shape_cast %133 : vector<1x128xbf16> to vector<128xbf16>
    %135 = vector.shape_cast %132 : vector<128xbf16> to vector<1x128xbf16>
    tpu.vector_store %arg9[%c3_86, %c0_87], %135 {strides = array<i32>} : memref<66x128xbf16, #tpu.memory_space<vmem>>, vector<1x128xbf16>,
    %136 = vector.extract_strided_slice %120 {offsets = [1, 128], sizes = [1, 128], strides = [1, 1]} : vector<8x256xbf16> to vector<1x128xbf16>
    %137 = vector.shape_cast %136 : vector<1x128xbf16> to vector<128xbf16>
    %c4_88 = arith.constant 4 : index
    %c0_89 = arith.constant 0 : index
    %138 = vector.load %arg9[%c4_88, %c0_89] : memref<66x128xbf16, #tpu.memory_space<vmem>>, vector<1x128xbf16>
    %139 = vector.shape_cast %138 : vector<1x128xbf16> to vector<128xbf16>
    %140 = vector.shape_cast %137 : vector<128xbf16> to vector<1x128xbf16>
    tpu.vector_store %arg9[%c4_88, %c0_89], %140 {strides = array<i32>} : memref<66x128xbf16, #tpu.memory_space<vmem>>, vector<1x128xbf16>,
    %141 = vector.extract_strided_slice %120 {offsets = [2, 0], sizes = [1, 128], strides = [1, 1]} : vector<8x256xbf16> to vector<1x128xbf16>
    %142 = vector.shape_cast %141 : vector<1x128xbf16> to vector<128xbf16>
    %c5_90 = arith.constant 5 : index
    %c0_91 = arith.constant 0 : index
    %143 = vector.load %arg9[%c5_90, %c0_91] : memref<66x128xbf16, #tpu.memory_space<vmem>>, vector<1x128xbf16>
    %144 = vector.shape_cast %143 : vector<1x128xbf16> to vector<128xbf16>
    %145 = vector.shape_cast %142 : vector<128xbf16> to vector<1x128xbf16>
    tpu.vector_store %arg9[%c5_90, %c0_91], %145 {strides = array<i32>} : memref<66x128xbf16, #tpu.memory_space<vmem>>, vector<1x128xbf16>,
    %146 = vector.extract_strided_slice %120 {offsets = [2, 128], sizes = [1, 128], strides = [1, 1]} : vector<8x256xbf16> to vector<1x128xbf16>
    %147 = vector.shape_cast %146 : vector<1x128xbf16> to vector<128xbf16>
    %c6_92 = arith.constant 6 : index
    %c0_93 = arith.constant 0 : index
    %148 = vector.load %arg9[%c6_92, %c0_93] : memref<66x128xbf16, #tpu.memory_space<vmem>>, vector<1x128xbf16>
    %149 = vector.shape_cast %148 : vector<1x128xbf16> to vector<128xbf16>
    %150 = vector.shape_cast %147 : vector<128xbf16> to vector<1x128xbf16>
    tpu.vector_store %arg9[%c6_92, %c0_93], %150 {strides = array<i32>} : memref<66x128xbf16, #tpu.memory_space<vmem>>, vector<1x128xbf16>,
    %151 = vector.extract_strided_slice %120 {offsets = [3, 0], sizes = [1, 128], strides = [1, 1]} : vector<8x256xbf16> to vector<1x128xbf16>
    %152 = vector.shape_cast %151 : vector<1x128xbf16> to vector<128xbf16>
    %c7_94 = arith.constant 7 : index
    %c0_95 = arith.constant 0 : index
    %153 = vector.load %arg9[%c7_94, %c0_95] : memref<66x128xbf16, #tpu.memory_space<vmem>>, vector<1x128xbf16>
    %154 = vector.shape_cast %153 : vector<1x128xbf16> to vector<128xbf16>
    %155 = vector.shape_cast %152 : vector<128xbf16> to vector<1x128xbf16>
    tpu.vector_store %arg9[%c7_94, %c0_95], %155 {strides = array<i32>} : memref<66x128xbf16, #tpu.memory_space<vmem>>, vector<1x128xbf16>,
    %156 = vector.extract_strided_slice %120 {offsets = [3, 128], sizes = [1, 128], strides = [1, 1]} : vector<8x256xbf16> to vector<1x128xbf16>
    %157 = vector.shape_cast %156 : vector<1x128xbf16> to vector<128xbf16>
    %c8_96 = arith.constant 8 : index
    %c0_97 = arith.constant 0 : index
    %158 = vector.load %arg9[%c8_96, %c0_97] : memref<66x128xbf16, #tpu.memory_space<vmem>>, vector<1x128xbf16>
    %159 = vector.shape_cast %158 : vector<1x128xbf16> to vector<128xbf16>
    %160 = vector.shape_cast %157 : vector<128xbf16> to vector<1x128xbf16>
    tpu.vector_store %arg9[%c8_96, %c0_97], %160 {strides = array<i32>} : memref<66x128xbf16, #tpu.memory_space<vmem>>, vector<1x128xbf16>,
    %161 = vector.extract_strided_slice %120 {offsets = [4, 0], sizes = [1, 128], strides = [1, 1]} : vector<8x256xbf16> to vector<1x128xbf16>
    %162 = vector.shape_cast %161 : vector<1x128xbf16> to vector<128xbf16>
    %c9 = arith.constant 9 : index
    %c0_98 = arith.constant 0 : index
    %163 = vector.load %arg9[%c9, %c0_98] : memref<66x128xbf16, #tpu.memory_space<vmem>>, vector<1x128xbf16>
    %164 = vector.shape_cast %163 : vector<1x128xbf16> to vector<128xbf16>
    %165 = vector.shape_cast %162 : vector<128xbf16> to vector<1x128xbf16>
    tpu.vector_store %arg9[%c9, %c0_98], %165 {strides = array<i32>} : memref<66x128xbf16, #tpu.memory_space<vmem>>, vector<1x128xbf16>,
    %166 = vector.extract_strided_slice %120 {offsets = [4, 128], sizes = [1, 128], strides = [1, 1]} : vector<8x256xbf16> to vector<1x128xbf16>
    %167 = vector.shape_cast %166 : vector<1x128xbf16> to vector<128xbf16>
    %c10 = arith.constant 10 : index
    %c0_99 = arith.constant 0 : index
    %168 = vector.load %arg9[%c10, %c0_99] : memref<66x128xbf16, #tpu.memory_space<vmem>>, vector<1x128xbf16>
    %169 = vector.shape_cast %168 : vector<1x128xbf16> to vector<128xbf16>
    %170 = vector.shape_cast %167 : vector<128xbf16> to vector<1x128xbf16>
    tpu.vector_store %arg9[%c10, %c0_99], %170 {strides = array<i32>} : memref<66x128xbf16, #tpu.memory_space<vmem>>, vector<1x128xbf16>,
    %171 = vector.extract_strided_slice %120 {offsets = [5, 0], sizes = [1, 128], strides = [1, 1]} : vector<8x256xbf16> to vector<1x128xbf16>
    %172 = vector.shape_cast %171 : vector<1x128xbf16> to vector<128xbf16>
    %c11 = arith.constant 11 : index
    %c0_100 = arith.constant 0 : index
    %173 = vector.load %arg9[%c11, %c0_100] : memref<66x128xbf16, #tpu.memory_space<vmem>>, vector<1x128xbf16>
    %174 = vector.shape_cast %173 : vector<1x128xbf16> to vector<128xbf16>
    %175 = vector.shape_cast %172 : vector<128xbf16> to vector<1x128xbf16>
    tpu.vector_store %arg9[%c11, %c0_100], %175 {strides = array<i32>} : memref<66x128xbf16, #tpu.memory_space<vmem>>, vector<1x128xbf16>,
    %176 = vector.extract_strided_slice %120 {offsets = [5, 128], sizes = [1, 128], strides = [1, 1]} : vector<8x256xbf16> to vector<1x128xbf16>
    %177 = vector.shape_cast %176 : vector<1x128xbf16> to vector<128xbf16>
    %c12 = arith.constant 12 : index
    %c0_101 = arith.constant 0 : index
    %178 = vector.load %arg9[%c12, %c0_101] : memref<66x128xbf16, #tpu.memory_space<vmem>>, vector<1x128xbf16>
    %179 = vector.shape_cast %178 : vector<1x128xbf16> to vector<128xbf16>
    %180 = vector.shape_cast %177 : vector<128xbf16> to vector<1x128xbf16>
    tpu.vector_store %arg9[%c12, %c0_101], %180 {strides = array<i32>} : memref<66x128xbf16, #tpu.memory_space<vmem>>, vector<1x128xbf16>,
    %181 = vector.extract_strided_slice %120 {offsets = [6, 0], sizes = [1, 128], strides = [1, 1]} : vector<8x256xbf16> to vector<1x128xbf16>
    %182 = vector.shape_cast %181 : vector<1x128xbf16> to vector<128xbf16>
    %c13 = arith.constant 13 : index
    %c0_102 = arith.constant 0 : index
    %183 = vector.load %arg9[%c13, %c0_102] : memref<66x128xbf16, #tpu.memory_space<vmem>>, vector<1x128xbf16>
    %184 = vector.shape_cast %183 : vector<1x128xbf16> to vector<128xbf16>
    %185 = vector.shape_cast %182 : vector<128xbf16> to vector<1x128xbf16>
    tpu.vector_store %arg9[%c13, %c0_102], %185 {strides = array<i32>} : memref<66x128xbf16, #tpu.memory_space<vmem>>, vector<1x128xbf16>,
    %186 = vector.extract_strided_slice %120 {offsets = [6, 128], sizes = [1, 128], strides = [1, 1]} : vector<8x256xbf16> to vector<1x128xbf16>
    %187 = vector.shape_cast %186 : vector<1x128xbf16> to vector<128xbf16>
    %c14 = arith.constant 14 : index
    %c0_103 = arith.constant 0 : index
    %188 = vector.load %arg9[%c14, %c0_103] : memref<66x128xbf16, #tpu.memory_space<vmem>>, vector<1x128xbf16>
    %189 = vector.shape_cast %188 : vector<1x128xbf16> to vector<128xbf16>
    %190 = vector.shape_cast %187 : vector<128xbf16> to vector<1x128xbf16>
    tpu.vector_store %arg9[%c14, %c0_103], %190 {strides = array<i32>} : memref<66x128xbf16, #tpu.memory_space<vmem>>, vector<1x128xbf16>,
    %191 = vector.extract_strided_slice %120 {offsets = [7, 0], sizes = [1, 128], strides = [1, 1]} : vector<8x256xbf16> to vector<1x128xbf16>
    %192 = vector.shape_cast %191 : vector<1x128xbf16> to vector<128xbf16>
    %c15 = arith.constant 15 : index
    %c0_104 = arith.constant 0 : index
    %193 = vector.load %arg9[%c15, %c0_104] : memref<66x128xbf16, #tpu.memory_space<vmem>>, vector<1x128xbf16>
    %194 = vector.shape_cast %193 : vector<1x128xbf16> to vector<128xbf16>
    %195 = vector.shape_cast %192 : vector<128xbf16> to vector<1x128xbf16>
    tpu.vector_store %arg9[%c15, %c0_104], %195 {strides = array<i32>} : memref<66x128xbf16, #tpu.memory_space<vmem>>, vector<1x128xbf16>,
    %196 = vector.extract_strided_slice %120 {offsets = [7, 128], sizes = [1, 128], strides = [1, 1]} : vector<8x256xbf16> to vector<1x128xbf16>
    %197 = vector.shape_cast %196 : vector<1x128xbf16> to vector<128xbf16>
    %c16 = arith.constant 16 : index
    %c0_105 = arith.constant 0 : index
    %198 = vector.load %arg9[%c16, %c0_105] : memref<66x128xbf16, #tpu.memory_space<vmem>>, vector<1x128xbf16>
    %199 = vector.shape_cast %198 : vector<1x128xbf16> to vector<128xbf16>
    %200 = vector.shape_cast %197 : vector<128xbf16> to vector<1x128xbf16>
    tpu.vector_store %arg9[%c16, %c0_105], %200 {strides = array<i32>} : memref<66x128xbf16, #tpu.memory_space<vmem>>, vector<1x128xbf16>,
    %c0_106 = arith.constant 0 : index
    %c0_107 = arith.constant 0 : index
    %201 = vector.load %arg9[%c0_106, %c0_107] : memref<66x128xbf16, #tpu.memory_space<vmem>>, vector<16x128xbf16>
    %c1_108 = arith.constant 1 : index
    %c0_109 = arith.constant 0 : index
    %202 = vector.load %arg9[%c1_108, %c0_109] : memref<66x128xbf16, #tpu.memory_space<vmem>>, vector<16x128xbf16>
    %c2_110 = arith.constant 2 : index
    %c0_111 = arith.constant 0 : index
    %203 = vector.load %arg9[%c2_110, %c0_111] : memref<66x128xbf16, #tpu.memory_space<vmem>>, vector<16x128xbf16>
    %c2_112 = arith.constant 2 : index
    %c0_113 = arith.constant 0 : index
    %c0_114 = arith.constant 0 : index
    %c0_115 = arith.constant 0 : index
    %204 = vector.load %arg6[%c2_112, %c0_113, %c0_114, %c0_115] : memref<5x3x128x256xbf16, #tpu.memory_space<vmem>>, vector<1x1x128x256xbf16>
    %205 = vector.shape_cast %204 : vector<1x1x128x256xbf16> to vector<128x256xbf16>
    %cst_116 = arith.constant dense<0.000000e+00> : vector<16x256xf32>
    %206 = tpu.matmul %201, %205, %cst_116 {dimension_numbers = #tpu.dot_dimension_numbers<[1], [0], [0], [1], [0, 0, 1, 1], [], []>} : vector<16x128xbf16>, vector<128x256xbf16>, vector<16x256xf32> -> vector<16x256xf32>
    %c2_117 = arith.constant 2 : index
    %c1_118 = arith.constant 1 : index
    %c0_119 = arith.constant 0 : index
    %c0_120 = arith.constant 0 : index
    %207 = vector.load %arg6[%c2_117, %c1_118, %c0_119, %c0_120] : memref<5x3x128x256xbf16, #tpu.memory_space<vmem>>, vector<1x1x128x256xbf16>
    %208 = vector.shape_cast %207 : vector<1x1x128x256xbf16> to vector<128x256xbf16>
    %cst_121 = arith.constant dense<0.000000e+00> : vector<16x256xf32>
    %209 = tpu.matmul %202, %208, %cst_121 {dimension_numbers = #tpu.dot_dimension_numbers<[1], [0], [0], [1], [0, 0, 1, 1], [], []>} : vector<16x128xbf16>, vector<128x256xbf16>, vector<16x256xf32> -> vector<16x256xf32>
    %210 = arith.addf %206, %209 : vector<16x256xf32>
    %c2_122 = arith.constant 2 : index
    %c2_123 = arith.constant 2 : index
    %c0_124 = arith.constant 0 : index
    %c0_125 = arith.constant 0 : index
    %211 = vector.load %arg6[%c2_122, %c2_123, %c0_124, %c0_125] : memref<5x3x128x256xbf16, #tpu.memory_space<vmem>>, vector<1x1x128x256xbf16>
    %212 = vector.shape_cast %211 : vector<1x1x128x256xbf16> to vector<128x256xbf16>
    %cst_126 = arith.constant dense<0.000000e+00> : vector<16x256xf32>
    %213 = tpu.matmul %203, %212, %cst_126 {dimension_numbers = #tpu.dot_dimension_numbers<[1], [0], [0], [1], [0, 0, 1, 1], [], []>} : vector<16x128xbf16>, vector<128x256xbf16>, vector<16x256xf32> -> vector<16x256xf32>
    %214 = arith.addf %210, %213 : vector<16x256xf32>
    %c2_127 = arith.constant 2 : index
    %c0_128 = arith.constant 0 : index
    %c0_129 = arith.constant 0 : index
    %215 = vector.load %arg7[%c2_127, %c0_128, %c0_129] : memref<5x1x256xf32, #tpu.memory_space<vmem>>, vector<1x1x256xf32>
    %216 = vector.shape_cast %215 : vector<1x1x256xf32> to vector<1x256xf32>
    %217 = vector.broadcast %216 : vector<1x256xf32> to vector<16x256xf32>
    %218 = arith.addf %214, %217 : vector<16x256xf32>
    %cst_130 = arith.constant 0.000000e+00 : f32
    %219 = vector.broadcast %cst_130 : f32 to vector<16x256xf32>
    %220 = arith.maximumf %218, %219 : vector<16x256xf32>
    %221 = arith.truncf %220 : vector<16x256xf32> to vector<16x256xbf16>
    %222 = vector.extract_strided_slice %221 {offsets = [0, 0], sizes = [1, 128], strides = [1, 1]} : vector<16x256xbf16> to vector<1x128xbf16>
    %223 = vector.shape_cast %222 : vector<1x128xbf16> to vector<128xbf16>
    %c1_131 = arith.constant 1 : index
    %c0_132 = arith.constant 0 : index
    %224 = vector.load %arg9[%c1_131, %c0_132] : memref<66x128xbf16, #tpu.memory_space<vmem>>, vector<1x128xbf16>
    %225 = vector.shape_cast %224 : vector<1x128xbf16> to vector<128xbf16>
    %226 = vector.shape_cast %223 : vector<128xbf16> to vector<1x128xbf16>
    tpu.vector_store %arg9[%c1_131, %c0_132], %226 {strides = array<i32>} : memref<66x128xbf16, #tpu.memory_space<vmem>>, vector<1x128xbf16>,
    %227 = vector.extract_strided_slice %221 {offsets = [0, 128], sizes = [1, 128], strides = [1, 1]} : vector<16x256xbf16> to vector<1x128xbf16>
    %228 = vector.shape_cast %227 : vector<1x128xbf16> to vector<128xbf16>
    %c2_133 = arith.constant 2 : index
    %c0_134 = arith.constant 0 : index
    %229 = vector.load %arg9[%c2_133, %c0_134] : memref<66x128xbf16, #tpu.memory_space<vmem>>, vector<1x128xbf16>
    %230 = vector.shape_cast %229 : vector<1x128xbf16> to vector<128xbf16>
    %231 = vector.shape_cast %228 : vector<128xbf16> to vector<1x128xbf16>
    tpu.vector_store %arg9[%c2_133, %c0_134], %231 {strides = array<i32>} : memref<66x128xbf16, #tpu.memory_space<vmem>>, vector<1x128xbf16>,
    %232 = vector.extract_strided_slice %221 {offsets = [1, 0], sizes = [1, 128], strides = [1, 1]} : vector<16x256xbf16> to vector<1x128xbf16>
    %233 = vector.shape_cast %232 : vector<1x128xbf16> to vector<128xbf16>
    %c3_135 = arith.constant 3 : index
    %c0_136 = arith.constant 0 : index
    %234 = vector.load %arg9[%c3_135, %c0_136] : memref<66x128xbf16, #tpu.memory_space<vmem>>, vector<1x128xbf16>
    %235 = vector.shape_cast %234 : vector<1x128xbf16> to vector<128xbf16>
    %236 = vector.shape_cast %233 : vector<128xbf16> to vector<1x128xbf16>
    tpu.vector_store %arg9[%c3_135, %c0_136], %236 {strides = array<i32>} : memref<66x128xbf16, #tpu.memory_space<vmem>>, vector<1x128xbf16>,
    %237 = vector.extract_strided_slice %221 {offsets = [1, 128], sizes = [1, 128], strides = [1, 1]} : vector<16x256xbf16> to vector<1x128xbf16>
    %238 = vector.shape_cast %237 : vector<1x128xbf16> to vector<128xbf16>
    %c4_137 = arith.constant 4 : index
    %c0_138 = arith.constant 0 : index
    %239 = vector.load %arg9[%c4_137, %c0_138] : memref<66x128xbf16, #tpu.memory_space<vmem>>, vector<1x128xbf16>
    %240 = vector.shape_cast %239 : vector<1x128xbf16> to vector<128xbf16>
    %241 = vector.shape_cast %238 : vector<128xbf16> to vector<1x128xbf16>
    tpu.vector_store %arg9[%c4_137, %c0_138], %241 {strides = array<i32>} : memref<66x128xbf16, #tpu.memory_space<vmem>>, vector<1x128xbf16>,
    %242 = vector.extract_strided_slice %221 {offsets = [2, 0], sizes = [1, 128], strides = [1, 1]} : vector<16x256xbf16> to vector<1x128xbf16>
    %243 = vector.shape_cast %242 : vector<1x128xbf16> to vector<128xbf16>
    %c5_139 = arith.constant 5 : index
    %c0_140 = arith.constant 0 : index
    %244 = vector.load %arg9[%c5_139, %c0_140] : memref<66x128xbf16, #tpu.memory_space<vmem>>, vector<1x128xbf16>
    %245 = vector.shape_cast %244 : vector<1x128xbf16> to vector<128xbf16>
    %246 = vector.shape_cast %243 : vector<128xbf16> to vector<1x128xbf16>
    tpu.vector_store %arg9[%c5_139, %c0_140], %246 {strides = array<i32>} : memref<66x128xbf16, #tpu.memory_space<vmem>>, vector<1x128xbf16>,
    %247 = vector.extract_strided_slice %221 {offsets = [2, 128], sizes = [1, 128], strides = [1, 1]} : vector<16x256xbf16> to vector<1x128xbf16>
    %248 = vector.shape_cast %247 : vector<1x128xbf16> to vector<128xbf16>
    %c6_141 = arith.constant 6 : index
    %c0_142 = arith.constant 0 : index
    %249 = vector.load %arg9[%c6_141, %c0_142] : memref<66x128xbf16, #tpu.memory_space<vmem>>, vector<1x128xbf16>
    %250 = vector.shape_cast %249 : vector<1x128xbf16> to vector<128xbf16>
    %251 = vector.shape_cast %248 : vector<128xbf16> to vector<1x128xbf16>
    tpu.vector_store %arg9[%c6_141, %c0_142], %251 {strides = array<i32>} : memref<66x128xbf16, #tpu.memory_space<vmem>>, vector<1x128xbf16>,
    %252 = vector.extract_strided_slice %221 {offsets = [3, 0], sizes = [1, 128], strides = [1, 1]} : vector<16x256xbf16> to vector<1x128xbf16>
    %253 = vector.shape_cast %252 : vector<1x128xbf16> to vector<128xbf16>
    %c7_143 = arith.constant 7 : index
    %c0_144 = arith.constant 0 : index
    %254 = vector.load %arg9[%c7_143, %c0_144] : memref<66x128xbf16, #tpu.memory_space<vmem>>, vector<1x128xbf16>
    %255 = vector.shape_cast %254 : vector<1x128xbf16> to vector<128xbf16>
    %256 = vector.shape_cast %253 : vector<128xbf16> to vector<1x128xbf16>
    tpu.vector_store %arg9[%c7_143, %c0_144], %256 {strides = array<i32>} : memref<66x128xbf16, #tpu.memory_space<vmem>>, vector<1x128xbf16>,
    %257 = vector.extract_strided_slice %221 {offsets = [3, 128], sizes = [1, 128], strides = [1, 1]} : vector<16x256xbf16> to vector<1x128xbf16>
    %258 = vector.shape_cast %257 : vector<1x128xbf16> to vector<128xbf16>
    %c8_145 = arith.constant 8 : index
    %c0_146 = arith.constant 0 : index
    %259 = vector.load %arg9[%c8_145, %c0_146] : memref<66x128xbf16, #tpu.memory_space<vmem>>, vector<1x128xbf16>
    %260 = vector.shape_cast %259 : vector<1x128xbf16> to vector<128xbf16>
    %261 = vector.shape_cast %258 : vector<128xbf16> to vector<1x128xbf16>
    tpu.vector_store %arg9[%c8_145, %c0_146], %261 {strides = array<i32>} : memref<66x128xbf16, #tpu.memory_space<vmem>>, vector<1x128xbf16>,
    %262 = vector.extract_strided_slice %221 {offsets = [4, 0], sizes = [1, 128], strides = [1, 1]} : vector<16x256xbf16> to vector<1x128xbf16>
    %263 = vector.shape_cast %262 : vector<1x128xbf16> to vector<128xbf16>
    %c9_147 = arith.constant 9 : index
    %c0_148 = arith.constant 0 : index
    %264 = vector.load %arg9[%c9_147, %c0_148] : memref<66x128xbf16, #tpu.memory_space<vmem>>, vector<1x128xbf16>
    %265 = vector.shape_cast %264 : vector<1x128xbf16> to vector<128xbf16>
    %266 = vector.shape_cast %263 : vector<128xbf16> to vector<1x128xbf16>
    tpu.vector_store %arg9[%c9_147, %c0_148], %266 {strides = array<i32>} : memref<66x128xbf16, #tpu.memory_space<vmem>>, vector<1x128xbf16>,
    %267 = vector.extract_strided_slice %221 {offsets = [4, 128], sizes = [1, 128], strides = [1, 1]} : vector<16x256xbf16> to vector<1x128xbf16>
    %268 = vector.shape_cast %267 : vector<1x128xbf16> to vector<128xbf16>
    %c10_149 = arith.constant 10 : index
    %c0_150 = arith.constant 0 : index
    %269 = vector.load %arg9[%c10_149, %c0_150] : memref<66x128xbf16, #tpu.memory_space<vmem>>, vector<1x128xbf16>
    %270 = vector.shape_cast %269 : vector<1x128xbf16> to vector<128xbf16>
    %271 = vector.shape_cast %268 : vector<128xbf16> to vector<1x128xbf16>
    tpu.vector_store %arg9[%c10_149, %c0_150], %271 {strides = array<i32>} : memref<66x128xbf16, #tpu.memory_space<vmem>>, vector<1x128xbf16>,
    %272 = vector.extract_strided_slice %221 {offsets = [5, 0], sizes = [1, 128], strides = [1, 1]} : vector<16x256xbf16> to vector<1x128xbf16>
    %273 = vector.shape_cast %272 : vector<1x128xbf16> to vector<128xbf16>
    %c11_151 = arith.constant 11 : index
    %c0_152 = arith.constant 0 : index
    %274 = vector.load %arg9[%c11_151, %c0_152] : memref<66x128xbf16, #tpu.memory_space<vmem>>, vector<1x128xbf16>
    %275 = vector.shape_cast %274 : vector<1x128xbf16> to vector<128xbf16>
    %276 = vector.shape_cast %273 : vector<128xbf16> to vector<1x128xbf16>
    tpu.vector_store %arg9[%c11_151, %c0_152], %276 {strides = array<i32>} : memref<66x128xbf16, #tpu.memory_space<vmem>>, vector<1x128xbf16>,
    %277 = vector.extract_strided_slice %221 {offsets = [5, 128], sizes = [1, 128], strides = [1, 1]} : vector<16x256xbf16> to vector<1x128xbf16>
    %278 = vector.shape_cast %277 : vector<1x128xbf16> to vector<128xbf16>
    %c12_153 = arith.constant 12 : index
    %c0_154 = arith.constant 0 : index
    %279 = vector.load %arg9[%c12_153, %c0_154] : memref<66x128xbf16, #tpu.memory_space<vmem>>, vector<1x128xbf16>
    %280 = vector.shape_cast %279 : vector<1x128xbf16> to vector<128xbf16>
    %281 = vector.shape_cast %278 : vector<128xbf16> to vector<1x128xbf16>
    tpu.vector_store %arg9[%c12_153, %c0_154], %281 {strides = array<i32>} : memref<66x128xbf16, #tpu.memory_space<vmem>>, vector<1x128xbf16>,
    %282 = vector.extract_strided_slice %221 {offsets = [6, 0], sizes = [1, 128], strides = [1, 1]} : vector<16x256xbf16> to vector<1x128xbf16>
    %283 = vector.shape_cast %282 : vector<1x128xbf16> to vector<128xbf16>
    %c13_155 = arith.constant 13 : index
    %c0_156 = arith.constant 0 : index
    %284 = vector.load %arg9[%c13_155, %c0_156] : memref<66x128xbf16, #tpu.memory_space<vmem>>, vector<1x128xbf16>
    %285 = vector.shape_cast %284 : vector<1x128xbf16> to vector<128xbf16>
    %286 = vector.shape_cast %283 : vector<128xbf16> to vector<1x128xbf16>
    tpu.vector_store %arg9[%c13_155, %c0_156], %286 {strides = array<i32>} : memref<66x128xbf16, #tpu.memory_space<vmem>>, vector<1x128xbf16>,
    %287 = vector.extract_strided_slice %221 {offsets = [6, 128], sizes = [1, 128], strides = [1, 1]} : vector<16x256xbf16> to vector<1x128xbf16>
    %288 = vector.shape_cast %287 : vector<1x128xbf16> to vector<128xbf16>
    %c14_157 = arith.constant 14 : index
    %c0_158 = arith.constant 0 : index
    %289 = vector.load %arg9[%c14_157, %c0_158] : memref<66x128xbf16, #tpu.memory_space<vmem>>, vector<1x128xbf16>
    %290 = vector.shape_cast %289 : vector<1x128xbf16> to vector<128xbf16>
    %291 = vector.shape_cast %288 : vector<128xbf16> to vector<1x128xbf16>
    tpu.vector_store %arg9[%c14_157, %c0_158], %291 {strides = array<i32>} : memref<66x128xbf16, #tpu.memory_space<vmem>>, vector<1x128xbf16>,
    %292 = vector.extract_strided_slice %221 {offsets = [7, 0], sizes = [1, 128], strides = [1, 1]} : vector<16x256xbf16> to vector<1x128xbf16>
    %293 = vector.shape_cast %292 : vector<1x128xbf16> to vector<128xbf16>
    %c15_159 = arith.constant 15 : index
    %c0_160 = arith.constant 0 : index
    %294 = vector.load %arg9[%c15_159, %c0_160] : memref<66x128xbf16, #tpu.memory_space<vmem>>, vector<1x128xbf16>
    %295 = vector.shape_cast %294 : vector<1x128xbf16> to vector<128xbf16>
    %296 = vector.shape_cast %293 : vector<128xbf16> to vector<1x128xbf16>
    tpu.vector_store %arg9[%c15_159, %c0_160], %296 {strides = array<i32>} : memref<66x128xbf16, #tpu.memory_space<vmem>>, vector<1x128xbf16>,
    %297 = vector.extract_strided_slice %221 {offsets = [7, 128], sizes = [1, 128], strides = [1, 1]} : vector<16x256xbf16> to vector<1x128xbf16>
    %298 = vector.shape_cast %297 : vector<1x128xbf16> to vector<128xbf16>
    %c16_161 = arith.constant 16 : index
    %c0_162 = arith.constant 0 : index
    %299 = vector.load %arg9[%c16_161, %c0_162] : memref<66x128xbf16, #tpu.memory_space<vmem>>, vector<1x128xbf16>
    %300 = vector.shape_cast %299 : vector<1x128xbf16> to vector<128xbf16>
    %301 = vector.shape_cast %298 : vector<128xbf16> to vector<1x128xbf16>
    tpu.vector_store %arg9[%c16_161, %c0_162], %301 {strides = array<i32>} : memref<66x128xbf16, #tpu.memory_space<vmem>>, vector<1x128xbf16>,
    %302 = vector.extract_strided_slice %221 {offsets = [8, 0], sizes = [1, 128], strides = [1, 1]} : vector<16x256xbf16> to vector<1x128xbf16>
    %303 = vector.shape_cast %302 : vector<1x128xbf16> to vector<128xbf16>
    %c17 = arith.constant 17 : index
    %c0_163 = arith.constant 0 : index
    %304 = vector.load %arg9[%c17, %c0_163] : memref<66x128xbf16, #tpu.memory_space<vmem>>, vector<1x128xbf16>
    %305 = vector.shape_cast %304 : vector<1x128xbf16> to vector<128xbf16>
    %306 = vector.shape_cast %303 : vector<128xbf16> to vector<1x128xbf16>
    tpu.vector_store %arg9[%c17, %c0_163], %306 {strides = array<i32>} : memref<66x128xbf16, #tpu.memory_space<vmem>>, vector<1x128xbf16>,
    %307 = vector.extract_strided_slice %221 {offsets = [8, 128], sizes = [1, 128], strides = [1, 1]} : vector<16x256xbf16> to vector<1x128xbf16>
    %308 = vector.shape_cast %307 : vector<1x128xbf16> to vector<128xbf16>
    %c18 = arith.constant 18 : index
    %c0_164 = arith.constant 0 : index
    %309 = vector.load %arg9[%c18, %c0_164] : memref<66x128xbf16, #tpu.memory_space<vmem>>, vector<1x128xbf16>
    %310 = vector.shape_cast %309 : vector<1x128xbf16> to vector<128xbf16>
    %311 = vector.shape_cast %308 : vector<128xbf16> to vector<1x128xbf16>
    tpu.vector_store %arg9[%c18, %c0_164], %311 {strides = array<i32>} : memref<66x128xbf16, #tpu.memory_space<vmem>>, vector<1x128xbf16>,
    %312 = vector.extract_strided_slice %221 {offsets = [9, 0], sizes = [1, 128], strides = [1, 1]} : vector<16x256xbf16> to vector<1x128xbf16>
    %313 = vector.shape_cast %312 : vector<1x128xbf16> to vector<128xbf16>
    %c19 = arith.constant 19 : index
    %c0_165 = arith.constant 0 : index
    %314 = vector.load %arg9[%c19, %c0_165] : memref<66x128xbf16, #tpu.memory_space<vmem>>, vector<1x128xbf16>
    %315 = vector.shape_cast %314 : vector<1x128xbf16> to vector<128xbf16>
    %316 = vector.shape_cast %313 : vector<128xbf16> to vector<1x128xbf16>
    tpu.vector_store %arg9[%c19, %c0_165], %316 {strides = array<i32>} : memref<66x128xbf16, #tpu.memory_space<vmem>>, vector<1x128xbf16>,
    %317 = vector.extract_strided_slice %221 {offsets = [9, 128], sizes = [1, 128], strides = [1, 1]} : vector<16x256xbf16> to vector<1x128xbf16>
    %318 = vector.shape_cast %317 : vector<1x128xbf16> to vector<128xbf16>
    %c20 = arith.constant 20 : index
    %c0_166 = arith.constant 0 : index
    %319 = vector.load %arg9[%c20, %c0_166] : memref<66x128xbf16, #tpu.memory_space<vmem>>, vector<1x128xbf16>
    %320 = vector.shape_cast %319 : vector<1x128xbf16> to vector<128xbf16>
    %321 = vector.shape_cast %318 : vector<128xbf16> to vector<1x128xbf16>
    tpu.vector_store %arg9[%c20, %c0_166], %321 {strides = array<i32>} : memref<66x128xbf16, #tpu.memory_space<vmem>>, vector<1x128xbf16>,
    %322 = vector.extract_strided_slice %221 {offsets = [10, 0], sizes = [1, 128], strides = [1, 1]} : vector<16x256xbf16> to vector<1x128xbf16>
    %323 = vector.shape_cast %322 : vector<1x128xbf16> to vector<128xbf16>
    %c21 = arith.constant 21 : index
    %c0_167 = arith.constant 0 : index
    %324 = vector.load %arg9[%c21, %c0_167] : memref<66x128xbf16, #tpu.memory_space<vmem>>, vector<1x128xbf16>
    %325 = vector.shape_cast %324 : vector<1x128xbf16> to vector<128xbf16>
    %326 = vector.shape_cast %323 : vector<128xbf16> to vector<1x128xbf16>
    tpu.vector_store %arg9[%c21, %c0_167], %326 {strides = array<i32>} : memref<66x128xbf16, #tpu.memory_space<vmem>>, vector<1x128xbf16>,
    %327 = vector.extract_strided_slice %221 {offsets = [10, 128], sizes = [1, 128], strides = [1, 1]} : vector<16x256xbf16> to vector<1x128xbf16>
    %328 = vector.shape_cast %327 : vector<1x128xbf16> to vector<128xbf16>
    %c22 = arith.constant 22 : index
    %c0_168 = arith.constant 0 : index
    %329 = vector.load %arg9[%c22, %c0_168] : memref<66x128xbf16, #tpu.memory_space<vmem>>, vector<1x128xbf16>
    %330 = vector.shape_cast %329 : vector<1x128xbf16> to vector<128xbf16>
    %331 = vector.shape_cast %328 : vector<128xbf16> to vector<1x128xbf16>
    tpu.vector_store %arg9[%c22, %c0_168], %331 {strides = array<i32>} : memref<66x128xbf16, #tpu.memory_space<vmem>>, vector<1x128xbf16>,
    %332 = vector.extract_strided_slice %221 {offsets = [11, 0], sizes = [1, 128], strides = [1, 1]} : vector<16x256xbf16> to vector<1x128xbf16>
    %333 = vector.shape_cast %332 : vector<1x128xbf16> to vector<128xbf16>
    %c23 = arith.constant 23 : index
    %c0_169 = arith.constant 0 : index
    %334 = vector.load %arg9[%c23, %c0_169] : memref<66x128xbf16, #tpu.memory_space<vmem>>, vector<1x128xbf16>
    %335 = vector.shape_cast %334 : vector<1x128xbf16> to vector<128xbf16>
    %336 = vector.shape_cast %333 : vector<128xbf16> to vector<1x128xbf16>
    tpu.vector_store %arg9[%c23, %c0_169], %336 {strides = array<i32>} : memref<66x128xbf16, #tpu.memory_space<vmem>>, vector<1x128xbf16>,
    %337 = vector.extract_strided_slice %221 {offsets = [11, 128], sizes = [1, 128], strides = [1, 1]} : vector<16x256xbf16> to vector<1x128xbf16>
    %338 = vector.shape_cast %337 : vector<1x128xbf16> to vector<128xbf16>
    %c24 = arith.constant 24 : index
    %c0_170 = arith.constant 0 : index
    %339 = vector.load %arg9[%c24, %c0_170] : memref<66x128xbf16, #tpu.memory_space<vmem>>, vector<1x128xbf16>
    %340 = vector.shape_cast %339 : vector<1x128xbf16> to vector<128xbf16>
    %341 = vector.shape_cast %338 : vector<128xbf16> to vector<1x128xbf16>
    tpu.vector_store %arg9[%c24, %c0_170], %341 {strides = array<i32>} : memref<66x128xbf16, #tpu.memory_space<vmem>>, vector<1x128xbf16>,
    %342 = vector.extract_strided_slice %221 {offsets = [12, 0], sizes = [1, 128], strides = [1, 1]} : vector<16x256xbf16> to vector<1x128xbf16>
    %343 = vector.shape_cast %342 : vector<1x128xbf16> to vector<128xbf16>
    %c25 = arith.constant 25 : index
    %c0_171 = arith.constant 0 : index
    %344 = vector.load %arg9[%c25, %c0_171] : memref<66x128xbf16, #tpu.memory_space<vmem>>, vector<1x128xbf16>
    %345 = vector.shape_cast %344 : vector<1x128xbf16> to vector<128xbf16>
    %346 = vector.shape_cast %343 : vector<128xbf16> to vector<1x128xbf16>
    tpu.vector_store %arg9[%c25, %c0_171], %346 {strides = array<i32>} : memref<66x128xbf16, #tpu.memory_space<vmem>>, vector<1x128xbf16>,
    %347 = vector.extract_strided_slice %221 {offsets = [12, 128], sizes = [1, 128], strides = [1, 1]} : vector<16x256xbf16> to vector<1x128xbf16>
    %348 = vector.shape_cast %347 : vector<1x128xbf16> to vector<128xbf16>
    %c26 = arith.constant 26 : index
    %c0_172 = arith.constant 0 : index
    %349 = vector.load %arg9[%c26, %c0_172] : memref<66x128xbf16, #tpu.memory_space<vmem>>, vector<1x128xbf16>
    %350 = vector.shape_cast %349 : vector<1x128xbf16> to vector<128xbf16>
    %351 = vector.shape_cast %348 : vector<128xbf16> to vector<1x128xbf16>
    tpu.vector_store %arg9[%c26, %c0_172], %351 {strides = array<i32>} : memref<66x128xbf16, #tpu.memory_space<vmem>>, vector<1x128xbf16>,
    %352 = vector.extract_strided_slice %221 {offsets = [13, 0], sizes = [1, 128], strides = [1, 1]} : vector<16x256xbf16> to vector<1x128xbf16>
    %353 = vector.shape_cast %352 : vector<1x128xbf16> to vector<128xbf16>
    %c27 = arith.constant 27 : index
    %c0_173 = arith.constant 0 : index
    %354 = vector.load %arg9[%c27, %c0_173] : memref<66x128xbf16, #tpu.memory_space<vmem>>, vector<1x128xbf16>
    %355 = vector.shape_cast %354 : vector<1x128xbf16> to vector<128xbf16>
    %356 = vector.shape_cast %353 : vector<128xbf16> to vector<1x128xbf16>
    tpu.vector_store %arg9[%c27, %c0_173], %356 {strides = array<i32>} : memref<66x128xbf16, #tpu.memory_space<vmem>>, vector<1x128xbf16>,
    %357 = vector.extract_strided_slice %221 {offsets = [13, 128], sizes = [1, 128], strides = [1, 1]} : vector<16x256xbf16> to vector<1x128xbf16>
    %358 = vector.shape_cast %357 : vector<1x128xbf16> to vector<128xbf16>
    %c28 = arith.constant 28 : index
    %c0_174 = arith.constant 0 : index
    %359 = vector.load %arg9[%c28, %c0_174] : memref<66x128xbf16, #tpu.memory_space<vmem>>, vector<1x128xbf16>
    %360 = vector.shape_cast %359 : vector<1x128xbf16> to vector<128xbf16>
    %361 = vector.shape_cast %358 : vector<128xbf16> to vector<1x128xbf16>
    tpu.vector_store %arg9[%c28, %c0_174], %361 {strides = array<i32>} : memref<66x128xbf16, #tpu.memory_space<vmem>>, vector<1x128xbf16>,
    %362 = vector.extract_strided_slice %221 {offsets = [14, 0], sizes = [1, 128], strides = [1, 1]} : vector<16x256xbf16> to vector<1x128xbf16>
    %363 = vector.shape_cast %362 : vector<1x128xbf16> to vector<128xbf16>
    %c29 = arith.constant 29 : index
    %c0_175 = arith.constant 0 : index
    %364 = vector.load %arg9[%c29, %c0_175] : memref<66x128xbf16, #tpu.memory_space<vmem>>, vector<1x128xbf16>
    %365 = vector.shape_cast %364 : vector<1x128xbf16> to vector<128xbf16>
    %366 = vector.shape_cast %363 : vector<128xbf16> to vector<1x128xbf16>
    tpu.vector_store %arg9[%c29, %c0_175], %366 {strides = array<i32>} : memref<66x128xbf16, #tpu.memory_space<vmem>>, vector<1x128xbf16>,
    %367 = vector.extract_strided_slice %221 {offsets = [14, 128], sizes = [1, 128], strides = [1, 1]} : vector<16x256xbf16> to vector<1x128xbf16>
    %368 = vector.shape_cast %367 : vector<1x128xbf16> to vector<128xbf16>
    %c30 = arith.constant 30 : index
    %c0_176 = arith.constant 0 : index
    %369 = vector.load %arg9[%c30, %c0_176] : memref<66x128xbf16, #tpu.memory_space<vmem>>, vector<1x128xbf16>
    %370 = vector.shape_cast %369 : vector<1x128xbf16> to vector<128xbf16>
    %371 = vector.shape_cast %368 : vector<128xbf16> to vector<1x128xbf16>
    tpu.vector_store %arg9[%c30, %c0_176], %371 {strides = array<i32>} : memref<66x128xbf16, #tpu.memory_space<vmem>>, vector<1x128xbf16>,
    %372 = vector.extract_strided_slice %221 {offsets = [15, 0], sizes = [1, 128], strides = [1, 1]} : vector<16x256xbf16> to vector<1x128xbf16>
    %373 = vector.shape_cast %372 : vector<1x128xbf16> to vector<128xbf16>
    %c31 = arith.constant 31 : index
    %c0_177 = arith.constant 0 : index
    %374 = vector.load %arg9[%c31, %c0_177] : memref<66x128xbf16, #tpu.memory_space<vmem>>, vector<1x128xbf16>
    %375 = vector.shape_cast %374 : vector<1x128xbf16> to vector<128xbf16>
    %376 = vector.shape_cast %373 : vector<128xbf16> to vector<1x128xbf16>
    tpu.vector_store %arg9[%c31, %c0_177], %376 {strides = array<i32>} : memref<66x128xbf16, #tpu.memory_space<vmem>>, vector<1x128xbf16>,
    %377 = vector.extract_strided_slice %221 {offsets = [15, 128], sizes = [1, 128], strides = [1, 1]} : vector<16x256xbf16> to vector<1x128xbf16>
    %378 = vector.shape_cast %377 : vector<1x128xbf16> to vector<128xbf16>
    %c32 = arith.constant 32 : index
    %c0_178 = arith.constant 0 : index
    %379 = vector.load %arg9[%c32, %c0_178] : memref<66x128xbf16, #tpu.memory_space<vmem>>, vector<1x128xbf16>
    %380 = vector.shape_cast %379 : vector<1x128xbf16> to vector<128xbf16>
    %381 = vector.shape_cast %378 : vector<128xbf16> to vector<1x128xbf16>
    tpu.vector_store %arg9[%c32, %c0_178], %381 {strides = array<i32>} : memref<66x128xbf16, #tpu.memory_space<vmem>>, vector<1x128xbf16>,
    %c0_179 = arith.constant 0 : index
    %c0_180 = arith.constant 0 : index
    %382 = vector.load %arg9[%c0_179, %c0_180] : memref<66x128xbf16, #tpu.memory_space<vmem>>, vector<32x128xbf16>
    %c1_181 = arith.constant 1 : index
    %c0_182 = arith.constant 0 : index
    %383 = vector.load %arg9[%c1_181, %c0_182] : memref<66x128xbf16, #tpu.memory_space<vmem>>, vector<32x128xbf16>
    %c2_183 = arith.constant 2 : index
    %c0_184 = arith.constant 0 : index
    %384 = vector.load %arg9[%c2_183, %c0_184] : memref<66x128xbf16, #tpu.memory_space<vmem>>, vector<32x128xbf16>
    %c3_185 = arith.constant 3 : index
    %c0_186 = arith.constant 0 : index
    %c0_187 = arith.constant 0 : index
    %c0_188 = arith.constant 0 : index
    %385 = vector.load %arg6[%c3_185, %c0_186, %c0_187, %c0_188] : memref<5x3x128x256xbf16, #tpu.memory_space<vmem>>, vector<1x1x128x256xbf16>
    %386 = vector.shape_cast %385 : vector<1x1x128x256xbf16> to vector<128x256xbf16>
    %cst_189 = arith.constant dense<0.000000e+00> : vector<32x256xf32>
    %387 = tpu.matmul %382, %386, %cst_189 {dimension_numbers = #tpu.dot_dimension_numbers<[1], [0], [0], [1], [0, 0, 1, 1], [], []>} : vector<32x128xbf16>, vector<128x256xbf16>, vector<32x256xf32> -> vector<32x256xf32>
    %c3_190 = arith.constant 3 : index
    %c1_191 = arith.constant 1 : index
    %c0_192 = arith.constant 0 : index
    %c0_193 = arith.constant 0 : index
    %388 = vector.load %arg6[%c3_190, %c1_191, %c0_192, %c0_193] : memref<5x3x128x256xbf16, #tpu.memory_space<vmem>>, vector<1x1x128x256xbf16>
    %389 = vector.shape_cast %388 : vector<1x1x128x256xbf16> to vector<128x256xbf16>
    %cst_194 = arith.constant dense<0.000000e+00> : vector<32x256xf32>
    %390 = tpu.matmul %383, %389, %cst_194 {dimension_numbers = #tpu.dot_dimension_numbers<[1], [0], [0], [1], [0, 0, 1, 1], [], []>} : vector<32x128xbf16>, vector<128x256xbf16>, vector<32x256xf32> -> vector<32x256xf32>
    %391 = arith.addf %387, %390 : vector<32x256xf32>
    %c3_195 = arith.constant 3 : index
    %c2_196 = arith.constant 2 : index
    %c0_197 = arith.constant 0 : index
    %c0_198 = arith.constant 0 : index
    %392 = vector.load %arg6[%c3_195, %c2_196, %c0_197, %c0_198] : memref<5x3x128x256xbf16, #tpu.memory_space<vmem>>, vector<1x1x128x256xbf16>
    %393 = vector.shape_cast %392 : vector<1x1x128x256xbf16> to vector<128x256xbf16>
    %cst_199 = arith.constant dense<0.000000e+00> : vector<32x256xf32>
    %394 = tpu.matmul %384, %393, %cst_199 {dimension_numbers = #tpu.dot_dimension_numbers<[1], [0], [0], [1], [0, 0, 1, 1], [], []>} : vector<32x128xbf16>, vector<128x256xbf16>, vector<32x256xf32> -> vector<32x256xf32>
    %395 = arith.addf %391, %394 : vector<32x256xf32>
    %c3_200 = arith.constant 3 : index
    %c0_201 = arith.constant 0 : index
    %c0_202 = arith.constant 0 : index
    %396 = vector.load %arg7[%c3_200, %c0_201, %c0_202] : memref<5x1x256xf32, #tpu.memory_space<vmem>>, vector<1x1x256xf32>
    %397 = vector.shape_cast %396 : vector<1x1x256xf32> to vector<1x256xf32>
    %398 = vector.broadcast %397 : vector<1x256xf32> to vector<32x256xf32>
    %399 = arith.addf %395, %398 : vector<32x256xf32>
    %cst_203 = arith.constant 0.000000e+00 : f32
    %400 = vector.broadcast %cst_203 : f32 to vector<32x256xf32>
    %401 = arith.maximumf %399, %400 : vector<32x256xf32>
    %402 = arith.truncf %401 : vector<32x256xf32> to vector<32x256xbf16>
    %403 = vector.extract_strided_slice %402 {offsets = [0, 0], sizes = [1, 128], strides = [1, 1]} : vector<32x256xbf16> to vector<1x128xbf16>
    %404 = vector.shape_cast %403 : vector<1x128xbf16> to vector<128xbf16>
    %c1_204 = arith.constant 1 : index
    %c0_205 = arith.constant 0 : index
    %405 = vector.load %arg9[%c1_204, %c0_205] : memref<66x128xbf16, #tpu.memory_space<vmem>>, vector<1x128xbf16>
    %406 = vector.shape_cast %405 : vector<1x128xbf16> to vector<128xbf16>
    %407 = vector.shape_cast %404 : vector<128xbf16> to vector<1x128xbf16>
    tpu.vector_store %arg9[%c1_204, %c0_205], %407 {strides = array<i32>} : memref<66x128xbf16, #tpu.memory_space<vmem>>, vector<1x128xbf16>,
    %408 = vector.extract_strided_slice %402 {offsets = [0, 128], sizes = [1, 128], strides = [1, 1]} : vector<32x256xbf16> to vector<1x128xbf16>
    %409 = vector.shape_cast %408 : vector<1x128xbf16> to vector<128xbf16>
    %c2_206 = arith.constant 2 : index
    %c0_207 = arith.constant 0 : index
    %410 = vector.load %arg9[%c2_206, %c0_207] : memref<66x128xbf16, #tpu.memory_space<vmem>>, vector<1x128xbf16>
    %411 = vector.shape_cast %410 : vector<1x128xbf16> to vector<128xbf16>
    %412 = vector.shape_cast %409 : vector<128xbf16> to vector<1x128xbf16>
    tpu.vector_store %arg9[%c2_206, %c0_207], %412 {strides = array<i32>} : memref<66x128xbf16, #tpu.memory_space<vmem>>, vector<1x128xbf16>,
    %413 = vector.extract_strided_slice %402 {offsets = [1, 0], sizes = [1, 128], strides = [1, 1]} : vector<32x256xbf16> to vector<1x128xbf16>
    %414 = vector.shape_cast %413 : vector<1x128xbf16> to vector<128xbf16>
    %c3_208 = arith.constant 3 : index
    %c0_209 = arith.constant 0 : index
    %415 = vector.load %arg9[%c3_208, %c0_209] : memref<66x128xbf16, #tpu.memory_space<vmem>>, vector<1x128xbf16>
    %416 = vector.shape_cast %415 : vector<1x128xbf16> to vector<128xbf16>
    %417 = vector.shape_cast %414 : vector<128xbf16> to vector<1x128xbf16>
    tpu.vector_store %arg9[%c3_208, %c0_209], %417 {strides = array<i32>} : memref<66x128xbf16, #tpu.memory_space<vmem>>, vector<1x128xbf16>,
    %418 = vector.extract_strided_slice %402 {offsets = [1, 128], sizes = [1, 128], strides = [1, 1]} : vector<32x256xbf16> to vector<1x128xbf16>
    %419 = vector.shape_cast %418 : vector<1x128xbf16> to vector<128xbf16>
    %c4_210 = arith.constant 4 : index
    %c0_211 = arith.constant 0 : index
    %420 = vector.load %arg9[%c4_210, %c0_211] : memref<66x128xbf16, #tpu.memory_space<vmem>>, vector<1x128xbf16>
    %421 = vector.shape_cast %420 : vector<1x128xbf16> to vector<128xbf16>
    %422 = vector.shape_cast %419 : vector<128xbf16> to vector<1x128xbf16>
    tpu.vector_store %arg9[%c4_210, %c0_211], %422 {strides = array<i32>} : memref<66x128xbf16, #tpu.memory_space<vmem>>, vector<1x128xbf16>,
    %423 = vector.extract_strided_slice %402 {offsets = [2, 0], sizes = [1, 128], strides = [1, 1]} : vector<32x256xbf16> to vector<1x128xbf16>
    %424 = vector.shape_cast %423 : vector<1x128xbf16> to vector<128xbf16>
    %c5_212 = arith.constant 5 : index
    %c0_213 = arith.constant 0 : index
    %425 = vector.load %arg9[%c5_212, %c0_213] : memref<66x128xbf16, #tpu.memory_space<vmem>>, vector<1x128xbf16>
    %426 = vector.shape_cast %425 : vector<1x128xbf16> to vector<128xbf16>
    %427 = vector.shape_cast %424 : vector<128xbf16> to vector<1x128xbf16>
    tpu.vector_store %arg9[%c5_212, %c0_213], %427 {strides = array<i32>} : memref<66x128xbf16, #tpu.memory_space<vmem>>, vector<1x128xbf16>,
    %428 = vector.extract_strided_slice %402 {offsets = [2, 128], sizes = [1, 128], strides = [1, 1]} : vector<32x256xbf16> to vector<1x128xbf16>
    %429 = vector.shape_cast %428 : vector<1x128xbf16> to vector<128xbf16>
    %c6_214 = arith.constant 6 : index
    %c0_215 = arith.constant 0 : index
    %430 = vector.load %arg9[%c6_214, %c0_215] : memref<66x128xbf16, #tpu.memory_space<vmem>>, vector<1x128xbf16>
    %431 = vector.shape_cast %430 : vector<1x128xbf16> to vector<128xbf16>
    %432 = vector.shape_cast %429 : vector<128xbf16> to vector<1x128xbf16>
    tpu.vector_store %arg9[%c6_214, %c0_215], %432 {strides = array<i32>} : memref<66x128xbf16, #tpu.memory_space<vmem>>, vector<1x128xbf16>,
    %433 = vector.extract_strided_slice %402 {offsets = [3, 0], sizes = [1, 128], strides = [1, 1]} : vector<32x256xbf16> to vector<1x128xbf16>
    %434 = vector.shape_cast %433 : vector<1x128xbf16> to vector<128xbf16>
    %c7_216 = arith.constant 7 : index
    %c0_217 = arith.constant 0 : index
    %435 = vector.load %arg9[%c7_216, %c0_217] : memref<66x128xbf16, #tpu.memory_space<vmem>>, vector<1x128xbf16>
    %436 = vector.shape_cast %435 : vector<1x128xbf16> to vector<128xbf16>
    %437 = vector.shape_cast %434 : vector<128xbf16> to vector<1x128xbf16>
    tpu.vector_store %arg9[%c7_216, %c0_217], %437 {strides = array<i32>} : memref<66x128xbf16, #tpu.memory_space<vmem>>, vector<1x128xbf16>,
    %438 = vector.extract_strided_slice %402 {offsets = [3, 128], sizes = [1, 128], strides = [1, 1]} : vector<32x256xbf16> to vector<1x128xbf16>
    %439 = vector.shape_cast %438 : vector<1x128xbf16> to vector<128xbf16>
    %c8_218 = arith.constant 8 : index
    %c0_219 = arith.constant 0 : index
    %440 = vector.load %arg9[%c8_218, %c0_219] : memref<66x128xbf16, #tpu.memory_space<vmem>>, vector<1x128xbf16>
    %441 = vector.shape_cast %440 : vector<1x128xbf16> to vector<128xbf16>
    %442 = vector.shape_cast %439 : vector<128xbf16> to vector<1x128xbf16>
    tpu.vector_store %arg9[%c8_218, %c0_219], %442 {strides = array<i32>} : memref<66x128xbf16, #tpu.memory_space<vmem>>, vector<1x128xbf16>,
    %443 = vector.extract_strided_slice %402 {offsets = [4, 0], sizes = [1, 128], strides = [1, 1]} : vector<32x256xbf16> to vector<1x128xbf16>
    %444 = vector.shape_cast %443 : vector<1x128xbf16> to vector<128xbf16>
    %c9_220 = arith.constant 9 : index
    %c0_221 = arith.constant 0 : index
    %445 = vector.load %arg9[%c9_220, %c0_221] : memref<66x128xbf16, #tpu.memory_space<vmem>>, vector<1x128xbf16>
    %446 = vector.shape_cast %445 : vector<1x128xbf16> to vector<128xbf16>
    %447 = vector.shape_cast %444 : vector<128xbf16> to vector<1x128xbf16>
    tpu.vector_store %arg9[%c9_220, %c0_221], %447 {strides = array<i32>} : memref<66x128xbf16, #tpu.memory_space<vmem>>, vector<1x128xbf16>,
    %448 = vector.extract_strided_slice %402 {offsets = [4, 128], sizes = [1, 128], strides = [1, 1]} : vector<32x256xbf16> to vector<1x128xbf16>
    %449 = vector.shape_cast %448 : vector<1x128xbf16> to vector<128xbf16>
    %c10_222 = arith.constant 10 : index
    %c0_223 = arith.constant 0 : index
    %450 = vector.load %arg9[%c10_222, %c0_223] : memref<66x128xbf16, #tpu.memory_space<vmem>>, vector<1x128xbf16>
    %451 = vector.shape_cast %450 : vector<1x128xbf16> to vector<128xbf16>
    %452 = vector.shape_cast %449 : vector<128xbf16> to vector<1x128xbf16>
    tpu.vector_store %arg9[%c10_222, %c0_223], %452 {strides = array<i32>} : memref<66x128xbf16, #tpu.memory_space<vmem>>, vector<1x128xbf16>,
    %453 = vector.extract_strided_slice %402 {offsets = [5, 0], sizes = [1, 128], strides = [1, 1]} : vector<32x256xbf16> to vector<1x128xbf16>
    %454 = vector.shape_cast %453 : vector<1x128xbf16> to vector<128xbf16>
    %c11_224 = arith.constant 11 : index
    %c0_225 = arith.constant 0 : index
    %455 = vector.load %arg9[%c11_224, %c0_225] : memref<66x128xbf16, #tpu.memory_space<vmem>>, vector<1x128xbf16>
    %456 = vector.shape_cast %455 : vector<1x128xbf16> to vector<128xbf16>
    %457 = vector.shape_cast %454 : vector<128xbf16> to vector<1x128xbf16>
    tpu.vector_store %arg9[%c11_224, %c0_225], %457 {strides = array<i32>} : memref<66x128xbf16, #tpu.memory_space<vmem>>, vector<1x128xbf16>,
    %458 = vector.extract_strided_slice %402 {offsets = [5, 128], sizes = [1, 128], strides = [1, 1]} : vector<32x256xbf16> to vector<1x128xbf16>
    %459 = vector.shape_cast %458 : vector<1x128xbf16> to vector<128xbf16>
    %c12_226 = arith.constant 12 : index
    %c0_227 = arith.constant 0 : index
    %460 = vector.load %arg9[%c12_226, %c0_227] : memref<66x128xbf16, #tpu.memory_space<vmem>>, vector<1x128xbf16>
    %461 = vector.shape_cast %460 : vector<1x128xbf16> to vector<128xbf16>
    %462 = vector.shape_cast %459 : vector<128xbf16> to vector<1x128xbf16>
    tpu.vector_store %arg9[%c12_226, %c0_227], %462 {strides = array<i32>} : memref<66x128xbf16, #tpu.memory_space<vmem>>, vector<1x128xbf16>,
    %463 = vector.extract_strided_slice %402 {offsets = [6, 0], sizes = [1, 128], strides = [1, 1]} : vector<32x256xbf16> to vector<1x128xbf16>
    %464 = vector.shape_cast %463 : vector<1x128xbf16> to vector<128xbf16>
    %c13_228 = arith.constant 13 : index
    %c0_229 = arith.constant 0 : index
    %465 = vector.load %arg9[%c13_228, %c0_229] : memref<66x128xbf16, #tpu.memory_space<vmem>>, vector<1x128xbf16>
    %466 = vector.shape_cast %465 : vector<1x128xbf16> to vector<128xbf16>
    %467 = vector.shape_cast %464 : vector<128xbf16> to vector<1x128xbf16>
    tpu.vector_store %arg9[%c13_228, %c0_229], %467 {strides = array<i32>} : memref<66x128xbf16, #tpu.memory_space<vmem>>, vector<1x128xbf16>,
    %468 = vector.extract_strided_slice %402 {offsets = [6, 128], sizes = [1, 128], strides = [1, 1]} : vector<32x256xbf16> to vector<1x128xbf16>
    %469 = vector.shape_cast %468 : vector<1x128xbf16> to vector<128xbf16>
    %c14_230 = arith.constant 14 : index
    %c0_231 = arith.constant 0 : index
    %470 = vector.load %arg9[%c14_230, %c0_231] : memref<66x128xbf16, #tpu.memory_space<vmem>>, vector<1x128xbf16>
    %471 = vector.shape_cast %470 : vector<1x128xbf16> to vector<128xbf16>
    %472 = vector.shape_cast %469 : vector<128xbf16> to vector<1x128xbf16>
    tpu.vector_store %arg9[%c14_230, %c0_231], %472 {strides = array<i32>} : memref<66x128xbf16, #tpu.memory_space<vmem>>, vector<1x128xbf16>,
    %473 = vector.extract_strided_slice %402 {offsets = [7, 0], sizes = [1, 128], strides = [1, 1]} : vector<32x256xbf16> to vector<1x128xbf16>
    %474 = vector.shape_cast %473 : vector<1x128xbf16> to vector<128xbf16>
    %c15_232 = arith.constant 15 : index
    %c0_233 = arith.constant 0 : index
    %475 = vector.load %arg9[%c15_232, %c0_233] : memref<66x128xbf16, #tpu.memory_space<vmem>>, vector<1x128xbf16>
    %476 = vector.shape_cast %475 : vector<1x128xbf16> to vector<128xbf16>
    %477 = vector.shape_cast %474 : vector<128xbf16> to vector<1x128xbf16>
    tpu.vector_store %arg9[%c15_232, %c0_233], %477 {strides = array<i32>} : memref<66x128xbf16, #tpu.memory_space<vmem>>, vector<1x128xbf16>,
    %478 = vector.extract_strided_slice %402 {offsets = [7, 128], sizes = [1, 128], strides = [1, 1]} : vector<32x256xbf16> to vector<1x128xbf16>
    %479 = vector.shape_cast %478 : vector<1x128xbf16> to vector<128xbf16>
    %c16_234 = arith.constant 16 : index
    %c0_235 = arith.constant 0 : index
    %480 = vector.load %arg9[%c16_234, %c0_235] : memref<66x128xbf16, #tpu.memory_space<vmem>>, vector<1x128xbf16>
    %481 = vector.shape_cast %480 : vector<1x128xbf16> to vector<128xbf16>
    %482 = vector.shape_cast %479 : vector<128xbf16> to vector<1x128xbf16>
    tpu.vector_store %arg9[%c16_234, %c0_235], %482 {strides = array<i32>} : memref<66x128xbf16, #tpu.memory_space<vmem>>, vector<1x128xbf16>,
    %483 = vector.extract_strided_slice %402 {offsets = [8, 0], sizes = [1, 128], strides = [1, 1]} : vector<32x256xbf16> to vector<1x128xbf16>
    %484 = vector.shape_cast %483 : vector<1x128xbf16> to vector<128xbf16>
    %c17_236 = arith.constant 17 : index
    %c0_237 = arith.constant 0 : index
    %485 = vector.load %arg9[%c17_236, %c0_237] : memref<66x128xbf16, #tpu.memory_space<vmem>>, vector<1x128xbf16>
    %486 = vector.shape_cast %485 : vector<1x128xbf16> to vector<128xbf16>
    %487 = vector.shape_cast %484 : vector<128xbf16> to vector<1x128xbf16>
    tpu.vector_store %arg9[%c17_236, %c0_237], %487 {strides = array<i32>} : memref<66x128xbf16, #tpu.memory_space<vmem>>, vector<1x128xbf16>,
    %488 = vector.extract_strided_slice %402 {offsets = [8, 128], sizes = [1, 128], strides = [1, 1]} : vector<32x256xbf16> to vector<1x128xbf16>
    %489 = vector.shape_cast %488 : vector<1x128xbf16> to vector<128xbf16>
    %c18_238 = arith.constant 18 : index
    %c0_239 = arith.constant 0 : index
    %490 = vector.load %arg9[%c18_238, %c0_239] : memref<66x128xbf16, #tpu.memory_space<vmem>>, vector<1x128xbf16>
    %491 = vector.shape_cast %490 : vector<1x128xbf16> to vector<128xbf16>
    %492 = vector.shape_cast %489 : vector<128xbf16> to vector<1x128xbf16>
    tpu.vector_store %arg9[%c18_238, %c0_239], %492 {strides = array<i32>} : memref<66x128xbf16, #tpu.memory_space<vmem>>, vector<1x128xbf16>,
    %493 = vector.extract_strided_slice %402 {offsets = [9, 0], sizes = [1, 128], strides = [1, 1]} : vector<32x256xbf16> to vector<1x128xbf16>
    %494 = vector.shape_cast %493 : vector<1x128xbf16> to vector<128xbf16>
    %c19_240 = arith.constant 19 : index
    %c0_241 = arith.constant 0 : index
    %495 = vector.load %arg9[%c19_240, %c0_241] : memref<66x128xbf16, #tpu.memory_space<vmem>>, vector<1x128xbf16>
    %496 = vector.shape_cast %495 : vector<1x128xbf16> to vector<128xbf16>
    %497 = vector.shape_cast %494 : vector<128xbf16> to vector<1x128xbf16>
    tpu.vector_store %arg9[%c19_240, %c0_241], %497 {strides = array<i32>} : memref<66x128xbf16, #tpu.memory_space<vmem>>, vector<1x128xbf16>,
    %498 = vector.extract_strided_slice %402 {offsets = [9, 128], sizes = [1, 128], strides = [1, 1]} : vector<32x256xbf16> to vector<1x128xbf16>
    %499 = vector.shape_cast %498 : vector<1x128xbf16> to vector<128xbf16>
    %c20_242 = arith.constant 20 : index
    %c0_243 = arith.constant 0 : index
    %500 = vector.load %arg9[%c20_242, %c0_243] : memref<66x128xbf16, #tpu.memory_space<vmem>>, vector<1x128xbf16>
    %501 = vector.shape_cast %500 : vector<1x128xbf16> to vector<128xbf16>
    %502 = vector.shape_cast %499 : vector<128xbf16> to vector<1x128xbf16>
    tpu.vector_store %arg9[%c20_242, %c0_243], %502 {strides = array<i32>} : memref<66x128xbf16, #tpu.memory_space<vmem>>, vector<1x128xbf16>,
    %503 = vector.extract_strided_slice %402 {offsets = [10, 0], sizes = [1, 128], strides = [1, 1]} : vector<32x256xbf16> to vector<1x128xbf16>
    %504 = vector.shape_cast %503 : vector<1x128xbf16> to vector<128xbf16>
    %c21_244 = arith.constant 21 : index
    %c0_245 = arith.constant 0 : index
    %505 = vector.load %arg9[%c21_244, %c0_245] : memref<66x128xbf16, #tpu.memory_space<vmem>>, vector<1x128xbf16>
    %506 = vector.shape_cast %505 : vector<1x128xbf16> to vector<128xbf16>
    %507 = vector.shape_cast %504 : vector<128xbf16> to vector<1x128xbf16>
    tpu.vector_store %arg9[%c21_244, %c0_245], %507 {strides = array<i32>} : memref<66x128xbf16, #tpu.memory_space<vmem>>, vector<1x128xbf16>,
    %508 = vector.extract_strided_slice %402 {offsets = [10, 128], sizes = [1, 128], strides = [1, 1]} : vector<32x256xbf16> to vector<1x128xbf16>
    %509 = vector.shape_cast %508 : vector<1x128xbf16> to vector<128xbf16>
    %c22_246 = arith.constant 22 : index
    %c0_247 = arith.constant 0 : index
    %510 = vector.load %arg9[%c22_246, %c0_247] : memref<66x128xbf16, #tpu.memory_space<vmem>>, vector<1x128xbf16>
    %511 = vector.shape_cast %510 : vector<1x128xbf16> to vector<128xbf16>
    %512 = vector.shape_cast %509 : vector<128xbf16> to vector<1x128xbf16>
    tpu.vector_store %arg9[%c22_246, %c0_247], %512 {strides = array<i32>} : memref<66x128xbf16, #tpu.memory_space<vmem>>, vector<1x128xbf16>,
    %513 = vector.extract_strided_slice %402 {offsets = [11, 0], sizes = [1, 128], strides = [1, 1]} : vector<32x256xbf16> to vector<1x128xbf16>
    %514 = vector.shape_cast %513 : vector<1x128xbf16> to vector<128xbf16>
    %c23_248 = arith.constant 23 : index
    %c0_249 = arith.constant 0 : index
    %515 = vector.load %arg9[%c23_248, %c0_249] : memref<66x128xbf16, #tpu.memory_space<vmem>>, vector<1x128xbf16>
    %516 = vector.shape_cast %515 : vector<1x128xbf16> to vector<128xbf16>
    %517 = vector.shape_cast %514 : vector<128xbf16> to vector<1x128xbf16>
    tpu.vector_store %arg9[%c23_248, %c0_249], %517 {strides = array<i32>} : memref<66x128xbf16, #tpu.memory_space<vmem>>, vector<1x128xbf16>,
    %518 = vector.extract_strided_slice %402 {offsets = [11, 128], sizes = [1, 128], strides = [1, 1]} : vector<32x256xbf16> to vector<1x128xbf16>
    %519 = vector.shape_cast %518 : vector<1x128xbf16> to vector<128xbf16>
    %c24_250 = arith.constant 24 : index
    %c0_251 = arith.constant 0 : index
    %520 = vector.load %arg9[%c24_250, %c0_251] : memref<66x128xbf16, #tpu.memory_space<vmem>>, vector<1x128xbf16>
    %521 = vector.shape_cast %520 : vector<1x128xbf16> to vector<128xbf16>
    %522 = vector.shape_cast %519 : vector<128xbf16> to vector<1x128xbf16>
    tpu.vector_store %arg9[%c24_250, %c0_251], %522 {strides = array<i32>} : memref<66x128xbf16, #tpu.memory_space<vmem>>, vector<1x128xbf16>,
    %523 = vector.extract_strided_slice %402 {offsets = [12, 0], sizes = [1, 128], strides = [1, 1]} : vector<32x256xbf16> to vector<1x128xbf16>
    %524 = vector.shape_cast %523 : vector<1x128xbf16> to vector<128xbf16>
    %c25_252 = arith.constant 25 : index
    %c0_253 = arith.constant 0 : index
    %525 = vector.load %arg9[%c25_252, %c0_253] : memref<66x128xbf16, #tpu.memory_space<vmem>>, vector<1x128xbf16>
    %526 = vector.shape_cast %525 : vector<1x128xbf16> to vector<128xbf16>
    %527 = vector.shape_cast %524 : vector<128xbf16> to vector<1x128xbf16>
    tpu.vector_store %arg9[%c25_252, %c0_253], %527 {strides = array<i32>} : memref<66x128xbf16, #tpu.memory_space<vmem>>, vector<1x128xbf16>,
    %528 = vector.extract_strided_slice %402 {offsets = [12, 128], sizes = [1, 128], strides = [1, 1]} : vector<32x256xbf16> to vector<1x128xbf16>
    %529 = vector.shape_cast %528 : vector<1x128xbf16> to vector<128xbf16>
    %c26_254 = arith.constant 26 : index
    %c0_255 = arith.constant 0 : index
    %530 = vector.load %arg9[%c26_254, %c0_255] : memref<66x128xbf16, #tpu.memory_space<vmem>>, vector<1x128xbf16>
    %531 = vector.shape_cast %530 : vector<1x128xbf16> to vector<128xbf16>
    %532 = vector.shape_cast %529 : vector<128xbf16> to vector<1x128xbf16>
    tpu.vector_store %arg9[%c26_254, %c0_255], %532 {strides = array<i32>} : memref<66x128xbf16, #tpu.memory_space<vmem>>, vector<1x128xbf16>,
    %533 = vector.extract_strided_slice %402 {offsets = [13, 0], sizes = [1, 128], strides = [1, 1]} : vector<32x256xbf16> to vector<1x128xbf16>
    %534 = vector.shape_cast %533 : vector<1x128xbf16> to vector<128xbf16>
    %c27_256 = arith.constant 27 : index
    %c0_257 = arith.constant 0 : index
    %535 = vector.load %arg9[%c27_256, %c0_257] : memref<66x128xbf16, #tpu.memory_space<vmem>>, vector<1x128xbf16>
    %536 = vector.shape_cast %535 : vector<1x128xbf16> to vector<128xbf16>
    %537 = vector.shape_cast %534 : vector<128xbf16> to vector<1x128xbf16>
    tpu.vector_store %arg9[%c27_256, %c0_257], %537 {strides = array<i32>} : memref<66x128xbf16, #tpu.memory_space<vmem>>, vector<1x128xbf16>,
    %538 = vector.extract_strided_slice %402 {offsets = [13, 128], sizes = [1, 128], strides = [1, 1]} : vector<32x256xbf16> to vector<1x128xbf16>
    %539 = vector.shape_cast %538 : vector<1x128xbf16> to vector<128xbf16>
    %c28_258 = arith.constant 28 : index
    %c0_259 = arith.constant 0 : index
    %540 = vector.load %arg9[%c28_258, %c0_259] : memref<66x128xbf16, #tpu.memory_space<vmem>>, vector<1x128xbf16>
    %541 = vector.shape_cast %540 : vector<1x128xbf16> to vector<128xbf16>
    %542 = vector.shape_cast %539 : vector<128xbf16> to vector<1x128xbf16>
    tpu.vector_store %arg9[%c28_258, %c0_259], %542 {strides = array<i32>} : memref<66x128xbf16, #tpu.memory_space<vmem>>, vector<1x128xbf16>,
    %543 = vector.extract_strided_slice %402 {offsets = [14, 0], sizes = [1, 128], strides = [1, 1]} : vector<32x256xbf16> to vector<1x128xbf16>
    %544 = vector.shape_cast %543 : vector<1x128xbf16> to vector<128xbf16>
    %c29_260 = arith.constant 29 : index
    %c0_261 = arith.constant 0 : index
    %545 = vector.load %arg9[%c29_260, %c0_261] : memref<66x128xbf16, #tpu.memory_space<vmem>>, vector<1x128xbf16>
    %546 = vector.shape_cast %545 : vector<1x128xbf16> to vector<128xbf16>
    %547 = vector.shape_cast %544 : vector<128xbf16> to vector<1x128xbf16>
    tpu.vector_store %arg9[%c29_260, %c0_261], %547 {strides = array<i32>} : memref<66x128xbf16, #tpu.memory_space<vmem>>, vector<1x128xbf16>,
    %548 = vector.extract_strided_slice %402 {offsets = [14, 128], sizes = [1, 128], strides = [1, 1]} : vector<32x256xbf16> to vector<1x128xbf16>
    %549 = vector.shape_cast %548 : vector<1x128xbf16> to vector<128xbf16>
    %c30_262 = arith.constant 30 : index
    %c0_263 = arith.constant 0 : index
    %550 = vector.load %arg9[%c30_262, %c0_263] : memref<66x128xbf16, #tpu.memory_space<vmem>>, vector<1x128xbf16>
    %551 = vector.shape_cast %550 : vector<1x128xbf16> to vector<128xbf16>
    %552 = vector.shape_cast %549 : vector<128xbf16> to vector<1x128xbf16>
    tpu.vector_store %arg9[%c30_262, %c0_263], %552 {strides = array<i32>} : memref<66x128xbf16, #tpu.memory_space<vmem>>, vector<1x128xbf16>,
    %553 = vector.extract_strided_slice %402 {offsets = [15, 0], sizes = [1, 128], strides = [1, 1]} : vector<32x256xbf16> to vector<1x128xbf16>
    %554 = vector.shape_cast %553 : vector<1x128xbf16> to vector<128xbf16>
    %c31_264 = arith.constant 31 : index
    %c0_265 = arith.constant 0 : index
    %555 = vector.load %arg9[%c31_264, %c0_265] : memref<66x128xbf16, #tpu.memory_space<vmem>>, vector<1x128xbf16>
    %556 = vector.shape_cast %555 : vector<1x128xbf16> to vector<128xbf16>
    %557 = vector.shape_cast %554 : vector<128xbf16> to vector<1x128xbf16>
    tpu.vector_store %arg9[%c31_264, %c0_265], %557 {strides = array<i32>} : memref<66x128xbf16, #tpu.memory_space<vmem>>, vector<1x128xbf16>,
    %558 = vector.extract_strided_slice %402 {offsets = [15, 128], sizes = [1, 128], strides = [1, 1]} : vector<32x256xbf16> to vector<1x128xbf16>
    %559 = vector.shape_cast %558 : vector<1x128xbf16> to vector<128xbf16>
    %c32_266 = arith.constant 32 : index
    %c0_267 = arith.constant 0 : index
    %560 = vector.load %arg9[%c32_266, %c0_267] : memref<66x128xbf16, #tpu.memory_space<vmem>>, vector<1x128xbf16>
    %561 = vector.shape_cast %560 : vector<1x128xbf16> to vector<128xbf16>
    %562 = vector.shape_cast %559 : vector<128xbf16> to vector<1x128xbf16>
    tpu.vector_store %arg9[%c32_266, %c0_267], %562 {strides = array<i32>} : memref<66x128xbf16, #tpu.memory_space<vmem>>, vector<1x128xbf16>,
    %563 = vector.extract_strided_slice %402 {offsets = [16, 0], sizes = [1, 128], strides = [1, 1]} : vector<32x256xbf16> to vector<1x128xbf16>
    %564 = vector.shape_cast %563 : vector<1x128xbf16> to vector<128xbf16>
    %c33 = arith.constant 33 : index
    %c0_268 = arith.constant 0 : index
    %565 = vector.load %arg9[%c33, %c0_268] : memref<66x128xbf16, #tpu.memory_space<vmem>>, vector<1x128xbf16>
    %566 = vector.shape_cast %565 : vector<1x128xbf16> to vector<128xbf16>
    %567 = vector.shape_cast %564 : vector<128xbf16> to vector<1x128xbf16>
    tpu.vector_store %arg9[%c33, %c0_268], %567 {strides = array<i32>} : memref<66x128xbf16, #tpu.memory_space<vmem>>, vector<1x128xbf16>,
    %568 = vector.extract_strided_slice %402 {offsets = [16, 128], sizes = [1, 128], strides = [1, 1]} : vector<32x256xbf16> to vector<1x128xbf16>
    %569 = vector.shape_cast %568 : vector<1x128xbf16> to vector<128xbf16>
    %c34 = arith.constant 34 : index
    %c0_269 = arith.constant 0 : index
    %570 = vector.load %arg9[%c34, %c0_269] : memref<66x128xbf16, #tpu.memory_space<vmem>>, vector<1x128xbf16>
    %571 = vector.shape_cast %570 : vector<1x128xbf16> to vector<128xbf16>
    %572 = vector.shape_cast %569 : vector<128xbf16> to vector<1x128xbf16>
    tpu.vector_store %arg9[%c34, %c0_269], %572 {strides = array<i32>} : memref<66x128xbf16, #tpu.memory_space<vmem>>, vector<1x128xbf16>,
    %573 = vector.extract_strided_slice %402 {offsets = [17, 0], sizes = [1, 128], strides = [1, 1]} : vector<32x256xbf16> to vector<1x128xbf16>
    %574 = vector.shape_cast %573 : vector<1x128xbf16> to vector<128xbf16>
    %c35 = arith.constant 35 : index
    %c0_270 = arith.constant 0 : index
    %575 = vector.load %arg9[%c35, %c0_270] : memref<66x128xbf16, #tpu.memory_space<vmem>>, vector<1x128xbf16>
    %576 = vector.shape_cast %575 : vector<1x128xbf16> to vector<128xbf16>
    %577 = vector.shape_cast %574 : vector<128xbf16> to vector<1x128xbf16>
    tpu.vector_store %arg9[%c35, %c0_270], %577 {strides = array<i32>} : memref<66x128xbf16, #tpu.memory_space<vmem>>, vector<1x128xbf16>,
    %578 = vector.extract_strided_slice %402 {offsets = [17, 128], sizes = [1, 128], strides = [1, 1]} : vector<32x256xbf16> to vector<1x128xbf16>
    %579 = vector.shape_cast %578 : vector<1x128xbf16> to vector<128xbf16>
    %c36 = arith.constant 36 : index
    %c0_271 = arith.constant 0 : index
    %580 = vector.load %arg9[%c36, %c0_271] : memref<66x128xbf16, #tpu.memory_space<vmem>>, vector<1x128xbf16>
    %581 = vector.shape_cast %580 : vector<1x128xbf16> to vector<128xbf16>
    %582 = vector.shape_cast %579 : vector<128xbf16> to vector<1x128xbf16>
    tpu.vector_store %arg9[%c36, %c0_271], %582 {strides = array<i32>} : memref<66x128xbf16, #tpu.memory_space<vmem>>, vector<1x128xbf16>,
    %583 = vector.extract_strided_slice %402 {offsets = [18, 0], sizes = [1, 128], strides = [1, 1]} : vector<32x256xbf16> to vector<1x128xbf16>
    %584 = vector.shape_cast %583 : vector<1x128xbf16> to vector<128xbf16>
    %c37 = arith.constant 37 : index
    %c0_272 = arith.constant 0 : index
    %585 = vector.load %arg9[%c37, %c0_272] : memref<66x128xbf16, #tpu.memory_space<vmem>>, vector<1x128xbf16>
    %586 = vector.shape_cast %585 : vector<1x128xbf16> to vector<128xbf16>
    %587 = vector.shape_cast %584 : vector<128xbf16> to vector<1x128xbf16>
    tpu.vector_store %arg9[%c37, %c0_272], %587 {strides = array<i32>} : memref<66x128xbf16, #tpu.memory_space<vmem>>, vector<1x128xbf16>,
    %588 = vector.extract_strided_slice %402 {offsets = [18, 128], sizes = [1, 128], strides = [1, 1]} : vector<32x256xbf16> to vector<1x128xbf16>
    %589 = vector.shape_cast %588 : vector<1x128xbf16> to vector<128xbf16>
    %c38 = arith.constant 38 : index
    %c0_273 = arith.constant 0 : index
    %590 = vector.load %arg9[%c38, %c0_273] : memref<66x128xbf16, #tpu.memory_space<vmem>>, vector<1x128xbf16>
    %591 = vector.shape_cast %590 : vector<1x128xbf16> to vector<128xbf16>
    %592 = vector.shape_cast %589 : vector<128xbf16> to vector<1x128xbf16>
    tpu.vector_store %arg9[%c38, %c0_273], %592 {strides = array<i32>} : memref<66x128xbf16, #tpu.memory_space<vmem>>, vector<1x128xbf16>,
    %593 = vector.extract_strided_slice %402 {offsets = [19, 0], sizes = [1, 128], strides = [1, 1]} : vector<32x256xbf16> to vector<1x128xbf16>
    %594 = vector.shape_cast %593 : vector<1x128xbf16> to vector<128xbf16>
    %c39 = arith.constant 39 : index
    %c0_274 = arith.constant 0 : index
    %595 = vector.load %arg9[%c39, %c0_274] : memref<66x128xbf16, #tpu.memory_space<vmem>>, vector<1x128xbf16>
    %596 = vector.shape_cast %595 : vector<1x128xbf16> to vector<128xbf16>
    %597 = vector.shape_cast %594 : vector<128xbf16> to vector<1x128xbf16>
    tpu.vector_store %arg9[%c39, %c0_274], %597 {strides = array<i32>} : memref<66x128xbf16, #tpu.memory_space<vmem>>, vector<1x128xbf16>,
    %598 = vector.extract_strided_slice %402 {offsets = [19, 128], sizes = [1, 128], strides = [1, 1]} : vector<32x256xbf16> to vector<1x128xbf16>
    %599 = vector.shape_cast %598 : vector<1x128xbf16> to vector<128xbf16>
    %c40 = arith.constant 40 : index
    %c0_275 = arith.constant 0 : index
    %600 = vector.load %arg9[%c40, %c0_275] : memref<66x128xbf16, #tpu.memory_space<vmem>>, vector<1x128xbf16>
    %601 = vector.shape_cast %600 : vector<1x128xbf16> to vector<128xbf16>
    %602 = vector.shape_cast %599 : vector<128xbf16> to vector<1x128xbf16>
    tpu.vector_store %arg9[%c40, %c0_275], %602 {strides = array<i32>} : memref<66x128xbf16, #tpu.memory_space<vmem>>, vector<1x128xbf16>,
    %603 = vector.extract_strided_slice %402 {offsets = [20, 0], sizes = [1, 128], strides = [1, 1]} : vector<32x256xbf16> to vector<1x128xbf16>
    %604 = vector.shape_cast %603 : vector<1x128xbf16> to vector<128xbf16>
    %c41 = arith.constant 41 : index
    %c0_276 = arith.constant 0 : index
    %605 = vector.load %arg9[%c41, %c0_276] : memref<66x128xbf16, #tpu.memory_space<vmem>>, vector<1x128xbf16>
    %606 = vector.shape_cast %605 : vector<1x128xbf16> to vector<128xbf16>
    %607 = vector.shape_cast %604 : vector<128xbf16> to vector<1x128xbf16>
    tpu.vector_store %arg9[%c41, %c0_276], %607 {strides = array<i32>} : memref<66x128xbf16, #tpu.memory_space<vmem>>, vector<1x128xbf16>,
    %608 = vector.extract_strided_slice %402 {offsets = [20, 128], sizes = [1, 128], strides = [1, 1]} : vector<32x256xbf16> to vector<1x128xbf16>
    %609 = vector.shape_cast %608 : vector<1x128xbf16> to vector<128xbf16>
    %c42 = arith.constant 42 : index
    %c0_277 = arith.constant 0 : index
    %610 = vector.load %arg9[%c42, %c0_277] : memref<66x128xbf16, #tpu.memory_space<vmem>>, vector<1x128xbf16>
    %611 = vector.shape_cast %610 : vector<1x128xbf16> to vector<128xbf16>
    %612 = vector.shape_cast %609 : vector<128xbf16> to vector<1x128xbf16>
    tpu.vector_store %arg9[%c42, %c0_277], %612 {strides = array<i32>} : memref<66x128xbf16, #tpu.memory_space<vmem>>, vector<1x128xbf16>,
    %613 = vector.extract_strided_slice %402 {offsets = [21, 0], sizes = [1, 128], strides = [1, 1]} : vector<32x256xbf16> to vector<1x128xbf16>
    %614 = vector.shape_cast %613 : vector<1x128xbf16> to vector<128xbf16>
    %c43 = arith.constant 43 : index
    %c0_278 = arith.constant 0 : index
    %615 = vector.load %arg9[%c43, %c0_278] : memref<66x128xbf16, #tpu.memory_space<vmem>>, vector<1x128xbf16>
    %616 = vector.shape_cast %615 : vector<1x128xbf16> to vector<128xbf16>
    %617 = vector.shape_cast %614 : vector<128xbf16> to vector<1x128xbf16>
    tpu.vector_store %arg9[%c43, %c0_278], %617 {strides = array<i32>} : memref<66x128xbf16, #tpu.memory_space<vmem>>, vector<1x128xbf16>,
    %618 = vector.extract_strided_slice %402 {offsets = [21, 128], sizes = [1, 128], strides = [1, 1]} : vector<32x256xbf16> to vector<1x128xbf16>
    %619 = vector.shape_cast %618 : vector<1x128xbf16> to vector<128xbf16>
    %c44 = arith.constant 44 : index
    %c0_279 = arith.constant 0 : index
    %620 = vector.load %arg9[%c44, %c0_279] : memref<66x128xbf16, #tpu.memory_space<vmem>>, vector<1x128xbf16>
    %621 = vector.shape_cast %620 : vector<1x128xbf16> to vector<128xbf16>
    %622 = vector.shape_cast %619 : vector<128xbf16> to vector<1x128xbf16>
    tpu.vector_store %arg9[%c44, %c0_279], %622 {strides = array<i32>} : memref<66x128xbf16, #tpu.memory_space<vmem>>, vector<1x128xbf16>,
    %623 = vector.extract_strided_slice %402 {offsets = [22, 0], sizes = [1, 128], strides = [1, 1]} : vector<32x256xbf16> to vector<1x128xbf16>
    %624 = vector.shape_cast %623 : vector<1x128xbf16> to vector<128xbf16>
    %c45 = arith.constant 45 : index
    %c0_280 = arith.constant 0 : index
    %625 = vector.load %arg9[%c45, %c0_280] : memref<66x128xbf16, #tpu.memory_space<vmem>>, vector<1x128xbf16>
    %626 = vector.shape_cast %625 : vector<1x128xbf16> to vector<128xbf16>
    %627 = vector.shape_cast %624 : vector<128xbf16> to vector<1x128xbf16>
    tpu.vector_store %arg9[%c45, %c0_280], %627 {strides = array<i32>} : memref<66x128xbf16, #tpu.memory_space<vmem>>, vector<1x128xbf16>,
    %628 = vector.extract_strided_slice %402 {offsets = [22, 128], sizes = [1, 128], strides = [1, 1]} : vector<32x256xbf16> to vector<1x128xbf16>
    %629 = vector.shape_cast %628 : vector<1x128xbf16> to vector<128xbf16>
    %c46 = arith.constant 46 : index
    %c0_281 = arith.constant 0 : index
    %630 = vector.load %arg9[%c46, %c0_281] : memref<66x128xbf16, #tpu.memory_space<vmem>>, vector<1x128xbf16>
    %631 = vector.shape_cast %630 : vector<1x128xbf16> to vector<128xbf16>
    %632 = vector.shape_cast %629 : vector<128xbf16> to vector<1x128xbf16>
    tpu.vector_store %arg9[%c46, %c0_281], %632 {strides = array<i32>} : memref<66x128xbf16, #tpu.memory_space<vmem>>, vector<1x128xbf16>,
    %633 = vector.extract_strided_slice %402 {offsets = [23, 0], sizes = [1, 128], strides = [1, 1]} : vector<32x256xbf16> to vector<1x128xbf16>
    %634 = vector.shape_cast %633 : vector<1x128xbf16> to vector<128xbf16>
    %c47 = arith.constant 47 : index
    %c0_282 = arith.constant 0 : index
    %635 = vector.load %arg9[%c47, %c0_282] : memref<66x128xbf16, #tpu.memory_space<vmem>>, vector<1x128xbf16>
    %636 = vector.shape_cast %635 : vector<1x128xbf16> to vector<128xbf16>
    %637 = vector.shape_cast %634 : vector<128xbf16> to vector<1x128xbf16>
    tpu.vector_store %arg9[%c47, %c0_282], %637 {strides = array<i32>} : memref<66x128xbf16, #tpu.memory_space<vmem>>, vector<1x128xbf16>,
    %638 = vector.extract_strided_slice %402 {offsets = [23, 128], sizes = [1, 128], strides = [1, 1]} : vector<32x256xbf16> to vector<1x128xbf16>
    %639 = vector.shape_cast %638 : vector<1x128xbf16> to vector<128xbf16>
    %c48 = arith.constant 48 : index
    %c0_283 = arith.constant 0 : index
    %640 = vector.load %arg9[%c48, %c0_283] : memref<66x128xbf16, #tpu.memory_space<vmem>>, vector<1x128xbf16>
    %641 = vector.shape_cast %640 : vector<1x128xbf16> to vector<128xbf16>
    %642 = vector.shape_cast %639 : vector<128xbf16> to vector<1x128xbf16>
    tpu.vector_store %arg9[%c48, %c0_283], %642 {strides = array<i32>} : memref<66x128xbf16, #tpu.memory_space<vmem>>, vector<1x128xbf16>,
    %643 = vector.extract_strided_slice %402 {offsets = [24, 0], sizes = [1, 128], strides = [1, 1]} : vector<32x256xbf16> to vector<1x128xbf16>
    %644 = vector.shape_cast %643 : vector<1x128xbf16> to vector<128xbf16>
    %c49 = arith.constant 49 : index
    %c0_284 = arith.constant 0 : index
    %645 = vector.load %arg9[%c49, %c0_284] : memref<66x128xbf16, #tpu.memory_space<vmem>>, vector<1x128xbf16>
    %646 = vector.shape_cast %645 : vector<1x128xbf16> to vector<128xbf16>
    %647 = vector.shape_cast %644 : vector<128xbf16> to vector<1x128xbf16>
    tpu.vector_store %arg9[%c49, %c0_284], %647 {strides = array<i32>} : memref<66x128xbf16, #tpu.memory_space<vmem>>, vector<1x128xbf16>,
    %648 = vector.extract_strided_slice %402 {offsets = [24, 128], sizes = [1, 128], strides = [1, 1]} : vector<32x256xbf16> to vector<1x128xbf16>
    %649 = vector.shape_cast %648 : vector<1x128xbf16> to vector<128xbf16>
    %c50 = arith.constant 50 : index
    %c0_285 = arith.constant 0 : index
    %650 = vector.load %arg9[%c50, %c0_285] : memref<66x128xbf16, #tpu.memory_space<vmem>>, vector<1x128xbf16>
    %651 = vector.shape_cast %650 : vector<1x128xbf16> to vector<128xbf16>
    %652 = vector.shape_cast %649 : vector<128xbf16> to vector<1x128xbf16>
    tpu.vector_store %arg9[%c50, %c0_285], %652 {strides = array<i32>} : memref<66x128xbf16, #tpu.memory_space<vmem>>, vector<1x128xbf16>,
    %653 = vector.extract_strided_slice %402 {offsets = [25, 0], sizes = [1, 128], strides = [1, 1]} : vector<32x256xbf16> to vector<1x128xbf16>
    %654 = vector.shape_cast %653 : vector<1x128xbf16> to vector<128xbf16>
    %c51 = arith.constant 51 : index
    %c0_286 = arith.constant 0 : index
    %655 = vector.load %arg9[%c51, %c0_286] : memref<66x128xbf16, #tpu.memory_space<vmem>>, vector<1x128xbf16>
    %656 = vector.shape_cast %655 : vector<1x128xbf16> to vector<128xbf16>
    %657 = vector.shape_cast %654 : vector<128xbf16> to vector<1x128xbf16>
    tpu.vector_store %arg9[%c51, %c0_286], %657 {strides = array<i32>} : memref<66x128xbf16, #tpu.memory_space<vmem>>, vector<1x128xbf16>,
    %658 = vector.extract_strided_slice %402 {offsets = [25, 128], sizes = [1, 128], strides = [1, 1]} : vector<32x256xbf16> to vector<1x128xbf16>
    %659 = vector.shape_cast %658 : vector<1x128xbf16> to vector<128xbf16>
    %c52 = arith.constant 52 : index
    %c0_287 = arith.constant 0 : index
    %660 = vector.load %arg9[%c52, %c0_287] : memref<66x128xbf16, #tpu.memory_space<vmem>>, vector<1x128xbf16>
    %661 = vector.shape_cast %660 : vector<1x128xbf16> to vector<128xbf16>
    %662 = vector.shape_cast %659 : vector<128xbf16> to vector<1x128xbf16>
    tpu.vector_store %arg9[%c52, %c0_287], %662 {strides = array<i32>} : memref<66x128xbf16, #tpu.memory_space<vmem>>, vector<1x128xbf16>,
    %663 = vector.extract_strided_slice %402 {offsets = [26, 0], sizes = [1, 128], strides = [1, 1]} : vector<32x256xbf16> to vector<1x128xbf16>
    %664 = vector.shape_cast %663 : vector<1x128xbf16> to vector<128xbf16>
    %c53 = arith.constant 53 : index
    %c0_288 = arith.constant 0 : index
    %665 = vector.load %arg9[%c53, %c0_288] : memref<66x128xbf16, #tpu.memory_space<vmem>>, vector<1x128xbf16>
    %666 = vector.shape_cast %665 : vector<1x128xbf16> to vector<128xbf16>
    %667 = vector.shape_cast %664 : vector<128xbf16> to vector<1x128xbf16>
    tpu.vector_store %arg9[%c53, %c0_288], %667 {strides = array<i32>} : memref<66x128xbf16, #tpu.memory_space<vmem>>, vector<1x128xbf16>,
    %668 = vector.extract_strided_slice %402 {offsets = [26, 128], sizes = [1, 128], strides = [1, 1]} : vector<32x256xbf16> to vector<1x128xbf16>
    %669 = vector.shape_cast %668 : vector<1x128xbf16> to vector<128xbf16>
    %c54 = arith.constant 54 : index
    %c0_289 = arith.constant 0 : index
    %670 = vector.load %arg9[%c54, %c0_289] : memref<66x128xbf16, #tpu.memory_space<vmem>>, vector<1x128xbf16>
    %671 = vector.shape_cast %670 : vector<1x128xbf16> to vector<128xbf16>
    %672 = vector.shape_cast %669 : vector<128xbf16> to vector<1x128xbf16>
    tpu.vector_store %arg9[%c54, %c0_289], %672 {strides = array<i32>} : memref<66x128xbf16, #tpu.memory_space<vmem>>, vector<1x128xbf16>,
    %673 = vector.extract_strided_slice %402 {offsets = [27, 0], sizes = [1, 128], strides = [1, 1]} : vector<32x256xbf16> to vector<1x128xbf16>
    %674 = vector.shape_cast %673 : vector<1x128xbf16> to vector<128xbf16>
    %c55 = arith.constant 55 : index
    %c0_290 = arith.constant 0 : index
    %675 = vector.load %arg9[%c55, %c0_290] : memref<66x128xbf16, #tpu.memory_space<vmem>>, vector<1x128xbf16>
    %676 = vector.shape_cast %675 : vector<1x128xbf16> to vector<128xbf16>
    %677 = vector.shape_cast %674 : vector<128xbf16> to vector<1x128xbf16>
    tpu.vector_store %arg9[%c55, %c0_290], %677 {strides = array<i32>} : memref<66x128xbf16, #tpu.memory_space<vmem>>, vector<1x128xbf16>,
    %678 = vector.extract_strided_slice %402 {offsets = [27, 128], sizes = [1, 128], strides = [1, 1]} : vector<32x256xbf16> to vector<1x128xbf16>
    %679 = vector.shape_cast %678 : vector<1x128xbf16> to vector<128xbf16>
    %c56 = arith.constant 56 : index
    %c0_291 = arith.constant 0 : index
    %680 = vector.load %arg9[%c56, %c0_291] : memref<66x128xbf16, #tpu.memory_space<vmem>>, vector<1x128xbf16>
    %681 = vector.shape_cast %680 : vector<1x128xbf16> to vector<128xbf16>
    %682 = vector.shape_cast %679 : vector<128xbf16> to vector<1x128xbf16>
    tpu.vector_store %arg9[%c56, %c0_291], %682 {strides = array<i32>} : memref<66x128xbf16, #tpu.memory_space<vmem>>, vector<1x128xbf16>,
    %683 = vector.extract_strided_slice %402 {offsets = [28, 0], sizes = [1, 128], strides = [1, 1]} : vector<32x256xbf16> to vector<1x128xbf16>
    %684 = vector.shape_cast %683 : vector<1x128xbf16> to vector<128xbf16>
    %c57 = arith.constant 57 : index
    %c0_292 = arith.constant 0 : index
    %685 = vector.load %arg9[%c57, %c0_292] : memref<66x128xbf16, #tpu.memory_space<vmem>>, vector<1x128xbf16>
    %686 = vector.shape_cast %685 : vector<1x128xbf16> to vector<128xbf16>
    %687 = vector.shape_cast %684 : vector<128xbf16> to vector<1x128xbf16>
    tpu.vector_store %arg9[%c57, %c0_292], %687 {strides = array<i32>} : memref<66x128xbf16, #tpu.memory_space<vmem>>, vector<1x128xbf16>,
    %688 = vector.extract_strided_slice %402 {offsets = [28, 128], sizes = [1, 128], strides = [1, 1]} : vector<32x256xbf16> to vector<1x128xbf16>
    %689 = vector.shape_cast %688 : vector<1x128xbf16> to vector<128xbf16>
    %c58 = arith.constant 58 : index
    %c0_293 = arith.constant 0 : index
    %690 = vector.load %arg9[%c58, %c0_293] : memref<66x128xbf16, #tpu.memory_space<vmem>>, vector<1x128xbf16>
    %691 = vector.shape_cast %690 : vector<1x128xbf16> to vector<128xbf16>
    %692 = vector.shape_cast %689 : vector<128xbf16> to vector<1x128xbf16>
    tpu.vector_store %arg9[%c58, %c0_293], %692 {strides = array<i32>} : memref<66x128xbf16, #tpu.memory_space<vmem>>, vector<1x128xbf16>,
    %693 = vector.extract_strided_slice %402 {offsets = [29, 0], sizes = [1, 128], strides = [1, 1]} : vector<32x256xbf16> to vector<1x128xbf16>
    %694 = vector.shape_cast %693 : vector<1x128xbf16> to vector<128xbf16>
    %c59 = arith.constant 59 : index
    %c0_294 = arith.constant 0 : index
    %695 = vector.load %arg9[%c59, %c0_294] : memref<66x128xbf16, #tpu.memory_space<vmem>>, vector<1x128xbf16>
    %696 = vector.shape_cast %695 : vector<1x128xbf16> to vector<128xbf16>
    %697 = vector.shape_cast %694 : vector<128xbf16> to vector<1x128xbf16>
    tpu.vector_store %arg9[%c59, %c0_294], %697 {strides = array<i32>} : memref<66x128xbf16, #tpu.memory_space<vmem>>, vector<1x128xbf16>,
    %698 = vector.extract_strided_slice %402 {offsets = [29, 128], sizes = [1, 128], strides = [1, 1]} : vector<32x256xbf16> to vector<1x128xbf16>
    %699 = vector.shape_cast %698 : vector<1x128xbf16> to vector<128xbf16>
    %c60 = arith.constant 60 : index
    %c0_295 = arith.constant 0 : index
    %700 = vector.load %arg9[%c60, %c0_295] : memref<66x128xbf16, #tpu.memory_space<vmem>>, vector<1x128xbf16>
    %701 = vector.shape_cast %700 : vector<1x128xbf16> to vector<128xbf16>
    %702 = vector.shape_cast %699 : vector<128xbf16> to vector<1x128xbf16>
    tpu.vector_store %arg9[%c60, %c0_295], %702 {strides = array<i32>} : memref<66x128xbf16, #tpu.memory_space<vmem>>, vector<1x128xbf16>,
    %703 = vector.extract_strided_slice %402 {offsets = [30, 0], sizes = [1, 128], strides = [1, 1]} : vector<32x256xbf16> to vector<1x128xbf16>
    %704 = vector.shape_cast %703 : vector<1x128xbf16> to vector<128xbf16>
    %c61 = arith.constant 61 : index
    %c0_296 = arith.constant 0 : index
    %705 = vector.load %arg9[%c61, %c0_296] : memref<66x128xbf16, #tpu.memory_space<vmem>>, vector<1x128xbf16>
    %706 = vector.shape_cast %705 : vector<1x128xbf16> to vector<128xbf16>
    %707 = vector.shape_cast %704 : vector<128xbf16> to vector<1x128xbf16>
    tpu.vector_store %arg9[%c61, %c0_296], %707 {strides = array<i32>} : memref<66x128xbf16, #tpu.memory_space<vmem>>, vector<1x128xbf16>,
    %708 = vector.extract_strided_slice %402 {offsets = [30, 128], sizes = [1, 128], strides = [1, 1]} : vector<32x256xbf16> to vector<1x128xbf16>
    %709 = vector.shape_cast %708 : vector<1x128xbf16> to vector<128xbf16>
    %c62 = arith.constant 62 : index
    %c0_297 = arith.constant 0 : index
    %710 = vector.load %arg9[%c62, %c0_297] : memref<66x128xbf16, #tpu.memory_space<vmem>>, vector<1x128xbf16>
    %711 = vector.shape_cast %710 : vector<1x128xbf16> to vector<128xbf16>
    %712 = vector.shape_cast %709 : vector<128xbf16> to vector<1x128xbf16>
    tpu.vector_store %arg9[%c62, %c0_297], %712 {strides = array<i32>} : memref<66x128xbf16, #tpu.memory_space<vmem>>, vector<1x128xbf16>,
    %713 = vector.extract_strided_slice %402 {offsets = [31, 0], sizes = [1, 128], strides = [1, 1]} : vector<32x256xbf16> to vector<1x128xbf16>
    %714 = vector.shape_cast %713 : vector<1x128xbf16> to vector<128xbf16>
    %c63 = arith.constant 63 : index
    %c0_298 = arith.constant 0 : index
    %715 = vector.load %arg9[%c63, %c0_298] : memref<66x128xbf16, #tpu.memory_space<vmem>>, vector<1x128xbf16>
    %716 = vector.shape_cast %715 : vector<1x128xbf16> to vector<128xbf16>
    %717 = vector.shape_cast %714 : vector<128xbf16> to vector<1x128xbf16>
    tpu.vector_store %arg9[%c63, %c0_298], %717 {strides = array<i32>} : memref<66x128xbf16, #tpu.memory_space<vmem>>, vector<1x128xbf16>,
    %718 = vector.extract_strided_slice %402 {offsets = [31, 128], sizes = [1, 128], strides = [1, 1]} : vector<32x256xbf16> to vector<1x128xbf16>
    %719 = vector.shape_cast %718 : vector<1x128xbf16> to vector<128xbf16>
    %c64 = arith.constant 64 : index
    %c0_299 = arith.constant 0 : index
    %720 = vector.load %arg9[%c64, %c0_299] : memref<66x128xbf16, #tpu.memory_space<vmem>>, vector<1x128xbf16>
    %721 = vector.shape_cast %720 : vector<1x128xbf16> to vector<128xbf16>
    %722 = vector.shape_cast %719 : vector<128xbf16> to vector<1x128xbf16>
    tpu.vector_store %arg9[%c64, %c0_299], %722 {strides = array<i32>} : memref<66x128xbf16, #tpu.memory_space<vmem>>, vector<1x128xbf16>,
    %c0_300 = arith.constant 0 : index
    %c0_301 = arith.constant 0 : index
    %723 = vector.load %arg9[%c0_300, %c0_301] : memref<66x128xbf16, #tpu.memory_space<vmem>>, vector<64x128xbf16>
    %c1_302 = arith.constant 1 : index
    %c0_303 = arith.constant 0 : index
    %724 = vector.load %arg9[%c1_302, %c0_303] : memref<66x128xbf16, #tpu.memory_space<vmem>>, vector<64x128xbf16>
    %c2_304 = arith.constant 2 : index
    %c0_305 = arith.constant 0 : index
    %725 = vector.load %arg9[%c2_304, %c0_305] : memref<66x128xbf16, #tpu.memory_space<vmem>>, vector<64x128xbf16>
    %c4_306 = arith.constant 4 : index
    %c0_307 = arith.constant 0 : index
    %c0_308 = arith.constant 0 : index
    %c0_309 = arith.constant 0 : index
    %726 = vector.load %arg6[%c4_306, %c0_307, %c0_308, %c0_309] : memref<5x3x128x256xbf16, #tpu.memory_space<vmem>>, vector<1x1x128x256xbf16>
    %727 = vector.shape_cast %726 : vector<1x1x128x256xbf16> to vector<128x256xbf16>
    %cst_310 = arith.constant dense<0.000000e+00> : vector<64x256xf32>
    %728 = tpu.matmul %723, %727, %cst_310 {dimension_numbers = #tpu.dot_dimension_numbers<[1], [0], [0], [1], [0, 0, 1, 1], [], []>} : vector<64x128xbf16>, vector<128x256xbf16>, vector<64x256xf32> -> vector<64x256xf32>
    %c4_311 = arith.constant 4 : index
    %c1_312 = arith.constant 1 : index
    %c0_313 = arith.constant 0 : index
    %c0_314 = arith.constant 0 : index
    %729 = vector.load %arg6[%c4_311, %c1_312, %c0_313, %c0_314] : memref<5x3x128x256xbf16, #tpu.memory_space<vmem>>, vector<1x1x128x256xbf16>
    %730 = vector.shape_cast %729 : vector<1x1x128x256xbf16> to vector<128x256xbf16>
    %cst_315 = arith.constant dense<0.000000e+00> : vector<64x256xf32>
    %731 = tpu.matmul %724, %730, %cst_315 {dimension_numbers = #tpu.dot_dimension_numbers<[1], [0], [0], [1], [0, 0, 1, 1], [], []>} : vector<64x128xbf16>, vector<128x256xbf16>, vector<64x256xf32> -> vector<64x256xf32>
    %732 = arith.addf %728, %731 : vector<64x256xf32>
    %c4_316 = arith.constant 4 : index
    %c2_317 = arith.constant 2 : index
    %c0_318 = arith.constant 0 : index
    %c0_319 = arith.constant 0 : index
    %733 = vector.load %arg6[%c4_316, %c2_317, %c0_318, %c0_319] : memref<5x3x128x256xbf16, #tpu.memory_space<vmem>>, vector<1x1x128x256xbf16>
    %734 = vector.shape_cast %733 : vector<1x1x128x256xbf16> to vector<128x256xbf16>
    %cst_320 = arith.constant dense<0.000000e+00> : vector<64x256xf32>
    %735 = tpu.matmul %725, %734, %cst_320 {dimension_numbers = #tpu.dot_dimension_numbers<[1], [0], [0], [1], [0, 0, 1, 1], [], []>} : vector<64x128xbf16>, vector<128x256xbf16>, vector<64x256xf32> -> vector<64x256xf32>
    %736 = arith.addf %732, %735 : vector<64x256xf32>
    %c4_321 = arith.constant 4 : index
    %c0_322 = arith.constant 0 : index
    %c0_323 = arith.constant 0 : index
    %737 = vector.load %arg7[%c4_321, %c0_322, %c0_323] : memref<5x1x256xf32, #tpu.memory_space<vmem>>, vector<1x1x256xf32>
    %738 = vector.shape_cast %737 : vector<1x1x256xf32> to vector<1x256xf32>
    %739 = vector.broadcast %738 : vector<1x256xf32> to vector<64x256xf32>
    %740 = arith.addf %736, %739 : vector<64x256xf32>
    %741 = math.tanh %740 : vector<64x256xf32>
    %c0_324 = arith.constant 0 : index
    %c0_325 = arith.constant 0 : index
    %c0_326 = arith.constant 0 : index
    %742 = vector.load %arg8[%c0_324, %c0_325, %c0_326] : memref<1x64x256xf32, #tpu.memory_space<vmem>>, vector<1x64x256xf32>
    %743 = vector.shape_cast %742 : vector<1x64x256xf32> to vector<64x256xf32>
    %744 = vector.shape_cast %741 : vector<64x256xf32> to vector<1x64x256xf32>
    tpu.vector_store %arg8[%c0_324, %c0_325, %c0_326], %744 {strides = array<i32>} : memref<1x64x256xf32, #tpu.memory_space<vmem>>, vector<1x64x256xf32>,
    return
  }
  func.func @transform_0(%arg0: i32) -> (i32, i32, i32) {
    %c0_i32 = arith.constant 0 : i32
    %c0_i32_0 = arith.constant 0 : i32
    %c0_i32_1 = arith.constant 0 : i32
    return %arg0, %c0_i32, %c0_i32_0 : i32, i32, i32
  }
  func.func @transform_1(%arg0: i32) -> (i32, i32) {
    %c0_i32 = arith.constant 0 : i32
    %c0_i32_0 = arith.constant 0 : i32
    %c0_i32_1 = arith.constant 0 : i32
    return %c0_i32, %c0_i32_0 : i32, i32
  }
  func.func @transform_2(%arg0: i32) -> (i32, i32) {
    %c0_i32 = arith.constant 0 : i32
    %c0_i32_0 = arith.constant 0 : i32
    %c0_i32_1 = arith.constant 0 : i32
    return %c0_i32, %c0_i32_0 : i32, i32
  }
  func.func @transform_3(%arg0: i32) -> (i32, i32) {
    %c0_i32 = arith.constant 0 : i32
    %c0_i32_0 = arith.constant 0 : i32
    %c0_i32_1 = arith.constant 0 : i32
    return %c0_i32, %c0_i32_0 : i32, i32
  }
  func.func @transform_4(%arg0: i32) -> (i32, i32) {
    %c0_i32 = arith.constant 0 : i32
    %c0_i32_0 = arith.constant 0 : i32
    %c0_i32_1 = arith.constant 0 : i32
    return %c0_i32, %c0_i32_0 : i32, i32
  }
  func.func @transform_5(%arg0: i32) -> (i32, i32, i32, i32) {
    %c0_i32 = arith.constant 0 : i32
    %c0_i32_0 = arith.constant 0 : i32
    %c0_i32_1 = arith.constant 0 : i32
    %c0_i32_2 = arith.constant 0 : i32
    %c0_i32_3 = arith.constant 0 : i32
    return %c0_i32, %c0_i32_0, %c0_i32_1, %c0_i32_2 : i32, i32, i32, i32
  }
  func.func @transform_6(%arg0: i32) -> (i32, i32, i32) {
    %c0_i32 = arith.constant 0 : i32
    %c0_i32_0 = arith.constant 0 : i32
    %c0_i32_1 = arith.constant 0 : i32
    %c0_i32_2 = arith.constant 0 : i32
    return %c0_i32, %c0_i32_0, %c0_i32_1 : i32, i32, i32
  }
  func.func @transform_7(%arg0: i32) -> (i32, i32, i32) {
    %c0_i32 = arith.constant 0 : i32
    %c0_i32_0 = arith.constant 0 : i32
    %c0_i32_1 = arith.constant 0 : i32
    return %arg0, %c0_i32, %c0_i32_0 : i32, i32, i32
  }
}

</mosaic_0001>

<llo_original>
// kernel: _lambda_.1
$region0: #{_lambda_.1}
  #allocation0 [shape = 'u32[]', space=smem, size = 0x4, offset = 0x4, fixed_abs, tag = 'smem constant byte address 0x4 - core index']
  #allocation1 [shape = 'u32[144,128]{1,0:T(1,128)}', space=vmem, size = 0x12000, scoped, tag = 'internal scratch']
  #allocation2 [shape = 'bf16[66,128]{1,0:T(8,128)(2,1)}', space=vmem, size = 0x4800, scoped, tag = 'scratch operand']
  %s0 = inlined_call_operand.hbm [shape: f32[2,1,32], index: 0, kind: input, shape index: {}]
  %s1 = inlined_call_operand.hbm [shape: bf16[32,64], index: 1, kind: input, shape index: {}]
  %s2 = inlined_call_operand.vmem [shape: f32[1,64], index: 2, kind: input, shape index: {}]
  %s3 = inlined_call_operand.hbm [shape: bf16[64,512], index: 3, kind: input, shape index: {}]
  %s4 = inlined_call_operand.hbm [shape: f32[1,512], index: 4, kind: input, shape index: {}]
  %s5 = inlined_call_operand.hbm [shape: bf16[5,3,128,256], index: 5, kind: input, shape index: {}]
  %s6 = inlined_call_operand.vmem [shape: f32[5,1,256], index: 6, kind: input, shape index: {}]
  %s7 = inlined_call_operand.vmem [shape: f32[2,64,256], index: 7, kind: output, shape index: {}]
  %s8 = sld [smem:[#allocation0]]
  $region81: #{_lambda_.1} parent=0
    _
  %s10 = ssub.s32 1, %s8
  %s11 = scalar_select 0, %s10, %s8
  $region1: #{_lambda_.1} parent=0
    #allocation3 [shape = 'u8[1024]{0}', space=vmem, size = 0x400, scoped, tag = 'input window, operand 0']
    #allocation4 [shape = 's32[2]{0}', space=sflag, size = 0x8, scoped, tag = 'scoped memory for _lambda_.1']
    #allocation5 [shape = 'u8[8192]{0}', space=vmem, size = 0x2000, scoped, tag = 'input window, operand 1, single buffered']
    #allocation6 [shape = 's32[1]{0}', space=sflag, size = 0x4, scoped, tag = 'scoped memory for _lambda_.1']
    #allocation7 [shape = 'u8[65536]{0}', space=vmem, size = 0x10000, scoped, tag = 'input window, operand 3, single buffered']
    #allocation8 [shape = 'u8[2048]{0}', space=vmem, size = 0x800, scoped, tag = 'input window, operand 4, single buffered']
    #allocation9 [shape = 's32[1]{0}', space=sflag, size = 0x4, scoped, tag = 'scoped memory for _lambda_.1']
    #allocation10 [shape = 'u8[983040]{0}', space=vmem, size = 0xf0000, scoped, tag = 'input window, operand 5, single buffered']
    %12 = vsyncpa [#allocation4], 0
    %s13 = scalar_lea.sflag [#allocation4], 1
    %14 = vsyncpa %s13, 0
    %15 = vsyncpa [#allocation6], 0
    %16 = vsyncpa [#allocation9], 0
    loop: start=0, step=1, limit=4
    $region2: #{_lambda_.1} parent=1 // loop_pre_header
      _
    $region3: #{_lambda_.1} parent=1 // loop_header
      %s18 = sphi 0, %s22
      %p19 = scmp.ge.s32.totalorder %s18, 4
      %s28 = sphi 0, %s30
      %s31 = sphi 0, %s28
      %s32 = sphi 0, %s31
      %s48 = sphi 0, %s32
      %s52 = sphi 0, %s52
      %s54 = sphi 0, %s52
      %s55 = sphi 0, %s54
      %s69 = sphi 0, %s55
      %s73 = sphi 0, %s73
      %s75 = sphi 0, %s73
      %s76 = sphi 0, %s75
      %s90 = sphi 0, %s76
      %s94 = sphi 0, %s94
      %s96 = sphi 0, %s94
      %s97 = sphi 0, %s96
      %s111 = sphi 0, %s97
      %s115 = sphi 0, %s115
      %s117 = sphi 0, %s115
      %s118 = sphi 0, %s117
      %s132 = sphi 0, %s118
      %s136 = sphi 0, %s136
      %s138 = sphi 0, %s136
      %s139 = sphi 0, %s138
      %s153 = sphi 0, %s139
      %s157 = sphi 0, %s157
      %s159 = sphi 0, %s157
      %s160 = sphi 0, %s159
      %s174 = sphi 0, %s160
      %s180 = sphi 0, %s182
      %s183 = sphi 0, %s180
      %s184 = sphi 0, %s183
      %s200 = sphi 0, %s184
    $region4: #{_lambda_.1} parent=1 // loop_header_branch
      %21 = sbr.rel (%p19) target = $region8
    $region5: #{_lambda_.1} parent=1 // loop_body
      %s23 = ssub.s32 %s18, 1
      %s24 = ssub.s32 %s18, 2
      %s25 = sadd.s32 %s18, 1
      %s26 = ssub.s32 %s18, %s25
      %p27 = scmp.eq.s32.totalorder %s26, 0
      %s29 = sadd.s32 %s28, 1
      %s30 = scalar_select %p27, %s28, %s29
      %p33 = pneg %p27
      %p34 = scmp.eq.s32.totalorder %s18, 1
      %p35 = por %p33, %p34
      %p36 = scmp.ne.s32.totalorder %s28, %s31
      %p37 = scmp.eq.s32.totalorder %s18, 0
      %p38 = por %p36, %p37
      %p39 = scmp.ne.s32.totalorder %s28, %s31
      %p40 = scmp.eq.s32.totalorder %s23, 1
      %p41 = por %p39, %p40
      %p42 = scmp.ne.s32.totalorder %s31, %s32
      %p43 = scmp.eq.s32.totalorder %s23, 0
      %p44 = por %p42, %p43
      %p45 = scmp.ne.s32.totalorder %s31, %s32
      %p46 = scmp.eq.s32.totalorder %s24, 1
      %p47 = por %p45, %p46
      %p49 = scmp.ne.s32.totalorder %s32, %s48
      %p50 = scmp.eq.s32.totalorder %s24, 0
      %p51 = por %p49, %p50
      %s53 = sadd.s32 %s52, 1
      %p56 = scmp.eq.s32.totalorder %s18, 1
      %p57 = scmp.ne.s32.totalorder %s52, %s54
      %p58 = scmp.eq.s32.totalorder %s18, 0
      %p59 = por %p57, %p58
      %p60 = scmp.ne.s32.totalorder %s52, %s54
      %p61 = scmp.eq.s32.totalorder %s23, 1
      %p62 = por %p60, %p61
      %p63 = scmp.ne.s32.totalorder %s54, %s55
      %p64 = scmp.eq.s32.totalorder %s23, 0
      %p65 = por %p63, %p64
      %p66 = scmp.ne.s32.totalorder %s54, %s55
      %p67 = scmp.eq.s32.totalorder %s24, 1
      %p68 = por %p66, %p67
      %p70 = scmp.ne.s32.totalorder %s55, %s69
      %p71 = scmp.eq.s32.totalorder %s24, 0
      %p72 = por %p70, %p71
      %s74 = sadd.s32 %s73, 1
      %p77 = scmp.eq.s32.totalorder %s18, 1
      %p78 = scmp.ne.s32.totalorder %s73, %s75
      %p79 = scmp.eq.s32.totalorder %s18, 0
      %p80 = por %p78, %p79
      %p81 = scmp.ne.s32.totalorder %s73, %s75
      %p82 = scmp.eq.s32.totalorder %s23, 1
      %p83 = por %p81, %p82
      %p84 = scmp.ne.s32.totalorder %s75, %s76
      %p85 = scmp.eq.s32.totalorder %s23, 0
      %p86 = por %p84, %p85
      %p87 = scmp.ne.s32.totalorder %s75, %s76
      %p88 = scmp.eq.s32.totalorder %s24, 1
      %p89 = por %p87, %p88
      %p91 = scmp.ne.s32.totalorder %s76, %s90
      %p92 = scmp.eq.s32.totalorder %s24, 0
      %p93 = por %p91, %p92
      %s95 = sadd.s32 %s94, 1
      %p98 = scmp.eq.s32.totalorder %s18, 1
      %p99 = scmp.ne.s32.totalorder %s94, %s96
      %p100 = scmp.eq.s32.totalorder %s18, 0
      %p101 = por %p99, %p100
      %p102 = scmp.ne.s32.totalorder %s94, %s96
      %p103 = scmp.eq.s32.totalorder %s23, 1
      %p104 = por %p102, %p103
      %p105 = scmp.ne.s32.totalorder %s96, %s97
      %p106 = scmp.eq.s32.totalorder %s23, 0
      %p107 = por %p105, %p106
      %p108 = scmp.ne.s32.totalorder %s96, %s97
      %p109 = scmp.eq.s32.totalorder %s24, 1
      %p110 = por %p108, %p109
      %p112 = scmp.ne.s32.totalorder %s97, %s111
      %p113 = scmp.eq.s32.totalorder %s24, 0
      %p114 = por %p112, %p113
      %s116 = sadd.s32 %s115, 1
      %p119 = scmp.eq.s32.totalorder %s18, 1
      %p120 = scmp.ne.s32.totalorder %s115, %s117
      %p121 = scmp.eq.s32.totalorder %s18, 0
      %p122 = por %p120, %p121
      %p123 = scmp.ne.s32.totalorder %s115, %s117
      %p124 = scmp.eq.s32.totalorder %s23, 1
      %p125 = por %p123, %p124
      %p126 = scmp.ne.s32.totalorder %s117, %s118
      %p127 = scmp.eq.s32.totalorder %s23, 0
      %p128 = por %p126, %p127
      %p129 = scmp.ne.s32.totalorder %s117, %s118
      %p130 = scmp.eq.s32.totalorder %s24, 1
      %p131 = por %p129, %p130
      %p133 = scmp.ne.s32.totalorder %s118, %s132
      %p134 = scmp.eq.s32.totalorder %s24, 0
      %p135 = por %p133, %p134
      %s137 = sadd.s32 %s136, 1
      %p140 = scmp.eq.s32.totalorder %s18, 1
      %p141 = scmp.ne.s32.totalorder %s136, %s138
      %p142 = scmp.eq.s32.totalorder %s18, 0
      %p143 = por %p141, %p142
      %p144 = scmp.ne.s32.totalorder %s136, %s138
      %p145 = scmp.eq.s32.totalorder %s23, 1
      %p146 = por %p144, %p145
      %p147 = scmp.ne.s32.totalorder %s138, %s139
      %p148 = scmp.eq.s32.totalorder %s23, 0
      %p149 = por %p147, %p148
      %p150 = scmp.ne.s32.totalorder %s138, %s139
      %p151 = scmp.eq.s32.totalorder %s24, 1
      %p152 = por %p150, %p151
      %p154 = scmp.ne.s32.totalorder %s139, %s153
      %p155 = scmp.eq.s32.totalorder %s24, 0
      %p156 = por %p154, %p155
      %s158 = sadd.s32 %s157, 1
      %p161 = scmp.eq.s32.totalorder %s18, 1
      %p162 = scmp.ne.s32.totalorder %s157, %s159
      %p163 = scmp.eq.s32.totalorder %s18, 0
      %p164 = por %p162, %p163
      %p165 = scmp.ne.s32.totalorder %s157, %s159
      %p166 = scmp.eq.s32.totalorder %s23, 1
      %p167 = por %p165, %p166
      %p168 = scmp.ne.s32.totalorder %s159, %s160
      %p169 = scmp.eq.s32.totalorder %s23, 0
      %p170 = por %p168, %p169
      %p171 = scmp.ne.s32.totalorder %s159, %s160
      %p172 = scmp.eq.s32.totalorder %s24, 1
      %p173 = por %p171, %p172
      %p175 = scmp.ne.s32.totalorder %s160, %s174
      %p176 = scmp.eq.s32.totalorder %s24, 0
      %p177 = por %p175, %p176
      %s178 = ssub.s32 %s18, %s25
      %p179 = scmp.eq.s32.totalorder %s178, 0
      %s181 = sadd.s32 %s180, 1
      %s182 = scalar_select %p179, %s180, %s181
      %p185 = pneg %p179
      %p186 = scmp.eq.s32.totalorder %s18, 1
      %p187 = por %p185, %p186
      %p188 = scmp.ne.s32.totalorder %s180, %s183
      %p189 = scmp.eq.s32.totalorder %s18, 0
      %p190 = por %p188, %p189
      %p191 = scmp.ne.s32.totalorder %s180, %s183
      %p192 = scmp.eq.s32.totalorder %s23, 1
      %p193 = por %p191, %p192
      %p194 = scmp.ne.s32.totalorder %s183, %s184
      %p195 = scmp.eq.s32.totalorder %s23, 0
      %p196 = por %p194, %p195
      %p197 = scmp.ne.s32.totalorder %s183, %s184
      %p198 = scmp.eq.s32.totalorder %s24, 1
      %p199 = por %p197, %p198
      %p201 = scmp.ne.s32.totalorder %s184, %s200
      %p202 = scmp.eq.s32.totalorder %s24, 0
      %p203 = por %p201, %p202
      %p204 = scmp.le.s32.totalorder 1, %s18
      %p205 = scmp.lt.s32.totalorder %s18, 3
      %p206 = pnand %p204, %p205
      %p207 = pneg %p206
      // Predicated region
      $region9: #{_lambda_.1} parent=5 // pred_check
        _
      $region10: #{_lambda_.1} parent=5 // pred_check_branch
        %209 = sbr.rel (%p206) target = $region12
      $region11: #{_lambda_.1} parent=5 // pred_region
        %s210 = ssub.s32 %s18, 1
        // Predicated region
        $region13: #{_lambda_.1} parent=11 // pred_check
          %p211 = pneg %p65
        $region14: #{_lambda_.1} parent=11 // pred_check_branch
          %213 = sbr.rel (%p211) target = $region16
        $region15: #{_lambda_.1} parent=11 // pred_region
          %s215 = ssub.s32 256, 256
          %216 = vsyncadd [#allocation6], %s215
          %s217 = sshll.u32 [#allocation5], 4
          %s218 = int_to_ptr.vmem [resolvable:$true] %s217
          %223 = dma.hbm_to_vmem [thread:$0]  %s1, 256, %s218, [#allocation6], 64, 64, 4
        $region16: #{_lambda_.1} parent=11 // pred_fallthru
          _
        // Predicated region
        $region17: #{_lambda_.1} parent=11 // pred_check
          %p224 = pneg %p86
        $region18: #{_lambda_.1} parent=11 // pred_check_branch
          %226 = sbr.rel (%p224) target = $region20
        $region19: #{_lambda_.1} parent=11 // pred_region
          _
        $region20: #{_lambda_.1} parent=11 // pred_fallthru
          _
        // Predicated region
        $region21: #{_lambda_.1} parent=11 // pred_check
          %p227 = pneg %p107
        $region22: #{_lambda_.1} parent=11 // pred_check_branch
          %229 = sbr.rel (%p227) target = $region24
        $region23: #{_lambda_.1} parent=11 // pred_region
          %s231 = ssub.s32 2048, 2048
          %232 = vsyncadd [#allocation6], %s231
          %s233 = sshll.u32 [#allocation7], 4
          %s234 = int_to_ptr.vmem [resolvable:$true] %s233
          %239 = dma.hbm_to_vmem [thread:$0]  %s3, 2048, %s234, [#allocation6], 256, 256, 16
        $region24: #{_lambda_.1} parent=11 // pred_fallthru
          _
        // Predicated region
        $region25: #{_lambda_.1} parent=11 // pred_check
          %p240 = pneg %p128
        $region26: #{_lambda_.1} parent=11 // pred_check_branch
          %242 = sbr.rel (%p240) target = $region28
        $region27: #{_lambda_.1} parent=11 // pred_region
          %s244 = ssub.s32 64, 64
          %245 = vsyncadd [#allocation9], %s244
          %s247 = sshll.u32 [#allocation8], 4
          %s248 = int_to_ptr.vmem [resolvable:$true] %s247
          %250 = dma.hbm_to_vmem [thread:$0]  %s4, 64, %s248, [#allocation9]
        $region28: #{_lambda_.1} parent=11 // pred_fallthru
          _
        // Predicated region
        $region29: #{_lambda_.1} parent=11 // pred_check
          %p251 = pneg %p149
        $region30: #{_lambda_.1} parent=11 // pred_check_branch
          %253 = sbr.rel (%p251) target = $region32
        $region31: #{_lambda_.1} parent=11 // pred_region
          %s255 = ssub.s32 30720, 30720
          %256 = vsyncadd [#allocation9], %s255
          %s257 = sshll.u32 [#allocation10], 4
          %s258 = int_to_ptr.vmem [resolvable:$true] %s257
          %263 = dma.hbm_to_vmem [thread:$0]  %s5, 30720, %s258, [#allocation9], 128, 128, 8
        $region32: #{_lambda_.1} parent=11 // pred_fallthru
          _
        // Predicated region
        $region33: #{_lambda_.1} parent=11 // pred_check
          %p264 = pneg %p170
        $region34: #{_lambda_.1} parent=11 // pred_check_branch
          %266 = sbr.rel (%p264) target = $region36
        $region35: #{_lambda_.1} parent=11 // pred_region
          _
        $region36: #{_lambda_.1} parent=11 // pred_fallthru
          _
      $region12: #{_lambda_.1} parent=5 // pred_fallthru
        _
      %p267 = scmp.lt.s32.totalorder %s18, 2
      // Predicated region
      $region37: #{_lambda_.1} parent=5 // pred_check
        %p268 = pneg %p267
      $region38: #{_lambda_.1} parent=5 // pred_check_branch
        %270 = sbr.rel (%p268) target = $region40
      $region39: #{_lambda_.1} parent=5 // pred_region
        // Predicated region
        $region41: #{_lambda_.1} parent=39 // pred_check
          %p271 = pneg %p38
        $region42: #{_lambda_.1} parent=39 // pred_check_branch
          %273 = sbr.rel (%p271) target = $region44
        $region43: #{_lambda_.1} parent=39 // pred_region
          %s274 = sand.u32 %s28, 1
          %s275 = scalar_lea.sflag [#allocation4], %s274
          %s276 = sand.u32 %s28, 1
          %s277 = scalar_lea.vmem [#allocation3], %s276
          %s279 = ssub.s32 16, 16
          %280 = vsyncadd %s275, %s279
          %s281 = smul.addr %s18, 16
          %s282 = scalar_lea.hbm %s0, %s281
          %s284 = sshll.u32 %s277, 4
          %s285 = int_to_ptr.vmem [resolvable:$true] %s284
          %287 = dma.hbm_to_vmem [thread:$0]  %s282, 16, %s285, %s275
        $region44: #{_lambda_.1} parent=39 // pred_fallthru
          _
      $region40: #{_lambda_.1} parent=5 // pred_fallthru
        _
      %p288 = scmp.le.s32.totalorder 1, %s18
      %p289 = scmp.lt.s32.totalorder %s18, 3
      %p290 = pnand %p288, %p289
      %p291 = pneg %p290
      // Predicated region
      $region45: #{_lambda_.1} parent=5 // pred_check
        _
      $region46: #{_lambda_.1} parent=5 // pred_check_branch
        %293 = sbr.rel (%p290) target = $region48
      $region47: #{_lambda_.1} parent=5 // pred_region
        %s294 = ssub.s32 %s18, 1
        %s295 = sand.u32 %s31, 1
        %s296 = scalar_lea.sflag [#allocation4], %s295
        %s297 = sand.u32 %s31, 1
        %s298 = scalar_lea.vmem [#allocation3], %s297
        // Predicated region
        $region49: #{_lambda_.1} parent=47 // pred_check
          %p299 = pneg %p44
        $region50: #{_lambda_.1} parent=47 // pred_check_branch
          %301 = sbr.rel (%p299) target = $region52
        $region51: #{_lambda_.1} parent=47 // pred_region
          %302 = dma.done %s296, 16
        $region52: #{_lambda_.1} parent=47 // pred_fallthru
          _
        // Predicated region
        $region53: #{_lambda_.1} parent=47 // pred_check
          %p303 = pneg %p65
        $region54: #{_lambda_.1} parent=47 // pred_check_branch
          %305 = sbr.rel (%p303) target = $region56
        $region55: #{_lambda_.1} parent=47 // pred_region
          %306 = dma.done [#allocation6], 256
        $region56: #{_lambda_.1} parent=47 // pred_fallthru
          _
        // Predicated region
        $region57: #{_lambda_.1} parent=47 // pred_check
          %p307 = pneg %p107
        $region58: #{_lambda_.1} parent=47 // pred_check_branch
          %309 = sbr.rel (%p307) target = $region60
        $region59: #{_lambda_.1} parent=47 // pred_region
          %310 = dma.done [#allocation6], 2048
        $region60: #{_lambda_.1} parent=47 // pred_fallthru
          _
        // Predicated region
        $region61: #{_lambda_.1} parent=47 // pred_check
          %p311 = pneg %p128
        $region62: #{_lambda_.1} parent=47 // pred_check_branch
          %313 = sbr.rel (%p311) target = $region64
        $region63: #{_lambda_.1} parent=47 // pred_region
          %314 = dma.done [#allocation9], 64
        $region64: #{_lambda_.1} parent=47 // pred_fallthru
          _
        // Predicated region
        $region65: #{_lambda_.1} parent=47 // pred_check
          %p315 = pneg %p149
        $region66: #{_lambda_.1} parent=47 // pred_check_branch
          %317 = sbr.rel (%p315) target = $region68
        $region67: #{_lambda_.1} parent=47 // pred_region
          %318 = dma.done [#allocation9], 30720
        $region68: #{_lambda_.1} parent=47 // pred_fallthru
          _
        %s319 = sand.u32 %s31, 1
        %s320 = scalar_lea.sflag [#allocation4], %s319
        %s321 = sand.u32 %s31, 1
        %s322 = scalar_lea.vmem [#allocation3], %s321
        %p323 = pneg %p44
        %p324 = pneg %p41
        %p325 = pneg %p65
        %p326 = pneg %p62
        %p327 = pneg %p86
        %p328 = pneg %p83
        %p329 = pneg %p107
        %p330 = pneg %p104
        %p331 = pneg %p128
        %p332 = pneg %p125
        %p333 = pneg %p149
        %p334 = pneg %p146
        %p335 = pneg %p170
        %p336 = pneg %p167
        %p337 = pneg %p196
        %p338 = pneg %p193
        %p339 = scmp.lt.s32.totalorder %s23, 1
        %s340 = scalar_select %p339, %s23, 1
        %s341 = smul.addr %s340, 16
        %s342 = smul.addr %s341, 8
        %s343 = scalar_lea.vmem %s7, %s342
        %p344 = scmp.lt.s32.totalorder %s23, 1
        %s345 = scalar_select %p344, %s23, 1
        %s346 = smul.addr %s345, 16
        %s347 = smul.addr %s346, 8
        %s348 = scalar_lea.vmem %s7, %s347
        %350 = vst [vmem:[#allocation2] sm:$0xf] 0
        %351 = vst [vmem:[#allocation2 + $0x4] sm:$0xf] 0
        %352 = vst [vmem:[#allocation2 + $0x8] sm:$0xf] 0
        %353 = vst [vmem:[#allocation2 + $0xc] sm:$0xf] 0
        %354 = vst [vmem:[#allocation2 + $0x10] sm:$0xf] 0
        %355 = vst [vmem:[#allocation2 + $0x14] sm:$0xf] 0
        %356 = vst [vmem:[#allocation2 + $0x18] sm:$0xf] 0
        %357 = vst [vmem:[#allocation2 + $0x1c] sm:$0xf] 0
        %358 = vst [vmem:[#allocation2 + $0x20] sm:$0x1] 0
        %v359 = vld [vmem:[%s298] sm:$0x1]
        %v360 = vpack.c.bf16 %v359, %v359
        %v361 = vld [vmem:[#allocation5] sm:$0xf]
        %v362 = vld [vmem:[#allocation5 + $0x4] sm:$0xf]
        %v363 = vld [vmem:[#allocation5 + $0x8] sm:$0xf]
        %v364 = vld [vmem:[#allocation5 + $0xc] sm:$0xf]
        %v365 = vld [vmem:[%s2] sm:$0x1]
        %v370 = vunpack.c.l.b16 %v361
        %v371 = vunpack.c.l.b16 %v362
        %v372 = vunpack.c.l.b16 %v363
        %v373 = vunpack.c.l.b16 %v364
        %v374 = vpack.c.b16 %v371, %v370
        %v375 = vpack.c.b16 %v373, %v372
        %vm378 = vcmask 261120
        %v380 = vsel %vm378, %v360, 0
        %382 = vmatprep.subr.bf16.mxu0 0
        %383 = vmatpush1.bf16.msra.mxu0 0
        %384 = vmatprep.subr.bf16.mxu0 0
        %385 = vmatpush1.bf16.msra.mxu0 0
        %386 = vmatprep.subr.bf16.mxu0 0
        %387 = vmatpush1.bf16.msra.mxu0 0
        %388 = vmatprep.subr.bf16.mxu0 0
        %389 = vmatpush1.bf16.msra.mxu0 0
        %390 = vmatprep.subr.bf16.mxu0 0
        %391 = vmatpush1.bf16.msra.mxu0 0
        %392 = vmatprep.subr.bf16.mxu0 0
        %393 = vmatpush1.bf16.msra.mxu0 0
        %394 = vmatprep.subr.bf16.mxu0 0
        %395 = vmatpush1.bf16.msra.mxu0 %v375
        %396 = vmatprep.subr.bf16.mxu0 0
        %397 = vmatpush1.bf16.msra.mxu0 %v374
        %398 = vmatprep.subr.bf16.mxu0 0
        %399 = vmatpush2.bf16.msra.mxu0 0
        %400 = vmatprep.subr.bf16.mxu0 0
        %401 = vmatpush2.bf16.msra.mxu0 0
        %402 = vmatprep.subr.bf16.mxu0 0
        %403 = vmatpush2.bf16.msra.mxu0 0
        %404 = vmatprep.subr.bf16.mxu0 0
        %405 = vmatpush2.bf16.msra.mxu0 0
        %406 = vmatprep.subr.bf16.mxu0 0
        %407 = vmatpush2.bf16.msra.mxu0 0
        %408 = vmatprep.subr.bf16.mxu0 0
        %409 = vmatpush2.bf16.msra.mxu0 0
        %410 = vmatprep.subr.bf16.mxu0 0
        %411 = vmatpush2.bf16.msra.mxu0 0
        %412 = vmatprep.subr.bf16.mxu0 0
        %413 = vmatpush2.bf16.msra.mxu0 0
        %414 = vmatprep.mubr.bf16.mxu0 0
        %415 = vmatmul.mubr.bf16.gmra.mxu0 %v380
        %v416 = vpop.f32.mrf.mxu0
        %v417 = vadd.f32 %v365, %v416
        %v418 = vpop.f32.mrf.mxu0
        %v419 = vpop.f32.mrf.mxu0
        %v420 = vpop.f32.mrf.mxu0
        %421 = vdwg.mxu0
        %v422 = vmax.f32 %v417, 0.0
        %v423 = vpack.c.bf16 %v422, %v422
        %v424 = vld [vmem:[#allocation7] sm:$0xff]
        %v425 = vld [vmem:[#allocation7 + $0x8] sm:$0xff]
        %v426 = vld [vmem:[#allocation7 + $0x10] sm:$0xff]
        %v427 = vld [vmem:[#allocation7 + $0x18] sm:$0xff]
        %v428 = vld [vmem:[#allocation7 + $0x20] sm:$0xff]
        %v429 = vld [vmem:[#allocation7 + $0x28] sm:$0xff]
        %v430 = vld [vmem:[#allocation7 + $0x30] sm:$0xff]
        %v431 = vld [vmem:[#allocation7 + $0x38] sm:$0xff]
        %v432 = vld [vmem:[#allocation7 + $0x40] sm:$0xff]
        %v433 = vld [vmem:[#allocation7 + $0x48] sm:$0xff]
        %v434 = vld [vmem:[#allocation7 + $0x50] sm:$0xff]
        %v435 = vld [vmem:[#allocation7 + $0x58] sm:$0xff]
        %v436 = vld [vmem:[#allocation7 + $0x60] sm:$0xff]
        %v437 = vld [vmem:[#allocation7 + $0x68] sm:$0xff]
        %v438 = vld [vmem:[#allocation7 + $0x70] sm:$0xff]
        %v439 = vld [vmem:[#allocation7 + $0x78] sm:$0xff]
        %v440 = vld [vmem:[#allocation8] sm:$0xf]
        %v457 = vunpack.c.l.b16 %v424
        %v458 = vunpack.c.h.b16 %v424
        %v459 = vunpack.c.l.b16 %v425
        %v460 = vunpack.c.h.b16 %v425
        %v461 = vunpack.c.l.b16 %v426
        %v462 = vunpack.c.h.b16 %v426
        %v463 = vunpack.c.l.b16 %v427
        %v464 = vunpack.c.h.b16 %v427
        %v465 = vunpack.c.l.b16 %v428
        %v466 = vunpack.c.h.b16 %v428
        %v467 = vunpack.c.l.b16 %v429
        %v468 = vunpack.c.h.b16 %v429
        %v469 = vunpack.c.l.b16 %v430
        %v470 = vunpack.c.h.b16 %v430
        %v471 = vunpack.c.l.b16 %v431
        %v472 = vunpack.c.h.b16 %v431
        %v473 = vunpack.c.l.b16 %v432
        %v474 = vunpack.c.h.b16 %v432
        %v475 = vunpack.c.l.b16 %v433
        %v476 = vunpack.c.h.b16 %v433
        %v477 = vunpack.c.l.b16 %v434
        %v478 = vunpack.c.h.b16 %v434
        %v479 = vunpack.c.l.b16 %v435
        %v480 = vunpack.c.h.b16 %v435
        %v481 = vunpack.c.l.b16 %v436
        %v482 = vunpack.c.h.b16 %v436
        %v483 = vunpack.c.l.b16 %v437
        %v484 = vunpack.c.h.b16 %v437
        %v485 = vunpack.c.l.b16 %v438
        %v486 = vunpack.c.h.b16 %v438
        %v487 = vunpack.c.l.b16 %v439
        %v488 = vunpack.c.h.b16 %v439
        %v489 = vpack.c.b16 %v461, %v457
        %v490 = vpack.c.b16 %v462, %v458
        %v491 = vpack.c.b16 %v463, %v459
        %v492 = vpack.c.b16 %v464, %v460
        %v493 = vpack.c.b16 %v469, %v465
        %v494 = vpack.c.b16 %v470, %v466
        %v495 = vpack.c.b16 %v471, %v467
        %v496 = vpack.c.b16 %v472, %v468
        %v497 = vpack.c.b16 %v477, %v473
        %v498 = vpack.c.b16 %v478, %v474
        %v499 = vpack.c.b16 %v479, %v475
        %v500 = vpack.c.b16 %v480, %v476
        %v501 = vpack.c.b16 %v485, %v481
        %v502 = vpack.c.b16 %v486, %v482
        %v503 = vpack.c.b16 %v487, %v483
        %v504 = vpack.c.b16 %v488, %v484
        %v522 = vlaneseq
        %v523 = vshrl.u32 %v522, 7
        %v524 = vsub.s32 0, %v523
        %v525 = vrot.slane %v440, %v524
        %v526 = vlaneseq
        %v527 = vshrl.u32 %v526, 7
        %v528 = vsub.s32 1, %v527
        %v529 = vrot.slane %v440, %v528
        %v530 = vlaneseq
        %v531 = vshrl.u32 %v530, 7
        %v532 = vsub.s32 2, %v531
        %v533 = vrot.slane %v440, %v532
        %v534 = vlaneseq
        %v535 = vshrl.u32 %v534, 7
        %v536 = vsub.s32 3, %v535
        %v537 = vrot.slane %v440, %v536
        %vm542 = vcmask 523264
        %v544 = vsel %vm542, %v423, 0
        %546 = vmatprep.subr.bf16.mxu0 0
        %547 = vmatpush1.bf16.msra.mxu0 0
        %548 = vmatprep.subr.bf16.mxu0 0
        %549 = vmatpush1.bf16.msra.mxu0 0
        %550 = vmatprep.subr.bf16.mxu0 0
        %551 = vmatpush1.bf16.msra.mxu0 0
        %552 = vmatprep.subr.bf16.mxu0 0
        %553 = vmatpush1.bf16.msra.mxu0 0
        %554 = vmatprep.subr.bf16.mxu0 %v502
        %555 = vmatpush1.bf16.msra.mxu0 %v501
        %556 = vmatprep.subr.bf16.mxu0 %v498
        %557 = vmatpush1.bf16.msra.mxu0 %v497
        %558 = vmatprep.subr.bf16.mxu0 %v494
        %559 = vmatpush1.bf16.msra.mxu0 %v493
        %560 = vmatprep.subr.bf16.mxu0 %v490
        %561 = vmatpush1.bf16.msra.mxu0 %v489
        %562 = vmatprep.subr.bf16.mxu0 0
        %563 = vmatpush2.bf16.msra.mxu0 0
        %564 = vmatprep.subr.bf16.mxu0 0
        %565 = vmatpush2.bf16.msra.mxu0 0
        %566 = vmatprep.subr.bf16.mxu0 0
        %567 = vmatpush2.bf16.msra.mxu0 0
        %568 = vmatprep.subr.bf16.mxu0 0
        %569 = vmatpush2.bf16.msra.mxu0 0
        %570 = vmatprep.subr.bf16.mxu0 0
        %571 = vmatpush2.bf16.msra.mxu0 0
        %572 = vmatprep.subr.bf16.mxu0 0
        %573 = vmatpush2.bf16.msra.mxu0 0
        %574 = vmatprep.subr.bf16.mxu0 0
        %575 = vmatpush2.bf16.msra.mxu0 0
        %576 = vmatprep.subr.bf16.mxu0 0
        %577 = vmatpush2.bf16.msra.mxu0 0
        %578 = vmatprep.mubr.bf16.mxu0 0
        %579 = vmatmul.mubr.bf16.gmra.mxu0 %v544
        %v580 = vpop.f32.mrf.mxu0
        %v581 = vadd.f32 %v525, %v580
        %v582 = vpop.f32.mrf.mxu0
        %v583 = vadd.f32 %v529, %v582
        %v584 = vpop.f32.mrf.mxu0
        %v585 = vpop.f32.mrf.mxu0
        %586 = vdwg.mxu0
        %587 = vmatprep.subr.bf16.mxu0 0
        %588 = vmatpush1.bf16.msra.mxu0 0
        %589 = vmatprep.subr.bf16.mxu0 0
        %590 = vmatpush1.bf16.msra.mxu0 0
        %591 = vmatprep.subr.bf16.mxu0 0
        %592 = vmatpush1.bf16.msra.mxu0 0
        %593 = vmatprep.subr.bf16.mxu0 0
        %594 = vmatpush1.bf16.msra.mxu0 0
        %595 = vmatprep.subr.bf16.mxu0 %v504
        %596 = vmatpush1.bf16.msra.mxu0 %v503
        %597 = vmatprep.subr.bf16.mxu0 %v500
        %598 = vmatpush1.bf16.msra.mxu0 %v499
        %599 = vmatprep.subr.bf16.mxu0 %v496
        %600 = vmatpush1.bf16.msra.mxu0 %v495
        %601 = vmatprep.subr.bf16.mxu0 %v492
        %602 = vmatpush1.bf16.msra.mxu0 %v491
        %603 = vmatprep.subr.bf16.mxu0 0
        %604 = vmatpush2.bf16.msra.mxu0 0
        %605 = vmatprep.subr.bf16.mxu0 0
        %606 = vmatpush2.bf16.msra.mxu0 0
        %607 = vmatprep.subr.bf16.mxu0 0
        %608 = vmatpush2.bf16.msra.mxu0 0
        %609 = vmatprep.subr.bf16.mxu0 0
        %610 = vmatpush2.bf16.msra.mxu0 0
        %611 = vmatprep.subr.bf16.mxu0 0
        %612 = vmatpush2.bf16.msra.mxu0 0
        %613 = vmatprep.subr.bf16.mxu0 0
        %614 = vmatpush2.bf16.msra.mxu0 0
        %615 = vmatprep.subr.bf16.mxu0 0
        %616 = vmatpush2.bf16.msra.mxu0 0
        %617 = vmatprep.subr.bf16.mxu0 0
        %618 = vmatpush2.bf16.msra.mxu0 0
        %619 = vmatprep.mubr.bf16.mxu0 0
        %620 = vmatmul.mubr.bf16.gmra.mxu0 %v544
        %v621 = vpop.f32.mrf.mxu0
        %v622 = vadd.f32 %v533, %v621
        %v623 = vpop.f32.mrf.mxu0
        %v624 = vadd.f32 %v537, %v623
        %v625 = vpop.f32.mrf.mxu0
        %v626 = vpop.f32.mrf.mxu0
        %627 = vdwg.mxu0
        %v628 = vmax.f32 %v581, 0.0
        %v629 = vmax.f32 %v583, 0.0
        %v630 = vmax.f32 %v622, 0.0
        %v631 = vmax.f32 %v624, 0.0
        %v632 = vpack.c.bf16 %v628, %v628
        %v633 = vpack.c.bf16 %v629, %v629
        %v634 = vpack.c.bf16 %v630, %v630
        %v635 = vpack.c.bf16 %v631, %v631
        %v637 = vunpack.c.l.b16 %v632
        %v638 = vpack.c.b16 %v637, %v637
        %v640 = vshll.u32 %v638, 16
        %vm643 = vcmask 1040384
        %vm644 = vsmask.f32 7938
        %vm645 = vmand %vm643, %vm644
        %v646 = vld [vmem:[#allocation2] sm:$0x1]
        %v647 = vsel %vm645, %v640, %v646
        %648 = vst [vmem:[#allocation2] sm:$0x1] %v647
        %v650 = vunpack.c.l.b16 %v633
        %v651 = vpack.c.b16 %v650, %v650
        %v652 = vrot.slane %v651, 7
        %vm654 = vcmask 1041409
        %vm655 = vsmask.f32 1280
        %vm656 = vmand %vm654, %vm655
        %v657 = vld [vmem:[#allocation2] sm:$0x2]
        %v658 = vsel %vm656, %v652, %v657
        %659 = vst [vmem:[#allocation2] sm:$0x2] %v658
        %v661 = vunpack.c.l.b16 %v634
        %v662 = vpack.c.b16 %v661, %v661
        %v664 = vshll.u32 %v662, 16
        %v666 = vrot.slane %v664, 7
        %vm668 = vsmask.f32 7942
        %vm669 = vmand %vm654, %vm668
        %v670 = vld [vmem:[#allocation2] sm:$0x2]
        %v671 = vsel %vm669, %v666, %v670
        %672 = vst [vmem:[#allocation2] sm:$0x2] %v671
        %v674 = vunpack.c.l.b16 %v635
        %v675 = vpack.c.b16 %v674, %v674
        %v676 = vrot.slane %v675, 6
        %vm678 = vcmask 1042434
        %vm679 = vsmask.f32 2304
        %vm680 = vmand %vm678, %vm679
        %v681 = vld [vmem:[#allocation2] sm:$0x4]
        %v682 = vsel %vm680, %v676, %v681
        %683 = vst [vmem:[#allocation2] sm:$0x4] %v682
        %v684 = vld [vmem:[#allocation2] sm:$0x3]
        %v685 = vld [vmem:[#allocation2] sm:$0x7]
        %v686 = vld [vmem:[#allocation2] sm:$0x6]
        %v687 = vld [vmem:[#allocation10] sm:$0xff]
        %v688 = vld [vmem:[#allocation10 + $0x8] sm:$0xff]
        %v689 = vld [vmem:[#allocation10 + $0x10] sm:$0xff]
        %v690 = vld [vmem:[#allocation10 + $0x18] sm:$0xff]
        %v691 = vld [vmem:[#allocation10 + $0x20] sm:$0xff]
        %v692 = vld [vmem:[#allocation10 + $0x28] sm:$0xff]
        %v693 = vld [vmem:[#allocation10 + $0x30] sm:$0xff]
        %v694 = vld [vmem:[#allocation10 + $0x38] sm:$0xff]
        %v695 = vld [vmem:[#allocation10 + $0x40] sm:$0xff]
        %v696 = vld [vmem:[#allocation10 + $0x48] sm:$0xff]
        %v697 = vld [vmem:[#allocation10 + $0x50] sm:$0xff]
        %v698 = vld [vmem:[#allocation10 + $0x58] sm:$0xff]
        %v699 = vld [vmem:[#allocation10 + $0x60] sm:$0xff]
        %v700 = vld [vmem:[#allocation10 + $0x68] sm:$0xff]
        %v701 = vld [vmem:[#allocation10 + $0x70] sm:$0xff]
        %v702 = vld [vmem:[#allocation10 + $0x78] sm:$0xff]
        %s703 = scalar_lea.vmem [#allocation10], 128
        %v704 = vld [vmem:[%s703] sm:$0xff]
        %v705 = vld [vmem:[%s703 + $0x8] sm:$0xff]
        %v706 = vld [vmem:[%s703 + $0x10] sm:$0xff]
        %v707 = vld [vmem:[%s703 + $0x18] sm:$0xff]
        %v708 = vld [vmem:[%s703 + $0x20] sm:$0xff]
        %v709 = vld [vmem:[%s703 + $0x28] sm:$0xff]
        %v710 = vld [vmem:[%s703 + $0x30] sm:$0xff]
        %v711 = vld [vmem:[%s703 + $0x38] sm:$0xff]
        %v712 = vld [vmem:[%s703 + $0x40] sm:$0xff]
        %v713 = vld [vmem:[%s703 + $0x48] sm:$0xff]
        %v714 = vld [vmem:[%s703 + $0x50] sm:$0xff]
        %v715 = vld [vmem:[%s703 + $0x58] sm:$0xff]
        %v716 = vld [vmem:[%s703 + $0x60] sm:$0xff]
        %v717 = vld [vmem:[%s703 + $0x68] sm:$0xff]
        %v718 = vld [vmem:[%s703 + $0x70] sm:$0xff]
        %v719 = vld [vmem:[%s703 + $0x78] sm:$0xff]
        %v721 = vunpack.c.l.b16 %v685
        %v722 = vpack.c.b16 %v721, %v721
        %v724 = vshrl.u32 %v722, 16
        %v726 = vshll.u32 %v722, 16
        %v728 = vrot.slane %v726, 1
        %v729 = vor.u32 %v724, %v728
        %v747 = vunpack.c.l.b16 %v704
        %v748 = vunpack.c.h.b16 %v704
        %v749 = vunpack.c.l.b16 %v705
        %v750 = vunpack.c.h.b16 %v705
        %v751 = vunpack.c.l.b16 %v706
        %v752 = vunpack.c.h.b16 %v706
        %v753 = vunpack.c.l.b16 %v707
        %v754 = vunpack.c.h.b16 %v707
        %v755 = vunpack.c.l.b16 %v708
        %v756 = vunpack.c.h.b16 %v708
        %v757 = vunpack.c.l.b16 %v709
        %v758 = vunpack.c.h.b16 %v709
        %v759 = vunpack.c.l.b16 %v710
        %v760 = vunpack.c.h.b16 %v710
        %v761 = vunpack.c.l.b16 %v711
        %v762 = vunpack.c.h.b16 %v711
        %v763 = vunpack.c.l.b16 %v712
        %v764 = vunpack.c.h.b16 %v712
        %v765 = vunpack.c.l.b16 %v713
        %v766 = vunpack.c.h.b16 %v713
        %v767 = vunpack.c.l.b16 %v714
        %v768 = vunpack.c.h.b16 %v714
        %v769 = vunpack.c.l.b16 %v715
        %v770 = vunpack.c.h.b16 %v715
        %v771 = vunpack.c.l.b16 %v716
        %v772 = vunpack.c.h.b16 %v716
        %v773 = vunpack.c.l.b16 %v717
        %v774 = vunpack.c.h.b16 %v717
        %v775 = vunpack.c.l.b16 %v718
        %v776 = vunpack.c.h.b16 %v718
        %v777 = vunpack.c.l.b16 %v719
        %v778 = vunpack.c.h.b16 %v719
        %v779 = vpack.c.b16 %v749, %v747
        %v780 = vpack.c.b16 %v750, %v748
        %v781 = vpack.c.b16 %v753, %v751
        %v782 = vpack.c.b16 %v754, %v752
        %v783 = vpack.c.b16 %v757, %v755
        %v784 = vpack.c.b16 %v758, %v756
        %v785 = vpack.c.b16 %v761, %v759
        %v786 = vpack.c.b16 %v762, %v760
        %v787 = vpack.c.b16 %v765, %v763
        %v788 = vpack.c.b16 %v766, %v764
        %v789 = vpack.c.b16 %v769, %v767
        %v790 = vpack.c.b16 %v770, %v768
        %v791 = vpack.c.b16 %v773, %v771
        %v792 = vpack.c.b16 %v774, %v772
        %v793 = vpack.c.b16 %v777, %v775
        %v794 = vpack.c.b16 %v778, %v776
        %811 = vmatprep.subr.bf16.mxu0 %v794
        %812 = vmatpush1.bf16.msra.mxu0 %v793
        %813 = vmatprep.subr.bf16.mxu0 %v792
        %814 = vmatpush1.bf16.msra.mxu0 %v791
        %815 = vmatprep.subr.bf16.mxu0 %v790
        %816 = vmatpush1.bf16.msra.mxu0 %v789
        %817 = vmatprep.subr.bf16.mxu0 %v788
        %818 = vmatpush1.bf16.msra.mxu0 %v787
        %819 = vmatprep.subr.bf16.mxu0 %v786
        %820 = vmatpush1.bf16.msra.mxu0 %v785
        %821 = vmatprep.subr.bf16.mxu0 %v784
        %822 = vmatpush1.bf16.msra.mxu0 %v783
        %823 = vmatprep.subr.bf16.mxu0 %v782
        %824 = vmatpush1.bf16.msra.mxu0 %v781
        %825 = vmatprep.subr.bf16.mxu0 %v780
        %826 = vmatpush1.bf16.msra.mxu0 %v779
        %827 = vmatprep.subr.bf16.mxu0 0
        %828 = vmatpush2.bf16.msra.mxu0 0
        %829 = vmatprep.subr.bf16.mxu0 0
        %830 = vmatpush2.bf16.msra.mxu0 0
        %831 = vmatprep.subr.bf16.mxu0 0
        %832 = vmatpush2.bf16.msra.mxu0 0
        %833 = vmatprep.subr.bf16.mxu0 0
        %834 = vmatpush2.bf16.msra.mxu0 0
        %835 = vmatprep.subr.bf16.mxu0 0
        %836 = vmatpush2.bf16.msra.mxu0 0
        %837 = vmatprep.subr.bf16.mxu0 0
        %838 = vmatpush2.bf16.msra.mxu0 0
        %839 = vmatprep.subr.bf16.mxu0 0
        %840 = vmatpush2.bf16.msra.mxu0 0
        %841 = vmatprep.subr.bf16.mxu0 0
        %842 = vmatpush2.bf16.msra.mxu0 0
        %843 = vmatprep.mubr.bf16.mxu0 0
        %844 = vmatmul.mubr.bf16.gmra.mxu0 %v729
        %v845 = vpop.f32.mrf.mxu0
        %v846 = vadd.f32 0.0, %v845
        %v847 = vpop.f32.mrf.mxu0
        %v848 = vadd.f32 0.0, %v847
        %v849 = vpop.f32.mrf.mxu0
        %v850 = vpop.f32.mrf.mxu0
        %851 = vdwg.mxu0
        %v868 = vunpack.c.l.b16 %v687
        %v869 = vunpack.c.h.b16 %v687
        %v870 = vunpack.c.l.b16 %v688
        %v871 = vunpack.c.h.b16 %v688
        %v872 = vunpack.c.l.b16 %v689
        %v873 = vunpack.c.h.b16 %v689
        %v874 = vunpack.c.l.b16 %v690
        %v875 = vunpack.c.h.b16 %v690
        %v876 = vunpack.c.l.b16 %v691
        %v877 = vunpack.c.h.b16 %v691
        %v878 = vunpack.c.l.b16 %v692
        %v879 = vunpack.c.h.b16 %v692
        %v880 = vunpack.c.l.b16 %v693
        %v881 = vunpack.c.h.b16 %v693
        %v882 = vunpack.c.l.b16 %v694
        %v883 = vunpack.c.h.b16 %v694
        %v884 = vunpack.c.l.b16 %v695
        %v885 = vunpack.c.h.b16 %v695
        %v886 = vunpack.c.l.b16 %v696
        %v887 = vunpack.c.h.b16 %v696
        %v888 = vunpack.c.l.b16 %v697
        %v889 = vunpack.c.h.b16 %v697
        %v890 = vunpack.c.l.b16 %v698
        %v891 = vunpack.c.h.b16 %v698
        %v892 = vunpack.c.l.b16 %v699
        %v893 = vunpack.c.h.b16 %v699
        %v894 = vunpack.c.l.b16 %v700
        %v895 = vunpack.c.h.b16 %v700
        %v896 = vunpack.c.l.b16 %v701
        %v897 = vunpack.c.h.b16 %v701
        %v898 = vunpack.c.l.b16 %v702
        %v899 = vunpack.c.h.b16 %v702
        %v900 = vpack.c.b16 %v870, %v868
        %v901 = vpack.c.b16 %v871, %v869
        %v902 = vpack.c.b16 %v874, %v872
        %v903 = vpack.c.b16 %v875, %v873
        %v904 = vpack.c.b16 %v878, %v876
        %v905 = vpack.c.b16 %v879, %v877
        %v906 = vpack.c.b16 %v882, %v880
        %v907 = vpack.c.b16 %v883, %v881
        %v908 = vpack.c.b16 %v886, %v884
        %v909 = vpack.c.b16 %v887, %v885
        %v910 = vpack.c.b16 %v890, %v888
        %v911 = vpack.c.b16 %v891, %v889
        %v912 = vpack.c.b16 %v894, %v892
        %v913 = vpack.c.b16 %v895, %v893
        %v914 = vpack.c.b16 %v898, %v896
        %v915 = vpack.c.b16 %v899, %v897
        %932 = vmatprep.subr.bf16.mxu0 %v915
        %933 = vmatpush1.bf16.msra.mxu0 %v914
        %934 = vmatprep.subr.bf16.mxu0 %v913
        %935 = vmatpush1.bf16.msra.mxu0 %v912
        %936 = vmatprep.subr.bf16.mxu0 %v911
        %937 = vmatpush1.bf16.msra.mxu0 %v910
        %938 = vmatprep.subr.bf16.mxu0 %v909
        %939 = vmatpush1.bf16.msra.mxu0 %v908
        %940 = vmatprep.subr.bf16.mxu0 %v907
        %941 = vmatpush1.bf16.msra.mxu0 %v906
        %942 = vmatprep.subr.bf16.mxu0 %v905
        %943 = vmatpush1.bf16.msra.mxu0 %v904
        %944 = vmatprep.subr.bf16.mxu0 %v903
        %945 = vmatpush1.bf16.msra.mxu0 %v902
        %946 = vmatprep.subr.bf16.mxu0 %v901
        %947 = vmatpush1.bf16.msra.mxu0 %v900
        %948 = vmatprep.subr.bf16.mxu0 0
        %949 = vmatpush2.bf16.msra.mxu0 0
        %950 = vmatprep.subr.bf16.mxu0 0
        %951 = vmatpush2.bf16.msra.mxu0 0
        %952 = vmatprep.subr.bf16.mxu0 0
        %953 = vmatpush2.bf16.msra.mxu0 0
        %954 = vmatprep.subr.bf16.mxu0 0
        %955 = vmatpush2.bf16.msra.mxu0 0
        %956 = vmatprep.subr.bf16.mxu0 0
        %957 = vmatpush2.bf16.msra.mxu0 0
        %958 = vmatprep.subr.bf16.mxu0 0
        %959 = vmatpush2.bf16.msra.mxu0 0
        %960 = vmatprep.subr.bf16.mxu0 0
        %961 = vmatpush2.bf16.msra.mxu0 0
        %962 = vmatprep.subr.bf16.mxu0 0
        %963 = vmatpush2.bf16.msra.mxu0 0
        %964 = vmatprep.mubr.bf16.mxu0 0
        %965 = vmatmul.mubr.bf16.gmra.mxu0 %v684
        %v966 = vpop.f32.mrf.mxu0
        %v967 = vadd.f32 %v846, %v966
        %v968 = vpop.f32.mrf.mxu0
        %v969 = vadd.f32 %v848, %v968
        %v970 = vpop.f32.mrf.mxu0
        %v971 = vpop.f32.mrf.mxu0
        %972 = vdwg.mxu0
        %s973 = scalar_lea.vmem [#allocation10], 256
        %v974 = vld [vmem:[%s973] sm:$0xff]
        %v975 = vld [vmem:[%s973 + $0x8] sm:$0xff]
        %v976 = vld [vmem:[%s973 + $0x10] sm:$0xff]
        %v977 = vld [vmem:[%s973 + $0x18] sm:$0xff]
        %v978 = vld [vmem:[%s973 + $0x20] sm:$0xff]
        %v979 = vld [vmem:[%s973 + $0x28] sm:$0xff]
        %v980 = vld [vmem:[%s973 + $0x30] sm:$0xff]
        %v981 = vld [vmem:[%s973 + $0x38] sm:$0xff]
        %v982 = vld [vmem:[%s973 + $0x40] sm:$0xff]
        %v983 = vld [vmem:[%s973 + $0x48] sm:$0xff]
        %v984 = vld [vmem:[%s973 + $0x50] sm:$0xff]
        %v985 = vld [vmem:[%s973 + $0x58] sm:$0xff]
        %v986 = vld [vmem:[%s973 + $0x60] sm:$0xff]
        %v987 = vld [vmem:[%s973 + $0x68] sm:$0xff]
        %v988 = vld [vmem:[%s973 + $0x70] sm:$0xff]
        %v989 = vld [vmem:[%s973 + $0x78] sm:$0xff]
        %v991 = vunpack.c.l.b16 %v686
        %v992 = vpack.c.b16 %v991, %v991
        %v993 = vrot.slane %v992, 1
        %v1011 = vunpack.c.l.b16 %v974
        %v1012 = vunpack.c.h.b16 %v974
        %v1013 = vunpack.c.l.b16 %v975
        %v1014 = vunpack.c.h.b16 %v975
        %v1015 = vunpack.c.l.b16 %v976
        %v1016 = vunpack.c.h.b16 %v976
        %v1017 = vunpack.c.l.b16 %v977
        %v1018 = vunpack.c.h.b16 %v977
        %v1019 = vunpack.c.l.b16 %v978
        %v1020 = vunpack.c.h.b16 %v978
        %v1021 = vunpack.c.l.b16 %v979
        %v1022 = vunpack.c.h.b16 %v979
        %v1023 = vunpack.c.l.b16 %v980
        %v1024 = vunpack.c.h.b16 %v980
        %v1025 = vunpack.c.l.b16 %v981
        %v1026 = vunpack.c.h.b16 %v981
        %v1027 = vunpack.c.l.b16 %v982
        %v1028 = vunpack.c.h.b16 %v982
        %v1029 = vunpack.c.l.b16 %v983
        %v1030 = vunpack.c.h.b16 %v983
        %v1031 = vunpack.c.l.b16 %v984
        %v1032 = vunpack.c.h.b16 %v984
        %v1033 = vunpack.c.l.b16 %v985
        %v1034 = vunpack.c.h.b16 %v985
        %v1035 = vunpack.c.l.b16 %v986
        %v1036 = vunpack.c.h.b16 %v986
        %v1037 = vunpack.c.l.b16 %v987
        %v1038 = vunpack.c.h.b16 %v987
        %v1039 = vunpack.c.l.b16 %v988
        %v1040 = vunpack.c.h.b16 %v988
        %v1041 = vunpack.c.l.b16 %v989
        %v1042 = vunpack.c.h.b16 %v989
        %v1043 = vpack.c.b16 %v1013, %v1011
        %v1044 = vpack.c.b16 %v1014, %v1012
        %v1045 = vpack.c.b16 %v1017, %v1015
        %v1046 = vpack.c.b16 %v1018, %v1016
        %v1047 = vpack.c.b16 %v1021, %v1019
        %v1048 = vpack.c.b16 %v1022, %v1020
        %v1049 = vpack.c.b16 %v1025, %v1023
        %v1050 = vpack.c.b16 %v1026, %v1024
        %v1051 = vpack.c.b16 %v1029, %v1027
        %v1052 = vpack.c.b16 %v1030, %v1028
        %v1053 = vpack.c.b16 %v1033, %v1031
        %v1054 = vpack.c.b16 %v1034, %v1032
        %v1055 = vpack.c.b16 %v1037, %v1035
        %v1056 = vpack.c.b16 %v1038, %v1036
        %v1057 = vpack.c.b16 %v1041, %v1039
        %v1058 = vpack.c.b16 %v1042, %v1040
        %1075 = vmatprep.subr.bf16.mxu0 %v1058
        %1076 = vmatpush1.bf16.msra.mxu0 %v1057
        %1077 = vmatprep.subr.bf16.mxu0 %v1056
        %1078 = vmatpush1.bf16.msra.mxu0 %v1055
        %1079 = vmatprep.subr.bf16.mxu0 %v1054
        %1080 = vmatpush1.bf16.msra.mxu0 %v1053
        %1081 = vmatprep.subr.bf16.mxu0 %v1052
        %1082 = vmatpush1.bf16.msra.mxu0 %v1051
        %1083 = vmatprep.subr.bf16.mxu0 %v1050
        %1084 = vmatpush1.bf16.msra.mxu0 %v1049
        %1085 = vmatprep.subr.bf16.mxu0 %v1048
        %1086 = vmatpush1.bf16.msra.mxu0 %v1047
        %1087 = vmatprep.subr.bf16.mxu0 %v1046
        %1088 = vmatpush1.bf16.msra.mxu0 %v1045
        %1089 = vmatprep.subr.bf16.mxu0 %v1044
        %1090 = vmatpush1.bf16.msra.mxu0 %v1043
        %1091 = vmatprep.subr.bf16.mxu0 0
        %1092 = vmatpush2.bf16.msra.mxu0 0
        %1093 = vmatprep.subr.bf16.mxu0 0
        %1094 = vmatpush2.bf16.msra.mxu0 0
        %1095 = vmatprep.subr.bf16.mxu0 0
        %1096 = vmatpush2.bf16.msra.mxu0 0
        %1097 = vmatprep.subr.bf16.mxu0 0
        %1098 = vmatpush2.bf16.msra.mxu0 0
        %1099 = vmatprep.subr.bf16.mxu0 0
        %1100 = vmatpush2.bf16.msra.mxu0 0
        %1101 = vmatprep.subr.bf16.mxu0 0
        %1102 = vmatpush2.bf16.msra.mxu0 0
        %1103 = vmatprep.subr.bf16.mxu0 0
        %1104 = vmatpush2.bf16.msra.mxu0 0
        %1105 = vmatprep.subr.bf16.mxu0 0
        %1106 = vmatpush2.bf16.msra.mxu0 0
        %1107 = vmatprep.mubr.bf16.mxu0 0
        %1108 = vmatmul.mubr.bf16.gmra.mxu0 %v993
        %v1109 = vpop.f32.mrf.mxu0
        %v1110 = vadd.f32 0.0, %v1109
        %v1111 = vpop.f32.mrf.mxu0
        %v1112 = vadd.f32 0.0, %v1111
        %v1113 = vpop.f32.mrf.mxu0
        %v1114 = vpop.f32.mrf.mxu0
        %1115 = vdwg.mxu0
        %v1116 = vadd.f32 %v967, %v1110
        %v1117 = vadd.f32 %v969, %v1112
        %v1118 = vld [vmem:[%s6] sm:$0x3]
        %v1120 = vlaneseq
        %v1121 = vshrl.u32 %v1120, 7
        %v1122 = vsub.s32 0, %v1121
        %v1123 = vrot.slane %v1118, %v1122
        %v1124 = vlaneseq
        %v1125 = vshrl.u32 %v1124, 7
        %v1126 = vsub.s32 1, %v1125
        %v1127 = vrot.slane %v1118, %v1126
        %v1130 = vadd.f32 %v1116, %v1123
        %v1131 = vadd.f32 %v1117, %v1127
        %v1132 = vmax.f32 %v1130, 0.0
        %v1133 = vmax.f32 %v1131, 0.0
        %v1134 = vpack.c.bf16 %v1132, %v1132
        %v1135 = vpack.c.bf16 %v1133, %v1133
        %v1137 = vunpack.c.l.b16 %v1134
        %v1138 = vpack.c.b16 %v1137, %v1137
        %v1140 = vshll.u32 %v1138, 16
        %v1143 = vld [vmem:[#allocation2] sm:$0x1]
        %v1144 = vsel %vm645, %v1140, %v1143
        %1145 = vst [vmem:[#allocation2] sm:$0x1] %v1144
        %v1147 = vunpack.c.l.b16 %v1135
        %v1148 = vpack.c.b16 %v1147, %v1147
        %v1149 = vrot.slane %v1148, 7
        %v1151 = vld [vmem:[#allocation2] sm:$0x2]
        %v1152 = vsel %vm656, %v1149, %v1151
        %1153 = vst [vmem:[#allocation2] sm:$0x2] %v1152
        %v1154 = vrot.slane %v1138, 7
        %v1156 = vld [vmem:[#allocation2] sm:$0x2]
        %v1157 = vsel %vm669, %v1154, %v1156
        %1158 = vst [vmem:[#allocation2] sm:$0x2] %v1157
        %v1160 = vshrl.u32 %v1148, 16
        %v1162 = vrot.slane %v1160, 6
        %v1164 = vld [vmem:[#allocation2] sm:$0x4]
        %v1165 = vsel %vm680, %v1162, %v1164
        %1166 = vst [vmem:[#allocation2] sm:$0x4] %v1165
        %v1167 = vrot.slane %v1140, 7
        %vm1169 = vsmask.f32 7946
        %vm1170 = vmand %vm678, %vm1169
        %v1171 = vld [vmem:[#allocation2] sm:$0x4]
        %v1172 = vsel %vm1170, %v1167, %v1171
        %1173 = vst [vmem:[#allocation2] sm:$0x4] %v1172
        %v1174 = vrot.slane %v1148, 6
        %vm1176 = vcmask 1043459
        %vm1177 = vsmask.f32 3328
        %vm1178 = vmand %vm1176, %vm1177
        %v1179 = vld [vmem:[#allocation2] sm:$0x8]
        %v1180 = vsel %vm1178, %v1174, %v1179
        %1181 = vst [vmem:[#allocation2] sm:$0x8] %v1180
        %v1182 = vrot.slane %v1138, 6
        %vm1184 = vsmask.f32 7950
        %vm1185 = vmand %vm1176, %vm1184
        %v1186 = vld [vmem:[#allocation2] sm:$0x8]
        %v1187 = vsel %vm1185, %v1182, %v1186
        %1188 = vst [vmem:[#allocation2] sm:$0x8] %v1187
        %v1189 = vrot.slane %v1160, 5
        %v1190 = vrot.slane %v1189, 4
        %vm1192 = vsmask.f32 256
        %vm1193 = vmand %vm643, %vm1192
        %v1194 = vld [vmem:[#allocation2 + $0x4] sm:$0x1]
        %v1195 = vsel %vm1193, %v1190, %v1194
        %1196 = vst [vmem:[#allocation2 + $0x4] sm:$0x1] %v1195
        %v1197 = vld [vmem:[#allocation2] sm:$0xf]
        %v1198 = vld [vmem:[#allocation2 + $0x4] sm:$0x1]
        %v1199 = vld [vmem:[#allocation2] sm:$0xe]
        %s1200 = scalar_lea.vmem [#allocation10], 384
        %v1201 = vld [vmem:[%s1200] sm:$0xff]
        %v1202 = vld [vmem:[%s1200 + $0x8] sm:$0xff]
        %v1203 = vld [vmem:[%s1200 + $0x10] sm:$0xff]
        %v1204 = vld [vmem:[%s1200 + $0x18] sm:$0xff]
        %v1205 = vld [vmem:[%s1200 + $0x20] sm:$0xff]
        %v1206 = vld [vmem:[%s1200 + $0x28] sm:$0xff]
        %v1207 = vld [vmem:[%s1200 + $0x30] sm:$0xff]
        %v1208 = vld [vmem:[%s1200 + $0x38] sm:$0xff]
        %v1209 = vld [vmem:[%s1200 + $0x40] sm:$0xff]
        %v1210 = vld [vmem:[%s1200 + $0x48] sm:$0xff]
        %v1211 = vld [vmem:[%s1200 + $0x50] sm:$0xff]
        %v1212 = vld [vmem:[%s1200 + $0x58] sm:$0xff]
        %v1213 = vld [vmem:[%s1200 + $0x60] sm:$0xff]
        %v1214 = vld [vmem:[%s1200 + $0x68] sm:$0xff]
        %v1215 = vld [vmem:[%s1200 + $0x70] sm:$0xff]
        %v1216 = vld [vmem:[%s1200 + $0x78] sm:$0xff]
        %s1217 = scalar_lea.vmem [#allocation10], 512
        %v1218 = vld [vmem:[%s1217] sm:$0xff]
        %v1219 = vld [vmem:[%s1217 + $0x8] sm:$0xff]
        %v1220 = vld [vmem:[%s1217 + $0x10] sm:$0xff]
        %v1221 = vld [vmem:[%s1217 + $0x18] sm:$0xff]
        %v1222 = vld [vmem:[%s1217 + $0x20] sm:$0xff]
        %v1223 = vld [vmem:[%s1217 + $0x28] sm:$0xff]
        %v1224 = vld [vmem:[%s1217 + $0x30] sm:$0xff]
        %v1225 = vld [vmem:[%s1217 + $0x38] sm:$0xff]
        %v1226 = vld [vmem:[%s1217 + $0x40] sm:$0xff]
        %v1227 = vld [vmem:[%s1217 + $0x48] sm:$0xff]
        %v1228 = vld [vmem:[%s1217 + $0x50] sm:$0xff]
        %v1229 = vld [vmem:[%s1217 + $0x58] sm:$0xff]
        %v1230 = vld [vmem:[%s1217 + $0x60] sm:$0xff]
        %v1231 = vld [vmem:[%s1217 + $0x68] sm:$0xff]
        %v1232 = vld [vmem:[%s1217 + $0x70] sm:$0xff]
        %v1233 = vld [vmem:[%s1217 + $0x78] sm:$0xff]
        %v1236 = vunpack.c.l.b16 %v1197
        %v1237 = vunpack.c.l.b16 %v1198
        %v1238 = vpack.c.b16 %v1237, %v1236
        %v1240 = vshrl.u32 %v1238, 16
        %v1242 = vshll.u32 %v1238, 16
        %v1244 = vrot.slane %v1242, 1
        %v1245 = vor.u32 %v1240, %v1244
        %v1263 = vunpack.c.l.b16 %v1218
        %v1264 = vunpack.c.h.b16 %v1218
        %v1265 = vunpack.c.l.b16 %v1219
        %v1266 = vunpack.c.h.b16 %v1219
        %v1267 = vunpack.c.l.b16 %v1220
        %v1268 = vunpack.c.h.b16 %v1220
        %v1269 = vunpack.c.l.b16 %v1221
        %v1270 = vunpack.c.h.b16 %v1221
        %v1271 = vunpack.c.l.b16 %v1222
        %v1272 = vunpack.c.h.b16 %v1222
        %v1273 = vunpack.c.l.b16 %v1223
        %v1274 = vunpack.c.h.b16 %v1223
        %v1275 = vunpack.c.l.b16 %v1224
        %v1276 = vunpack.c.h.b16 %v1224
        %v1277 = vunpack.c.l.b16 %v1225
        %v1278 = vunpack.c.h.b16 %v1225
        %v1279 = vunpack.c.l.b16 %v1226
        %v1280 = vunpack.c.h.b16 %v1226
        %v1281 = vunpack.c.l.b16 %v1227
        %v1282 = vunpack.c.h.b16 %v1227
        %v1283 = vunpack.c.l.b16 %v1228
        %v1284 = vunpack.c.h.b16 %v1228
        %v1285 = vunpack.c.l.b16 %v1229
        %v1286 = vunpack.c.h.b16 %v1229
        %v1287 = vunpack.c.l.b16 %v1230
        %v1288 = vunpack.c.h.b16 %v1230
        %v1289 = vunpack.c.l.b16 %v1231
        %v1290 = vunpack.c.h.b16 %v1231
        %v1291 = vunpack.c.l.b16 %v1232
        %v1292 = vunpack.c.h.b16 %v1232
        %v1293 = vunpack.c.l.b16 %v1233
        %v1294 = vunpack.c.h.b16 %v1233
        %v1295 = vpack.c.b16 %v1265, %v1263
        %v1296 = vpack.c.b16 %v1266, %v1264
        %v1297 = vpack.c.b16 %v1269, %v1267
        %v1298 = vpack.c.b16 %v1270, %v1268
        %v1299 = vpack.c.b16 %v1273, %v1271
        %v1300 = vpack.c.b16 %v1274, %v1272
        %v1301 = vpack.c.b16 %v1277, %v1275
        %v1302 = vpack.c.b16 %v1278, %v1276
        %v1303 = vpack.c.b16 %v1281, %v1279
        %v1304 = vpack.c.b16 %v1282, %v1280
        %v1305 = vpack.c.b16 %v1285, %v1283
        %v1306 = vpack.c.b16 %v1286, %v1284
        %v1307 = vpack.c.b16 %v1289, %v1287
        %v1308 = vpack.c.b16 %v1290, %v1288
        %v1309 = vpack.c.b16 %v1293, %v1291
        %v1310 = vpack.c.b16 %v1294, %v1292
        %1327 = vmatprep.subr.bf16.mxu0 %v1310
        %1328 = vmatpush1.bf16.msra.mxu0 %v1309
        %1329 = vmatprep.subr.bf16.mxu0 %v1308
        %1330 = vmatpush1.bf16.msra.mxu0 %v1307
        %1331 = vmatprep.subr.bf16.mxu0 %v1306
        %1332 = vmatpush1.bf16.msra.mxu0 %v1305
        %1333 = vmatprep.subr.bf16.mxu0 %v1304
        %1334 = vmatpush1.bf16.msra.mxu0 %v1303
        %1335 = vmatprep.subr.bf16.mxu0 %v1302
        %1336 = vmatpush1.bf16.msra.mxu0 %v1301
        %1337 = vmatprep.subr.bf16.mxu0 %v1300
        %1338 = vmatpush1.bf16.msra.mxu0 %v1299
        %1339 = vmatprep.subr.bf16.mxu0 %v1298
        %1340 = vmatpush1.bf16.msra.mxu0 %v1297
        %1341 = vmatprep.subr.bf16.mxu0 %v1296
        %1342 = vmatpush1.bf16.msra.mxu0 %v1295
        %1343 = vmatprep.subr.bf16.mxu0 0
        %1344 = vmatpush2.bf16.msra.mxu0 0
        %1345 = vmatprep.subr.bf16.mxu0 0
        %1346 = vmatpush2.bf16.msra.mxu0 0
        %1347 = vmatprep.subr.bf16.mxu0 0
        %1348 = vmatpush2.bf16.msra.mxu0 0
        %1349 = vmatprep.subr.bf16.mxu0 0
        %1350 = vmatpush2.bf16.msra.mxu0 0
        %1351 = vmatprep.subr.bf16.mxu0 0
        %1352 = vmatpush2.bf16.msra.mxu0 0
        %1353 = vmatprep.subr.bf16.mxu0 0
        %1354 = vmatpush2.bf16.msra.mxu0 0
        %1355 = vmatprep.subr.bf16.mxu0 0
        %1356 = vmatpush2.bf16.msra.mxu0 0
        %1357 = vmatprep.subr.bf16.mxu0 0
        %1358 = vmatpush2.bf16.msra.mxu0 0
        %1359 = vmatprep.mubr.bf16.mxu0 0
        %1360 = vmatmul.mubr.bf16.gmra.mxu0 %v1245
        %v1361 = vpop.f32.mrf.mxu0
        %v1362 = vadd.f32 0.0, %v1361
        %v1363 = vpop.f32.mrf.mxu0
        %v1364 = vadd.f32 0.0, %v1363
        %v1365 = vpop.f32.mrf.mxu0
        %v1366 = vpop.f32.mrf.mxu0
        %1367 = vdwg.mxu0
        %v1384 = vunpack.c.l.b16 %v1201
        %v1385 = vunpack.c.h.b16 %v1201
        %v1386 = vunpack.c.l.b16 %v1202
        %v1387 = vunpack.c.h.b16 %v1202
        %v1388 = vunpack.c.l.b16 %v1203
        %v1389 = vunpack.c.h.b16 %v1203
        %v1390 = vunpack.c.l.b16 %v1204
        %v1391 = vunpack.c.h.b16 %v1204
        %v1392 = vunpack.c.l.b16 %v1205
        %v1393 = vunpack.c.h.b16 %v1205
        %v1394 = vunpack.c.l.b16 %v1206
        %v1395 = vunpack.c.h.b16 %v1206
        %v1396 = vunpack.c.l.b16 %v1207
        %v1397 = vunpack.c.h.b16 %v1207
        %v1398 = vunpack.c.l.b16 %v1208
        %v1399 = vunpack.c.h.b16 %v1208
        %v1400 = vunpack.c.l.b16 %v1209
        %v1401 = vunpack.c.h.b16 %v1209
        %v1402 = vunpack.c.l.b16 %v1210
        %v1403 = vunpack.c.h.b16 %v1210
        %v1404 = vunpack.c.l.b16 %v1211
        %v1405 = vunpack.c.h.b16 %v1211
        %v1406 = vunpack.c.l.b16 %v1212
        %v1407 = vunpack.c.h.b16 %v1212
        %v1408 = vunpack.c.l.b16 %v1213
        %v1409 = vunpack.c.h.b16 %v1213
        %v1410 = vunpack.c.l.b16 %v1214
        %v1411 = vunpack.c.h.b16 %v1214
        %v1412 = vunpack.c.l.b16 %v1215
        %v1413 = vunpack.c.h.b16 %v1215
        %v1414 = vunpack.c.l.b16 %v1216
        %v1415 = vunpack.c.h.b16 %v1216
        %v1416 = vpack.c.b16 %v1386, %v1384
        %v1417 = vpack.c.b16 %v1387, %v1385
        %v1418 = vpack.c.b16 %v1390, %v1388
        %v1419 = vpack.c.b16 %v1391, %v1389
        %v1420 = vpack.c.b16 %v1394, %v1392
        %v1421 = vpack.c.b16 %v1395, %v1393
        %v1422 = vpack.c.b16 %v1398, %v1396
        %v1423 = vpack.c.b16 %v1399, %v1397
        %v1424 = vpack.c.b16 %v1402, %v1400
        %v1425 = vpack.c.b16 %v1403, %v1401
        %v1426 = vpack.c.b16 %v1406, %v1404
        %v1427 = vpack.c.b16 %v1407, %v1405
        %v1428 = vpack.c.b16 %v1410, %v1408
        %v1429 = vpack.c.b16 %v1411, %v1409
        %v1430 = vpack.c.b16 %v1414, %v1412
        %v1431 = vpack.c.b16 %v1415, %v1413
        %1448 = vmatprep.subr.bf16.mxu0 %v1431
        %1449 = vmatpush1.bf16.msra.mxu0 %v1430
        %1450 = vmatprep.subr.bf16.mxu0 %v1429
        %1451 = vmatpush1.bf16.msra.mxu0 %v1428
        %1452 = vmatprep.subr.bf16.mxu0 %v1427
        %1453 = vmatpush1.bf16.msra.mxu0 %v1426
        %1454 = vmatprep.subr.bf16.mxu0 %v1425
        %1455 = vmatpush1.bf16.msra.mxu0 %v1424
        %1456 = vmatprep.subr.bf16.mxu0 %v1423
        %1457 = vmatpush1.bf16.msra.mxu0 %v1422
        %1458 = vmatprep.subr.bf16.mxu0 %v1421
        %1459 = vmatpush1.bf16.msra.mxu0 %v1420
        %1460 = vmatprep.subr.bf16.mxu0 %v1419
        %1461 = vmatpush1.bf16.msra.mxu0 %v1418
        %1462 = vmatprep.subr.bf16.mxu0 %v1417
        %1463 = vmatpush1.bf16.msra.mxu0 %v1416
        %1464 = vmatprep.subr.bf16.mxu0 0
        %1465 = vmatpush2.bf16.msra.mxu0 0
        %1466 = vmatprep.subr.bf16.mxu0 0
        %1467 = vmatpush2.bf16.msra.mxu0 0
        %1468 = vmatprep.subr.bf16.mxu0 0
        %1469 = vmatpush2.bf16.msra.mxu0 0
        %1470 = vmatprep.subr.bf16.mxu0 0
        %1471 = vmatpush2.bf16.msra.mxu0 0
        %1472 = vmatprep.subr.bf16.mxu0 0
        %1473 = vmatpush2.bf16.msra.mxu0 0
        %1474 = vmatprep.subr.bf16.mxu0 0
        %1475 = vmatpush2.bf16.msra.mxu0 0
        %1476 = vmatprep.subr.bf16.mxu0 0
        %1477 = vmatpush2.bf16.msra.mxu0 0
        %1478 = vmatprep.subr.bf16.mxu0 0
        %1479 = vmatpush2.bf16.msra.mxu0 0
        %1480 = vmatprep.mubr.bf16.mxu0 0
        %1481 = vmatmul.mubr.bf16.gmra.mxu0 %v1197
        %v1482 = vpop.f32.mrf.mxu0
        %v1483 = vadd.f32 %v1362, %v1482
        %v1484 = vpop.f32.mrf.mxu0
        %v1485 = vadd.f32 %v1364, %v1484
        %v1486 = vpop.f32.mrf.mxu0
        %v1487 = vpop.f32.mrf.mxu0
        %1488 = vdwg.mxu0
        %s1489 = scalar_lea.vmem [#allocation10], 640
        %v1490 = vld [vmem:[%s1489] sm:$0xff]
        %v1491 = vld [vmem:[%s1489 + $0x8] sm:$0xff]
        %v1492 = vld [vmem:[%s1489 + $0x10] sm:$0xff]
        %v1493 = vld [vmem:[%s1489 + $0x18] sm:$0xff]
        %v1494 = vld [vmem:[%s1489 + $0x20] sm:$0xff]
        %v1495 = vld [vmem:[%s1489 + $0x28] sm:$0xff]
        %v1496 = vld [vmem:[%s1489 + $0x30] sm:$0xff]
        %v1497 = vld [vmem:[%s1489 + $0x38] sm:$0xff]
        %v1498 = vld [vmem:[%s1489 + $0x40] sm:$0xff]
        %v1499 = vld [vmem:[%s1489 + $0x48] sm:$0xff]
        %v1500 = vld [vmem:[%s1489 + $0x50] sm:$0xff]
        %v1501 = vld [vmem:[%s1489 + $0x58] sm:$0xff]
        %v1502 = vld [vmem:[%s1489 + $0x60] sm:$0xff]
        %v1503 = vld [vmem:[%s1489 + $0x68] sm:$0xff]
        %v1504 = vld [vmem:[%s1489 + $0x70] sm:$0xff]
        %v1505 = vld [vmem:[%s1489 + $0x78] sm:$0xff]
        %v1507 = vunpack.c.l.b16 %v1199
        %v1508 = vpack.c.b16 %v1237, %v1507
        %v1509 = vrot.slane %v1508, 1
        %v1527 = vunpack.c.l.b16 %v1490
        %v1528 = vunpack.c.h.b16 %v1490
        %v1529 = vunpack.c.l.b16 %v1491
        %v1530 = vunpack.c.h.b16 %v1491
        %v1531 = vunpack.c.l.b16 %v1492
        %v1532 = vunpack.c.h.b16 %v1492
        %v1533 = vunpack.c.l.b16 %v1493
        %v1534 = vunpack.c.h.b16 %v1493
        %v1535 = vunpack.c.l.b16 %v1494
        %v1536 = vunpack.c.h.b16 %v1494
        %v1537 = vunpack.c.l.b16 %v1495
        %v1538 = vunpack.c.h.b16 %v1495
        %v1539 = vunpack.c.l.b16 %v1496
        %v1540 = vunpack.c.h.b16 %v1496
        %v1541 = vunpack.c.l.b16 %v1497
        %v1542 = vunpack.c.h.b16 %v1497
        %v1543 = vunpack.c.l.b16 %v1498
        %v1544 = vunpack.c.h.b16 %v1498
        %v1545 = vunpack.c.l.b16 %v1499
        %v1546 = vunpack.c.h.b16 %v1499
        %v1547 = vunpack.c.l.b16 %v1500
        %v1548 = vunpack.c.h.b16 %v1500
        %v1549 = vunpack.c.l.b16 %v1501
        %v1550 = vunpack.c.h.b16 %v1501
        %v1551 = vunpack.c.l.b16 %v1502
        %v1552 = vunpack.c.h.b16 %v1502
        %v1553 = vunpack.c.l.b16 %v1503
        %v1554 = vunpack.c.h.b16 %v1503
        %v1555 = vunpack.c.l.b16 %v1504
        %v1556 = vunpack.c.h.b16 %v1504
        %v1557 = vunpack.c.l.b16 %v1505
        %v1558 = vunpack.c.h.b16 %v1505
        %v1559 = vpack.c.b16 %v1529, %v1527
        %v1560 = vpack.c.b16 %v1530, %v1528
        %v1561 = vpack.c.b16 %v1533, %v1531
        %v1562 = vpack.c.b16 %v1534, %v1532
        %v1563 = vpack.c.b16 %v1537, %v1535
        %v1564 = vpack.c.b16 %v1538, %v1536
        %v1565 = vpack.c.b16 %v1541, %v1539
        %v1566 = vpack.c.b16 %v1542, %v1540
        %v1567 = vpack.c.b16 %v1545, %v1543
        %v1568 = vpack.c.b16 %v1546, %v1544
        %v1569 = vpack.c.b16 %v1549, %v1547
        %v1570 = vpack.c.b16 %v1550, %v1548
        %v1571 = vpack.c.b16 %v1553, %v1551
        %v1572 = vpack.c.b16 %v1554, %v1552
        %v1573 = vpack.c.b16 %v1557, %v1555
        %v1574 = vpack.c.b16 %v1558, %v1556
        %1591 = vmatprep.subr.bf16.mxu0 %v1574
        %1592 = vmatpush1.bf16.msra.mxu0 %v1573
        %1593 = vmatprep.subr.bf16.mxu0 %v1572
        %1594 = vmatpush1.bf16.msra.mxu0 %v1571
        %1595 = vmatprep.subr.bf16.mxu0 %v1570
        %1596 = vmatpush1.bf16.msra.mxu0 %v1569
        %1597 = vmatprep.subr.bf16.mxu0 %v1568
        %1598 = vmatpush1.bf16.msra.mxu0 %v1567
        %1599 = vmatprep.subr.bf16.mxu0 %v1566
        %1600 = vmatpush1.bf16.msra.mxu0 %v1565
        %1601 = vmatprep.subr.bf16.mxu0 %v1564
        %1602 = vmatpush1.bf16.msra.mxu0 %v1563
        %1603 = vmatprep.subr.bf16.mxu0 %v1562
        %1604 = vmatpush1.bf16.msra.mxu0 %v1561
        %1605 = vmatprep.subr.bf16.mxu0 %v1560
        %1606 = vmatpush1.bf16.msra.mxu0 %v1559
        %1607 = vmatprep.subr.bf16.mxu0 0
        %1608 = vmatpush2.bf16.msra.mxu0 0
        %1609 = vmatprep.subr.bf16.mxu0 0
        %1610 = vmatpush2.bf16.msra.mxu0 0
        %1611 = vmatprep.subr.bf16.mxu0 0
        %1612 = vmatpush2.bf16.msra.mxu0 0
        %1613 = vmatprep.subr.bf16.mxu0 0
        %1614 = vmatpush2.bf16.msra.mxu0 0
        %1615 = vmatprep.subr.bf16.mxu0 0
        %1616 = vmatpush2.bf16.msra.mxu0 0
        %1617 = vmatprep.subr.bf16.mxu0 0
        %1618 = vmatpush2.bf16.msra.mxu0 0
        %1619 = vmatprep.subr.bf16.mxu0 0
        %1620 = vmatpush2.bf16.msra.mxu0 0
        %1621 = vmatprep.subr.bf16.mxu0 0
        %1622 = vmatpush2.bf16.msra.mxu0 0
        %1623 = vmatprep.mubr.bf16.mxu0 0
        %1624 = vmatmul.mubr.bf16.gmra.mxu0 %v1509
        %v1625 = vpop.f32.mrf.mxu0
        %v1626 = vadd.f32 0.0, %v1625
        %v1627 = vpop.f32.mrf.mxu0
        %v1628 = vadd.f32 0.0, %v1627
        %v1629 = vpop.f32.mrf.mxu0
        %v1630 = vpop.f32.mrf.mxu0
        %1631 = vdwg.mxu0
        %v1632 = vadd.f32 %v1483, %v1626
        %v1633 = vadd.f32 %v1485, %v1628
        %s1634 = scalar_lea.vmem %s6, 2
        %v1635 = vld [vmem:[%s1634] sm:$0x3]
        %v1637 = vlaneseq
        %v1638 = vshrl.u32 %v1637, 7
        %v1639 = vsub.s32 0, %v1638
        %v1640 = vrot.slane %v1635, %v1639
        %v1641 = vlaneseq
        %v1642 = vshrl.u32 %v1641, 7
        %v1643 = vsub.s32 1, %v1642
        %v1644 = vrot.slane %v1635, %v1643
        %v1647 = vadd.f32 %v1632, %v1640
        %v1648 = vadd.f32 %v1633, %v1644
        %v1649 = vmax.f32 %v1647, 0.0
        %v1650 = vmax.f32 %v1648, 0.0
        %v1651 = vpack.c.bf16 %v1649, %v1649
        %v1652 = vpack.c.bf16 %v1650, %v1650
        %v1654 = vunpack.c.l.b16 %v1651
        %v1655 = vpack.c.b16 %v1654, %v1654
        %v1657 = vshll.u32 %v1655, 16
        %v1660 = vld [vmem:[#allocation2] sm:$0x1]
        %v1661 = vsel %vm645, %v1657, %v1660
        %1662 = vst [vmem:[#allocation2] sm:$0x1] %v1661
        %v1664 = vunpack.c.l.b16 %v1652
        %v1665 = vpack.c.b16 %v1664, %v1664
        %v1666 = vrot.slane %v1665, 7
        %v1668 = vld [vmem:[#allocation2] sm:$0x2]
        %v1669 = vsel %vm656, %v1666, %v1668
        %1670 = vst [vmem:[#allocation2] sm:$0x2] %v1669
        %v1671 = vrot.slane %v1655, 7
        %v1673 = vld [vmem:[#allocation2] sm:$0x2]
        %v1674 = vsel %vm669, %v1671, %v1673
        %1675 = vst [vmem:[#allocation2] sm:$0x2] %v1674
        %v1677 = vshrl.u32 %v1665, 16
        %v1679 = vrot.slane %v1677, 6
        %v1681 = vld [vmem:[#allocation2] sm:$0x4]
        %v1682 = vsel %vm680, %v1679, %v1681
        %1683 = vst [vmem:[#allocation2] sm:$0x4] %v1682
        %v1684 = vrot.slane %v1657, 7
        %v1686 = vld [vmem:[#allocation2] sm:$0x4]
        %v1687 = vsel %vm1170, %v1684, %v1686
        %1688 = vst [vmem:[#allocation2] sm:$0x4] %v1687
        %v1689 = vrot.slane %v1665, 6
        %v1691 = vld [vmem:[#allocation2] sm:$0x8]
        %v1692 = vsel %vm1178, %v1689, %v1691
        %1693 = vst [vmem:[#allocation2] sm:$0x8] %v1692
        %v1694 = vrot.slane %v1655, 6
        %v1696 = vld [vmem:[#allocation2] sm:$0x8]
        %v1697 = vsel %vm1185, %v1694, %v1696
        %1698 = vst [vmem:[#allocation2] sm:$0x8] %v1697
        %v1699 = vrot.slane %v1677, 5
        %v1700 = vrot.slane %v1699, 4
        %v1702 = vld [vmem:[#allocation2 + $0x4] sm:$0x1]
        %v1703 = vsel %vm1193, %v1700, %v1702
        %1704 = vst [vmem:[#allocation2 + $0x4] sm:$0x1] %v1703
        %v1705 = vrot.slane %v1657, 6
        %v1706 = vrot.slane %v1705, 4
        %v1708 = vld [vmem:[#allocation2 + $0x4] sm:$0x1]
        %v1709 = vsel %vm645, %v1706, %v1708
        %1710 = vst [vmem:[#allocation2 + $0x4] sm:$0x1] %v1709
        %v1711 = vrot.slane %v1665, 5
        %v1712 = vrot.slane %v1711, 4
        %v1714 = vld [vmem:[#allocation2 + $0x4] sm:$0x2]
        %v1715 = vsel %vm656, %v1712, %v1714
        %1716 = vst [vmem:[#allocation2 + $0x4] sm:$0x2] %v1715
        %v1717 = vrot.slane %v1655, 5
        %v1718 = vrot.slane %v1717, 4
        %v1720 = vld [vmem:[#allocation2 + $0x4] sm:$0x2]
        %v1721 = vsel %vm669, %v1718, %v1720
        %1722 = vst [vmem:[#allocation2 + $0x4] sm:$0x2] %v1721
        %v1723 = vrot.slane %v1677, 4
        %v1724 = vrot.slane %v1723, 4
        %v1726 = vld [vmem:[#allocation2 + $0x4] sm:$0x4]
        %v1727 = vsel %vm680, %v1724, %v1726
        %1728 = vst [vmem:[#allocation2 + $0x4] sm:$0x4] %v1727
        %v1729 = vrot.slane %v1657, 5
        %v1730 = vrot.slane %v1729, 4
        %v1732 = vld [vmem:[#allocation2 + $0x4] sm:$0x4]
        %v1733 = vsel %vm1170, %v1730, %v1732
        %1734 = vst [vmem:[#allocation2 + $0x4] sm:$0x4] %v1733
        %v1735 = vld [vmem:[#allocation2 + $0x4] sm:$0x8]
        %v1736 = vsel %vm1178, %v1652, %v1735
        %1737 = vst [vmem:[#allocation2 + $0x4] sm:$0x8] %v1736
        %v1738 = vld [vmem:[#allocation2 + $0x4] sm:$0x8]
        %v1739 = vsel %vm1185, %v1651, %v1738
        %1740 = vst [vmem:[#allocation2 + $0x4] sm:$0x8] %v1739
        %v1741 = vrot.slane %v1677, 7
        %v1742 = vrot.slane %v1741, 4
        %v1744 = vld [vmem:[#allocation2 + $0x8] sm:$0x1]
        %v1745 = vsel %vm1193, %v1742, %v1744
        %1746 = vst [vmem:[#allocation2 + $0x8] sm:$0x1] %v1745
        %v1747 = vld [vmem:[#allocation2] sm:$0xf]
        %v1748 = vld [vmem:[#allocation2 + $0x4] sm:$0xf]
        %v1749 = vld [vmem:[#allocation2 + $0x8] sm:$0x1]
        %v1750 = vld [vmem:[#allocation2] sm:$0xe]
        %s1751 = scalar_lea.vmem [#allocation10], 768
        %v1752 = vld [vmem:[%s1751] sm:$0xff]
        %v1753 = vld [vmem:[%s1751 + $0x8] sm:$0xff]
        %v1754 = vld [vmem:[%s1751 + $0x10] sm:$0xff]
        %v1755 = vld [vmem:[%s1751 + $0x18] sm:$0xff]
        %v1756 = vld [vmem:[%s1751 + $0x20] sm:$0xff]
        %v1757 = vld [vmem:[%s1751 + $0x28] sm:$0xff]
        %v1758 = vld [vmem:[%s1751 + $0x30] sm:$0xff]
        %v1759 = vld [vmem:[%s1751 + $0x38] sm:$0xff]
        %v1760 = vld [vmem:[%s1751 + $0x40] sm:$0xff]
        %v1761 = vld [vmem:[%s1751 + $0x48] sm:$0xff]
        %v1762 = vld [vmem:[%s1751 + $0x50] sm:$0xff]
        %v1763 = vld [vmem:[%s1751 + $0x58] sm:$0xff]
        %v1764 = vld [vmem:[%s1751 + $0x60] sm:$0xff]
        %v1765 = vld [vmem:[%s1751 + $0x68] sm:$0xff]
        %v1766 = vld [vmem:[%s1751 + $0x70] sm:$0xff]
        %v1767 = vld [vmem:[%s1751 + $0x78] sm:$0xff]
        %s1768 = scalar_lea.vmem [#allocation10], 896
        %v1769 = vld [vmem:[%s1768] sm:$0xff]
        %v1770 = vld [vmem:[%s1768 + $0x8] sm:$0xff]
        %v1771 = vld [vmem:[%s1768 + $0x10] sm:$0xff]
        %v1772 = vld [vmem:[%s1768 + $0x18] sm:$0xff]
        %v1773 = vld [vmem:[%s1768 + $0x20] sm:$0xff]
        %v1774 = vld [vmem:[%s1768 + $0x28] sm:$0xff]
        %v1775 = vld [vmem:[%s1768 + $0x30] sm:$0xff]
        %v1776 = vld [vmem:[%s1768 + $0x38] sm:$0xff]
        %v1777 = vld [vmem:[%s1768 + $0x40] sm:$0xff]
        %v1778 = vld [vmem:[%s1768 + $0x48] sm:$0xff]
        %v1779 = vld [vmem:[%s1768 + $0x50] sm:$0xff]
        %v1780 = vld [vmem:[%s1768 + $0x58] sm:$0xff]
        %v1781 = vld [vmem:[%s1768 + $0x60] sm:$0xff]
        %v1782 = vld [vmem:[%s1768 + $0x68] sm:$0xff]
        %v1783 = vld [vmem:[%s1768 + $0x70] sm:$0xff]
        %v1784 = vld [vmem:[%s1768 + $0x78] sm:$0xff]
        %v1788 = vunpack.c.l.b16 %v1747
        %v1789 = vunpack.c.l.b16 %v1748
        %v1790 = vunpack.c.l.b16 %v1749
        %v1791 = vpack.c.b16 %v1789, %v1788
        %v1792 = vpack.c.b16 %v1790, %v1790
        %vm1793 = vsmask.f32 7424
        %v1795 = vshrl.u32 %v1791, 16
        %v1797 = vshll.u32 %v1791, 16
        %v1799 = vrot.slane %v1797, 1
        %v1800 = vor.u32 %v1795, %v1799
        %v1802 = vshll.u32 %v1792, 16
        %v1804 = vrot.slane %v1802, 1
        %v1805 = vsel %vm1793, %v1800, %v1804
        %v1823 = vunpack.c.l.b16 %v1769
        %v1824 = vunpack.c.h.b16 %v1769
        %v1825 = vunpack.c.l.b16 %v1770
        %v1826 = vunpack.c.h.b16 %v1770
        %v1827 = vunpack.c.l.b16 %v1771
        %v1828 = vunpack.c.h.b16 %v1771
        %v1829 = vunpack.c.l.b16 %v1772
        %v1830 = vunpack.c.h.b16 %v1772
        %v1831 = vunpack.c.l.b16 %v1773
        %v1832 = vunpack.c.h.b16 %v1773
        %v1833 = vunpack.c.l.b16 %v1774
        %v1834 = vunpack.c.h.b16 %v1774
        %v1835 = vunpack.c.l.b16 %v1775
        %v1836 = vunpack.c.h.b16 %v1775
        %v1837 = vunpack.c.l.b16 %v1776
        %v1838 = vunpack.c.h.b16 %v1776
        %v1839 = vunpack.c.l.b16 %v1777
        %v1840 = vunpack.c.h.b16 %v1777
        %v1841 = vunpack.c.l.b16 %v1778
        %v1842 = vunpack.c.h.b16 %v1778
        %v1843 = vunpack.c.l.b16 %v1779
        %v1844 = vunpack.c.h.b16 %v1779
        %v1845 = vunpack.c.l.b16 %v1780
        %v1846 = vunpack.c.h.b16 %v1780
        %v1847 = vunpack.c.l.b16 %v1781
        %v1848 = vunpack.c.h.b16 %v1781
        %v1849 = vunpack.c.l.b16 %v1782
        %v1850 = vunpack.c.h.b16 %v1782
        %v1851 = vunpack.c.l.b16 %v1783
        %v1852 = vunpack.c.h.b16 %v1783
        %v1853 = vunpack.c.l.b16 %v1784
        %v1854 = vunpack.c.h.b16 %v1784
        %v1855 = vpack.c.b16 %v1825, %v1823
        %v1856 = vpack.c.b16 %v1826, %v1824
        %v1857 = vpack.c.b16 %v1829, %v1827
        %v1858 = vpack.c.b16 %v1830, %v1828
        %v1859 = vpack.c.b16 %v1833, %v1831
        %v1860 = vpack.c.b16 %v1834, %v1832
        %v1861 = vpack.c.b16 %v1837, %v1835
        %v1862 = vpack.c.b16 %v1838, %v1836
        %v1863 = vpack.c.b16 %v1841, %v1839
        %v1864 = vpack.c.b16 %v1842, %v1840
        %v1865 = vpack.c.b16 %v1845, %v1843
        %v1866 = vpack.c.b16 %v1846, %v1844
        %v1867 = vpack.c.b16 %v1849, %v1847
        %v1868 = vpack.c.b16 %v1850, %v1848
        %v1869 = vpack.c.b16 %v1853, %v1851
        %v1870 = vpack.c.b16 %v1854, %v1852
        %1887 = vmatprep.subr.bf16.mxu0 %v1870
        %1888 = vmatpush1.bf16.msra.mxu0 %v1869
        %1889 = vmatprep.subr.bf16.mxu0 %v1868
        %1890 = vmatpush1.bf16.msra.mxu0 %v1867
        %1891 = vmatprep.subr.bf16.mxu0 %v1866
        %1892 = vmatpush1.bf16.msra.mxu0 %v1865
        %1893 = vmatprep.subr.bf16.mxu0 %v1864
        %1894 = vmatpush1.bf16.msra.mxu0 %v1863
        %1895 = vmatprep.subr.bf16.mxu0 %v1862
        %1896 = vmatpush1.bf16.msra.mxu0 %v1861
        %1897 = vmatprep.subr.bf16.mxu0 %v1860
        %1898 = vmatpush1.bf16.msra.mxu0 %v1859
        %1899 = vmatprep.subr.bf16.mxu0 %v1858
        %1900 = vmatpush1.bf16.msra.mxu0 %v1857
        %1901 = vmatprep.subr.bf16.mxu0 %v1856
        %1902 = vmatpush1.bf16.msra.mxu0 %v1855
        %1903 = vmatprep.subr.bf16.mxu0 0
        %1904 = vmatpush2.bf16.msra.mxu0 0
        %1905 = vmatprep.subr.bf16.mxu0 0
        %1906 = vmatpush2.bf16.msra.mxu0 0
        %1907 = vmatprep.subr.bf16.mxu0 0
        %1908 = vmatpush2.bf16.msra.mxu0 0
        %1909 = vmatprep.subr.bf16.mxu0 0
        %1910 = vmatpush2.bf16.msra.mxu0 0
        %1911 = vmatprep.subr.bf16.mxu0 0
        %1912 = vmatpush2.bf16.msra.mxu0 0
        %1913 = vmatprep.subr.bf16.mxu0 0
        %1914 = vmatpush2.bf16.msra.mxu0 0
        %1915 = vmatprep.subr.bf16.mxu0 0
        %1916 = vmatpush2.bf16.msra.mxu0 0
        %1917 = vmatprep.subr.bf16.mxu0 0
        %1918 = vmatpush2.bf16.msra.mxu0 0
        %1919 = vmatprep.mubr.bf16.mxu0 0
        %1920 = vmatmul.mubr.bf16.gmra.mxu0 %v1805
        %v1921 = vpop.f32.mrf.mxu0
        %v1922 = vadd.f32 0.0, %v1921
        %v1923 = vpop.f32.mrf.mxu0
        %v1924 = vadd.f32 0.0, %v1923
        %v1925 = vpop.f32.mrf.mxu0
        %v1926 = vadd.f32 0.0, %v1925
        %v1927 = vpop.f32.mrf.mxu0
        %v1928 = vadd.f32 0.0, %v1927
        %1929 = vdwg.mxu0
        %v1947 = vunpack.c.l.b16 %v1752
        %v1948 = vunpack.c.h.b16 %v1752
        %v1949 = vunpack.c.l.b16 %v1753
        %v1950 = vunpack.c.h.b16 %v1753
        %v1951 = vunpack.c.l.b16 %v1754
        %v1952 = vunpack.c.h.b16 %v1754
        %v1953 = vunpack.c.l.b16 %v1755
        %v1954 = vunpack.c.h.b16 %v1755
        %v1955 = vunpack.c.l.b16 %v1756
        %v1956 = vunpack.c.h.b16 %v1756
        %v1957 = vunpack.c.l.b16 %v1757
        %v1958 = vunpack.c.h.b16 %v1757
        %v1959 = vunpack.c.l.b16 %v1758
        %v1960 = vunpack.c.h.b16 %v1758
        %v1961 = vunpack.c.l.b16 %v1759
        %v1962 = vunpack.c.h.b16 %v1759
        %v1963 = vunpack.c.l.b16 %v1760
        %v1964 = vunpack.c.h.b16 %v1760
        %v1965 = vunpack.c.l.b16 %v1761
        %v1966 = vunpack.c.h.b16 %v1761
        %v1967 = vunpack.c.l.b16 %v1762
        %v1968 = vunpack.c.h.b16 %v1762
        %v1969 = vunpack.c.l.b16 %v1763
        %v1970 = vunpack.c.h.b16 %v1763
        %v1971 = vunpack.c.l.b16 %v1764
        %v1972 = vunpack.c.h.b16 %v1764
        %v1973 = vunpack.c.l.b16 %v1765
        %v1974 = vunpack.c.h.b16 %v1765
        %v1975 = vunpack.c.l.b16 %v1766
        %v1976 = vunpack.c.h.b16 %v1766
        %v1977 = vunpack.c.l.b16 %v1767
        %v1978 = vunpack.c.h.b16 %v1767
        %v1979 = vpack.c.b16 %v1949, %v1947
        %v1980 = vpack.c.b16 %v1950, %v1948
        %v1981 = vpack.c.b16 %v1953, %v1951
        %v1982 = vpack.c.b16 %v1954, %v1952
        %v1983 = vpack.c.b16 %v1957, %v1955
        %v1984 = vpack.c.b16 %v1958, %v1956
        %v1985 = vpack.c.b16 %v1961, %v1959
        %v1986 = vpack.c.b16 %v1962, %v1960
        %v1987 = vpack.c.b16 %v1965, %v1963
        %v1988 = vpack.c.b16 %v1966, %v1964
        %v1989 = vpack.c.b16 %v1969, %v1967
        %v1990 = vpack.c.b16 %v1970, %v1968
        %v1991 = vpack.c.b16 %v1973, %v1971
        %v1992 = vpack.c.b16 %v1974, %v1972
        %v1993 = vpack.c.b16 %v1977, %v1975
        %v1994 = vpack.c.b16 %v1978, %v1976
        %2011 = vmatprep.subr.bf16.mxu0 %v1994
        %2012 = vmatpush1.bf16.msra.mxu0 %v1993
        %2013 = vmatprep.subr.bf16.mxu0 %v1992
        %2014 = vmatpush1.bf16.msra.mxu0 %v1991
        %2015 = vmatprep.subr.bf16.mxu0 %v1990
        %2016 = vmatpush1.bf16.msra.mxu0 %v1989
        %2017 = vmatprep.subr.bf16.mxu0 %v1988
        %2018 = vmatpush1.bf16.msra.mxu0 %v1987
        %2019 = vmatprep.subr.bf16.mxu0 %v1986
        %2020 = vmatpush1.bf16.msra.mxu0 %v1985
        %2021 = vmatprep.subr.bf16.mxu0 %v1984
        %2022 = vmatpush1.bf16.msra.mxu0 %v1983
        %2023 = vmatprep.subr.bf16.mxu0 %v1982
        %2024 = vmatpush1.bf16.msra.mxu0 %v1981
        %2025 = vmatprep.subr.bf16.mxu0 %v1980
        %2026 = vmatpush1.bf16.msra.mxu0 %v1979
        %2027 = vmatprep.subr.bf16.mxu0 0
        %2028 = vmatpush2.bf16.msra.mxu0 0
        %2029 = vmatprep.subr.bf16.mxu0 0
        %2030 = vmatpush2.bf16.msra.mxu0 0
        %2031 = vmatprep.subr.bf16.mxu0 0
        %2032 = vmatpush2.bf16.msra.mxu0 0
        %2033 = vmatprep.subr.bf16.mxu0 0
        %2034 = vmatpush2.bf16.msra.mxu0 0
        %2035 = vmatprep.subr.bf16.mxu0 0
        %2036 = vmatpush2.bf16.msra.mxu0 0
        %2037 = vmatprep.subr.bf16.mxu0 0
        %2038 = vmatpush2.bf16.msra.mxu0 0
        %2039 = vmatprep.subr.bf16.mxu0 0
        %2040 = vmatpush2.bf16.msra.mxu0 0
        %2041 = vmatprep.subr.bf16.mxu0 0
        %2042 = vmatpush2.bf16.msra.mxu0 0
        %2043 = vmatprep.mubr.bf16.mxu0 0
        %2044 = vmatmul.mubr.bf16.gmra.mxu0 %v1791
        %v2045 = vpop.f32.mrf.mxu0
        %v2046 = vadd.f32 %v1922, %v2045
        %v2047 = vpop.f32.mrf.mxu0
        %v2048 = vadd.f32 %v1924, %v2047
        %v2049 = vpop.f32.mrf.mxu0
        %v2050 = vadd.f32 %v1926, %v2049
        %v2051 = vpop.f32.mrf.mxu0
        %v2052 = vadd.f32 %v1928, %v2051
        %2053 = vdwg.mxu0
        %s2054 = scalar_lea.vmem [#allocation10], 1024
        %v2055 = vld [vmem:[%s2054] sm:$0xff]
        %v2056 = vld [vmem:[%s2054 + $0x8] sm:$0xff]
        %v2057 = vld [vmem:[%s2054 + $0x10] sm:$0xff]
        %v2058 = vld [vmem:[%s2054 + $0x18] sm:$0xff]
        %v2059 = vld [vmem:[%s2054 + $0x20] sm:$0xff]
        %v2060 = vld [vmem:[%s2054 + $0x28] sm:$0xff]
        %v2061 = vld [vmem:[%s2054 + $0x30] sm:$0xff]
        %v2062 = vld [vmem:[%s2054 + $0x38] sm:$0xff]
        %v2063 = vld [vmem:[%s2054 + $0x40] sm:$0xff]
        %v2064 = vld [vmem:[%s2054 + $0x48] sm:$0xff]
        %v2065 = vld [vmem:[%s2054 + $0x50] sm:$0xff]
        %v2066 = vld [vmem:[%s2054 + $0x58] sm:$0xff]
        %v2067 = vld [vmem:[%s2054 + $0x60] sm:$0xff]
        %v2068 = vld [vmem:[%s2054 + $0x68] sm:$0xff]
        %v2069 = vld [vmem:[%s2054 + $0x70] sm:$0xff]
        %v2070 = vld [vmem:[%s2054 + $0x78] sm:$0xff]
        %v2072 = vunpack.c.l.b16 %v1750
        %v2073 = vpack.c.b16 %v1789, %v2072
        %vm2074 = vcmask 1046528
        %v2075 = vrot.slane %v2073, 1
        %v2076 = vrot.slane %v1792, 1
        %v2077 = vsel %vm2074, %v2075, %v2076
        %v2095 = vunpack.c.l.b16 %v2055
        %v2096 = vunpack.c.h.b16 %v2055
        %v2097 = vunpack.c.l.b16 %v2056
        %v2098 = vunpack.c.h.b16 %v2056
        %v2099 = vunpack.c.l.b16 %v2057
        %v2100 = vunpack.c.h.b16 %v2057
        %v2101 = vunpack.c.l.b16 %v2058
        %v2102 = vunpack.c.h.b16 %v2058
        %v2103 = vunpack.c.l.b16 %v2059
        %v2104 = vunpack.c.h.b16 %v2059
        %v2105 = vunpack.c.l.b16 %v2060
        %v2106 = vunpack.c.h.b16 %v2060
        %v2107 = vunpack.c.l.b16 %v2061
        %v2108 = vunpack.c.h.b16 %v2061
        %v2109 = vunpack.c.l.b16 %v2062
        %v2110 = vunpack.c.h.b16 %v2062
        %v2111 = vunpack.c.l.b16 %v2063
        %v2112 = vunpack.c.h.b16 %v2063
        %v2113 = vunpack.c.l.b16 %v2064
        %v2114 = vunpack.c.h.b16 %v2064
        %v2115 = vunpack.c.l.b16 %v2065
        %v2116 = vunpack.c.h.b16 %v2065
        %v2117 = vunpack.c.l.b16 %v2066
        %v2118 = vunpack.c.h.b16 %v2066
        %v2119 = vunpack.c.l.b16 %v2067
        %v2120 = vunpack.c.h.b16 %v2067
        %v2121 = vunpack.c.l.b16 %v2068
        %v2122 = vunpack.c.h.b16 %v2068
        %v2123 = vunpack.c.l.b16 %v2069
        %v2124 = vunpack.c.h.b16 %v2069
        %v2125 = vunpack.c.l.b16 %v2070
        %v2126 = vunpack.c.h.b16 %v2070
        %v2127 = vpack.c.b16 %v2097, %v2095
        %v2128 = vpack.c.b16 %v2098, %v2096
        %v2129 = vpack.c.b16 %v2101, %v2099
        %v2130 = vpack.c.b16 %v2102, %v2100
        %v2131 = vpack.c.b16 %v2105, %v2103
        %v2132 = vpack.c.b16 %v2106, %v2104
        %v2133 = vpack.c.b16 %v2109, %v2107
        %v2134 = vpack.c.b16 %v2110, %v2108
        %v2135 = vpack.c.b16 %v2113, %v2111
        %v2136 = vpack.c.b16 %v2114, %v2112
        %v2137 = vpack.c.b16 %v2117, %v2115
        %v2138 = vpack.c.b16 %v2118, %v2116
        %v2139 = vpack.c.b16 %v2121, %v2119
        %v2140 = vpack.c.b16 %v2122, %v2120
        %v2141 = vpack.c.b16 %v2125, %v2123
        %v2142 = vpack.c.b16 %v2126, %v2124
        %2159 = vmatprep.subr.bf16.mxu0 %v2142
        %2160 = vmatpush1.bf16.msra.mxu0 %v2141
        %2161 = vmatprep.subr.bf16.mxu0 %v2140
        %2162 = vmatpush1.bf16.msra.mxu0 %v2139
        %2163 = vmatprep.subr.bf16.mxu0 %v2138
        %2164 = vmatpush1.bf16.msra.mxu0 %v2137
        %2165 = vmatprep.subr.bf16.mxu0 %v2136
        %2166 = vmatpush1.bf16.msra.mxu0 %v2135
        %2167 = vmatprep.subr.bf16.mxu0 %v2134
        %2168 = vmatpush1.bf16.msra.mxu0 %v2133
        %2169 = vmatprep.subr.bf16.mxu0 %v2132
        %2170 = vmatpush1.bf16.msra.mxu0 %v2131
        %2171 = vmatprep.subr.bf16.mxu0 %v2130
        %2172 = vmatpush1.bf16.msra.mxu0 %v2129
        %2173 = vmatprep.subr.bf16.mxu0 %v2128
        %2174 = vmatpush1.bf16.msra.mxu0 %v2127
        %2175 = vmatprep.subr.bf16.mxu0 0
        %2176 = vmatpush2.bf16.msra.mxu0 0
        %2177 = vmatprep.subr.bf16.mxu0 0
        %2178 = vmatpush2.bf16.msra.mxu0 0
        %2179 = vmatprep.subr.bf16.mxu0 0
        %2180 = vmatpush2.bf16.msra.mxu0 0
        %2181 = vmatprep.subr.bf16.mxu0 0
        %2182 = vmatpush2.bf16.msra.mxu0 0
        %2183 = vmatprep.subr.bf16.mxu0 0
        %2184 = vmatpush2.bf16.msra.mxu0 0
        %2185 = vmatprep.subr.bf16.mxu0 0
        %2186 = vmatpush2.bf16.msra.mxu0 0
        %2187 = vmatprep.subr.bf16.mxu0 0
        %2188 = vmatpush2.bf16.msra.mxu0 0
        %2189 = vmatprep.subr.bf16.mxu0 0
        %2190 = vmatpush2.bf16.msra.mxu0 0
        %2191 = vmatprep.mubr.bf16.mxu0 0
        %2192 = vmatmul.mubr.bf16.gmra.mxu0 %v2077
        %v2193 = vpop.f32.mrf.mxu0
        %v2194 = vadd.f32 0.0, %v2193
        %v2195 = vpop.f32.mrf.mxu0
        %v2196 = vadd.f32 0.0, %v2195
        %v2197 = vpop.f32.mrf.mxu0
        %v2198 = vadd.f32 0.0, %v2197
        %v2199 = vpop.f32.mrf.mxu0
        %v2200 = vadd.f32 0.0, %v2199
        %2201 = vdwg.mxu0
        %v2202 = vadd.f32 %v2046, %v2194
        %v2203 = vadd.f32 %v2048, %v2196
        %v2204 = vadd.f32 %v2050, %v2198
        %v2205 = vadd.f32 %v2052, %v2200
        %s2206 = scalar_lea.vmem %s6, 4
        %v2207 = vld [vmem:[%s2206] sm:$0x3]
        %v2209 = vlaneseq
        %v2210 = vshrl.u32 %v2209, 7
        %v2211 = vsub.s32 0, %v2210
        %v2212 = vrot.slane %v2207, %v2211
        %v2213 = vlaneseq
        %v2214 = vshrl.u32 %v2213, 7
        %v2215 = vsub.s32 1, %v2214
        %v2216 = vrot.slane %v2207, %v2215
        %v2219 = vadd.f32 %v2202, %v2212
        %v2220 = vadd.f32 %v2203, %v2216
        %v2221 = vadd.f32 %v2204, %v2212
        %v2222 = vadd.f32 %v2205, %v2216
        %v2223 = vmax.f32 %v2219, 0.0
        %v2224 = vmax.f32 %v2220, 0.0
        %v2225 = vmax.f32 %v2221, 0.0
        %v2226 = vmax.f32 %v2222, 0.0
        %v2227 = vpack.c.bf16 %v2225, %v2223
        %v2228 = vpack.c.bf16 %v2226, %v2224
        %v2230 = vunpack.c.l.b16 %v2227
        %v2231 = vpack.c.b16 %v2230, %v2230
        %v2233 = vshll.u32 %v2231, 16
        %v2236 = vld [vmem:[#allocation2] sm:$0x1]
        %v2237 = vsel %vm645, %v2233, %v2236
        %2238 = vst [vmem:[#allocation2] sm:$0x1] %v2237
        %v2240 = vunpack.c.l.b16 %v2228
        %v2241 = vpack.c.b16 %v2240, %v2240
        %v2242 = vrot.slane %v2241, 7
        %v2244 = vld [vmem:[#allocation2] sm:$0x2]
        %v2245 = vsel %vm656, %v2242, %v2244
        %2246 = vst [vmem:[#allocation2] sm:$0x2] %v2245
        %v2247 = vrot.slane %v2231, 7
        %v2249 = vld [vmem:[#allocation2] sm:$0x2]
        %v2250 = vsel %vm669, %v2247, %v2249
        %2251 = vst [vmem:[#allocation2] sm:$0x2] %v2250
        %v2253 = vshrl.u32 %v2241, 16
        %v2255 = vrot.slane %v2253, 6
        %v2257 = vld [vmem:[#allocation2] sm:$0x4]
        %v2258 = vsel %vm680, %v2255, %v2257
        %2259 = vst [vmem:[#allocation2] sm:$0x4] %v2258
        %v2260 = vrot.slane %v2233, 7
        %v2262 = vld [vmem:[#allocation2] sm:$0x4]
        %v2263 = vsel %vm1170, %v2260, %v2262
        %2264 = vst [vmem:[#allocation2] sm:$0x4] %v2263
        %v2265 = vrot.slane %v2241, 6
        %v2267 = vld [vmem:[#allocation2] sm:$0x8]
        %v2268 = vsel %vm1178, %v2265, %v2267
        %2269 = vst [vmem:[#allocation2] sm:$0x8] %v2268
        %v2270 = vrot.slane %v2231, 6
        %v2272 = vld [vmem:[#allocation2] sm:$0x8]
        %v2273 = vsel %vm1185, %v2270, %v2272
        %2274 = vst [vmem:[#allocation2] sm:$0x8] %v2273
        %v2275 = vrot.slane %v2253, 5
        %v2276 = vrot.slane %v2275, 4
        %v2278 = vld [vmem:[#allocation2 + $0x4] sm:$0x1]
        %v2279 = vsel %vm1193, %v2276, %v2278
        %2280 = vst [vmem:[#allocation2 + $0x4] sm:$0x1] %v2279
        %v2281 = vrot.slane %v2233, 6
        %v2282 = vrot.slane %v2281, 4
        %v2284 = vld [vmem:[#allocation2 + $0x4] sm:$0x1]
        %v2285 = vsel %vm645, %v2282, %v2284
        %2286 = vst [vmem:[#allocation2 + $0x4] sm:$0x1] %v2285
        %v2287 = vrot.slane %v2241, 5
        %v2288 = vrot.slane %v2287, 4
        %v2290 = vld [vmem:[#allocation2 + $0x4] sm:$0x2]
        %v2291 = vsel %vm656, %v2288, %v2290
        %2292 = vst [vmem:[#allocation2 + $0x4] sm:$0x2] %v2291
        %v2293 = vrot.slane %v2231, 5
        %v2294 = vrot.slane %v2293, 4
        %v2296 = vld [vmem:[#allocation2 + $0x4] sm:$0x2]
        %v2297 = vsel %vm669, %v2294, %v2296
        %2298 = vst [vmem:[#allocation2 + $0x4] sm:$0x2] %v2297
        %v2299 = vrot.slane %v2253, 4
        %v2300 = vrot.slane %v2299, 4
        %v2302 = vld [vmem:[#allocation2 + $0x4] sm:$0x4]
        %v2303 = vsel %vm680, %v2300, %v2302
        %2304 = vst [vmem:[#allocation2 + $0x4] sm:$0x4] %v2303
        %v2305 = vrot.slane %v2233, 5
        %v2306 = vrot.slane %v2305, 4
        %v2308 = vld [vmem:[#allocation2 + $0x4] sm:$0x4]
        %v2309 = vsel %vm1170, %v2306, %v2308
        %2310 = vst [vmem:[#allocation2 + $0x4] sm:$0x4] %v2309
        %v2311 = vld [vmem:[#allocation2 + $0x4] sm:$0x8]
        %v2312 = vsel %vm1178, %v2228, %v2311
        %2313 = vst [vmem:[#allocation2 + $0x4] sm:$0x8] %v2312
        %v2314 = vld [vmem:[#allocation2 + $0x4] sm:$0x8]
        %v2315 = vsel %vm1185, %v2227, %v2314
        %2316 = vst [vmem:[#allocation2 + $0x4] sm:$0x8] %v2315
        %v2317 = vrot.slane %v2253, 7
        %v2318 = vrot.slane %v2317, 4
        %v2320 = vld [vmem:[#allocation2 + $0x8] sm:$0x1]
        %v2321 = vsel %vm1193, %v2318, %v2320
        %2322 = vst [vmem:[#allocation2 + $0x8] sm:$0x1] %v2321
        %v2323 = vunpack.c.h.b16 %v2227
        %v2324 = vpack.c.b16 %v2323, %v2323
        %v2326 = vshll.u32 %v2324, 16
        %v2329 = vld [vmem:[#allocation2 + $0x8] sm:$0x1]
        %v2330 = vsel %vm645, %v2326, %v2329
        %2331 = vst [vmem:[#allocation2 + $0x8] sm:$0x1] %v2330
        %v2332 = vunpack.c.h.b16 %v2228
        %v2333 = vpack.c.b16 %v2332, %v2332
        %v2334 = vrot.slane %v2333, 7
        %v2336 = vld [vmem:[#allocation2 + $0x8] sm:$0x2]
        %v2337 = vsel %vm656, %v2334, %v2336
        %2338 = vst [vmem:[#allocation2 + $0x8] sm:$0x2] %v2337
        %v2339 = vrot.slane %v2324, 7
        %v2341 = vld [vmem:[#allocation2 + $0x8] sm:$0x2]
        %v2342 = vsel %vm669, %v2339, %v2341
        %2343 = vst [vmem:[#allocation2 + $0x8] sm:$0x2] %v2342
        %v2345 = vshrl.u32 %v2333, 16
        %v2347 = vrot.slane %v2345, 6
        %v2349 = vld [vmem:[#allocation2 + $0x8] sm:$0x4]
        %v2350 = vsel %vm680, %v2347, %v2349
        %2351 = vst [vmem:[#allocation2 + $0x8] sm:$0x4] %v2350
        %v2352 = vrot.slane %v2326, 7
        %v2354 = vld [vmem:[#allocation2 + $0x8] sm:$0x4]
        %v2355 = vsel %vm1170, %v2352, %v2354
        %2356 = vst [vmem:[#allocation2 + $0x8] sm:$0x4] %v2355
        %v2357 = vrot.slane %v2333, 6
        %v2359 = vld [vmem:[#allocation2 + $0x8] sm:$0x8]
        %v2360 = vsel %vm1178, %v2357, %v2359
        %2361 = vst [vmem:[#allocation2 + $0x8] sm:$0x8] %v2360
        %v2362 = vrot.slane %v2324, 6
        %v2364 = vld [vmem:[#allocation2 + $0x8] sm:$0x8]
        %v2365 = vsel %vm1185, %v2362, %v2364
        %2366 = vst [vmem:[#allocation2 + $0x8] sm:$0x8] %v2365
        %v2367 = vrot.slane %v2345, 5
        %v2368 = vrot.slane %v2367, 4
        %v2370 = vld [vmem:[#allocation2 + $0xc] sm:$0x1]
        %v2371 = vsel %vm1193, %v2368, %v2370
        %2372 = vst [vmem:[#allocation2 + $0xc] sm:$0x1] %v2371
        %v2373 = vrot.slane %v2326, 6
        %v2374 = vrot.slane %v2373, 4
        %v2376 = vld [vmem:[#allocation2 + $0xc] sm:$0x1]
        %v2377 = vsel %vm645, %v2374, %v2376
        %2378 = vst [vmem:[#allocation2 + $0xc] sm:$0x1] %v2377
        %v2379 = vrot.slane %v2333, 5
        %v2380 = vrot.slane %v2379, 4
        %v2382 = vld [vmem:[#allocation2 + $0xc] sm:$0x2]
        %v2383 = vsel %vm656, %v2380, %v2382
        %2384 = vst [vmem:[#allocation2 + $0xc] sm:$0x2] %v2383
        %v2385 = vrot.slane %v2324, 5
        %v2386 = vrot.slane %v2385, 4
        %v2388 = vld [vmem:[#allocation2 + $0xc] sm:$0x2]
        %v2389 = vsel %vm669, %v2386, %v2388
        %2390 = vst [vmem:[#allocation2 + $0xc] sm:$0x2] %v2389
        %v2391 = vrot.slane %v2345, 4
        %v2392 = vrot.slane %v2391, 4
        %v2394 = vld [vmem:[#allocation2 + $0xc] sm:$0x4]
        %v2395 = vsel %vm680, %v2392, %v2394
        %2396 = vst [vmem:[#allocation2 + $0xc] sm:$0x4] %v2395
        %v2397 = vrot.slane %v2326, 5
        %v2398 = vrot.slane %v2397, 4
        %v2400 = vld [vmem:[#allocation2 + $0xc] sm:$0x4]
        %v2401 = vsel %vm1170, %v2398, %v2400
        %2402 = vst [vmem:[#allocation2 + $0xc] sm:$0x4] %v2401
        %v2404 = vld [vmem:[#allocation2 + $0xc] sm:$0x8]
        %v2405 = vsel %vm1178, %v2333, %v2404
        %2406 = vst [vmem:[#allocation2 + $0xc] sm:$0x8] %v2405
        %v2408 = vld [vmem:[#allocation2 + $0xc] sm:$0x8]
        %v2409 = vsel %vm1185, %v2324, %v2408
        %2410 = vst [vmem:[#allocation2 + $0xc] sm:$0x8] %v2409
        %v2411 = vrot.slane %v2345, 7
        %v2412 = vrot.slane %v2411, 4
        %v2414 = vld [vmem:[#allocation2 + $0x10] sm:$0x1]
        %v2415 = vsel %vm1193, %v2412, %v2414
        %2416 = vst [vmem:[#allocation2 + $0x10] sm:$0x1] %v2415
        %v2417 = vld [vmem:[#allocation2] sm:$0xf]
        %v2418 = vld [vmem:[#allocation2 + $0x4] sm:$0xf]
        %v2419 = vld [vmem:[#allocation2 + $0x8] sm:$0xf]
        %v2420 = vld [vmem:[#allocation2 + $0xc] sm:$0xf]
        %v2421 = vld [vmem:[#allocation2 + $0x10] sm:$0x1]
        %v2422 = vld [vmem:[#allocation2] sm:$0xe]
        %s2423 = scalar_lea.vmem [#allocation10], 1152
        %v2424 = vld [vmem:[%s2423] sm:$0xff]
        %v2425 = vld [vmem:[%s2423 + $0x8] sm:$0xff]
        %v2426 = vld [vmem:[%s2423 + $0x10] sm:$0xff]
        %v2427 = vld [vmem:[%s2423 + $0x18] sm:$0xff]
        %v2428 = vld [vmem:[%s2423 + $0x20] sm:$0xff]
        %v2429 = vld [vmem:[%s2423 + $0x28] sm:$0xff]
        %v2430 = vld [vmem:[%s2423 + $0x30] sm:$0xff]
        %v2431 = vld [vmem:[%s2423 + $0x38] sm:$0xff]
        %v2432 = vld [vmem:[%s2423 + $0x40] sm:$0xff]
        %v2433 = vld [vmem:[%s2423 + $0x48] sm:$0xff]
        %v2434 = vld [vmem:[%s2423 + $0x50] sm:$0xff]
        %v2435 = vld [vmem:[%s2423 + $0x58] sm:$0xff]
        %v2436 = vld [vmem:[%s2423 + $0x60] sm:$0xff]
        %v2437 = vld [vmem:[%s2423 + $0x68] sm:$0xff]
        %v2438 = vld [vmem:[%s2423 + $0x70] sm:$0xff]
        %v2439 = vld [vmem:[%s2423 + $0x78] sm:$0xff]
        %s2440 = scalar_lea.vmem [#allocation10], 1280
        %v2441 = vld [vmem:[%s2440] sm:$0xff]
        %v2442 = vld [vmem:[%s2440 + $0x8] sm:$0xff]
        %v2443 = vld [vmem:[%s2440 + $0x10] sm:$0xff]
        %v2444 = vld [vmem:[%s2440 + $0x18] sm:$0xff]
        %v2445 = vld [vmem:[%s2440 + $0x20] sm:$0xff]
        %v2446 = vld [vmem:[%s2440 + $0x28] sm:$0xff]
        %v2447 = vld [vmem:[%s2440 + $0x30] sm:$0xff]
        %v2448 = vld [vmem:[%s2440 + $0x38] sm:$0xff]
        %v2449 = vld [vmem:[%s2440 + $0x40] sm:$0xff]
        %v2450 = vld [vmem:[%s2440 + $0x48] sm:$0xff]
        %v2451 = vld [vmem:[%s2440 + $0x50] sm:$0xff]
        %v2452 = vld [vmem:[%s2440 + $0x58] sm:$0xff]
        %v2453 = vld [vmem:[%s2440 + $0x60] sm:$0xff]
        %v2454 = vld [vmem:[%s2440 + $0x68] sm:$0xff]
        %v2455 = vld [vmem:[%s2440 + $0x70] sm:$0xff]
        %v2456 = vld [vmem:[%s2440 + $0x78] sm:$0xff]
        %v2462 = vunpack.c.l.b16 %v2417
        %v2463 = vunpack.c.l.b16 %v2418
        %v2464 = vunpack.c.l.b16 %v2419
        %v2465 = vunpack.c.l.b16 %v2420
        %v2466 = vunpack.c.l.b16 %v2421
        %v2467 = vpack.c.b16 %v2463, %v2462
        %v2468 = vpack.c.b16 %v2465, %v2464
        %v2469 = vpack.c.b16 %v2466, %v2466
        %v2471 = vshrl.u32 %v2467, 16
        %v2473 = vshll.u32 %v2467, 16
        %v2475 = vrot.slane %v2473, 1
        %v2476 = vor.u32 %v2471, %v2475
        %v2478 = vshll.u32 %v2468, 16
        %v2480 = vrot.slane %v2478, 1
        %v2481 = vsel %vm1793, %v2476, %v2480
        %v2482 = vshrl.u32 %v2468, 16
        %v2484 = vor.u32 %v2482, %v2480
        %v2486 = vshll.u32 %v2469, 16
        %v2488 = vrot.slane %v2486, 1
        %v2489 = vsel %vm1793, %v2484, %v2488
        %v2508 = vunpack.c.l.b16 %v2441
        %v2509 = vunpack.c.h.b16 %v2441
        %v2510 = vunpack.c.l.b16 %v2442
        %v2511 = vunpack.c.h.b16 %v2442
        %v2512 = vunpack.c.l.b16 %v2443
        %v2513 = vunpack.c.h.b16 %v2443
        %v2514 = vunpack.c.l.b16 %v2444
        %v2515 = vunpack.c.h.b16 %v2444
        %v2516 = vunpack.c.l.b16 %v2445
        %v2517 = vunpack.c.h.b16 %v2445
        %v2518 = vunpack.c.l.b16 %v2446
        %v2519 = vunpack.c.h.b16 %v2446
        %v2520 = vunpack.c.l.b16 %v2447
        %v2521 = vunpack.c.h.b16 %v2447
        %v2522 = vunpack.c.l.b16 %v2448
        %v2523 = vunpack.c.h.b16 %v2448
        %v2524 = vunpack.c.l.b16 %v2449
        %v2525 = vunpack.c.h.b16 %v2449
        %v2526 = vunpack.c.l.b16 %v2450
        %v2527 = vunpack.c.h.b16 %v2450
        %v2528 = vunpack.c.l.b16 %v2451
        %v2529 = vunpack.c.h.b16 %v2451
        %v2530 = vunpack.c.l.b16 %v2452
        %v2531 = vunpack.c.h.b16 %v2452
        %v2532 = vunpack.c.l.b16 %v2453
        %v2533 = vunpack.c.h.b16 %v2453
        %v2534 = vunpack.c.l.b16 %v2454
        %v2535 = vunpack.c.h.b16 %v2454
        %v2536 = vunpack.c.l.b16 %v2455
        %v2537 = vunpack.c.h.b16 %v2455
        %v2538 = vunpack.c.l.b16 %v2456
        %v2539 = vunpack.c.h.b16 %v2456
        %v2540 = vpack.c.b16 %v2510, %v2508
        %v2541 = vpack.c.b16 %v2511, %v2509
        %v2542 = vpack.c.b16 %v2514, %v2512
        %v2543 = vpack.c.b16 %v2515, %v2513
        %v2544 = vpack.c.b16 %v2518, %v2516
        %v2545 = vpack.c.b16 %v2519, %v2517
        %v2546 = vpack.c.b16 %v2522, %v2520
        %v2547 = vpack.c.b16 %v2523, %v2521
        %v2548 = vpack.c.b16 %v2526, %v2524
        %v2549 = vpack.c.b16 %v2527, %v2525
        %v2550 = vpack.c.b16 %v2530, %v2528
        %v2551 = vpack.c.b16 %v2531, %v2529
        %v2552 = vpack.c.b16 %v2534, %v2532
        %v2553 = vpack.c.b16 %v2535, %v2533
        %v2554 = vpack.c.b16 %v2538, %v2536
        %v2555 = vpack.c.b16 %v2539, %v2537
        %2572 = vmatprep.subr.bf16.mxu0 %v2555
        %2573 = vmatpush1.bf16.msra.mxu0 %v2554
        %2574 = vmatprep.subr.bf16.mxu0 %v2553
        %2575 = vmatpush1.bf16.msra.mxu0 %v2552
        %2576 = vmatprep.subr.bf16.mxu0 %v2551
        %2577 = vmatpush1.bf16.msra.mxu0 %v2550
        %2578 = vmatprep.subr.bf16.mxu0 %v2549
        %2579 = vmatpush1.bf16.msra.mxu0 %v2548
        %2580 = vmatprep.subr.bf16.mxu0 %v2547
        %2581 = vmatpush1.bf16.msra.mxu0 %v2546
        %2582 = vmatprep.subr.bf16.mxu0 %v2545
        %2583 = vmatpush1.bf16.msra.mxu0 %v2544
        %2584 = vmatprep.subr.bf16.mxu0 %v2543
        %2585 = vmatpush1.bf16.msra.mxu0 %v2542
        %2586 = vmatprep.subr.bf16.mxu0 %v2541
        %2587 = vmatpush1.bf16.msra.mxu0 %v2540
        %2588 = vmatprep.subr.bf16.mxu0 0
        %2589 = vmatpush2.bf16.msra.mxu0 0
        %2590 = vmatprep.subr.bf16.mxu0 0
        %2591 = vmatpush2.bf16.msra.mxu0 0
        %2592 = vmatprep.subr.bf16.mxu0 0
        %2593 = vmatpush2.bf16.msra.mxu0 0
        %2594 = vmatprep.subr.bf16.mxu0 0
        %2595 = vmatpush2.bf16.msra.mxu0 0
        %2596 = vmatprep.subr.bf16.mxu0 0
        %2597 = vmatpush2.bf16.msra.mxu0 0
        %2598 = vmatprep.subr.bf16.mxu0 0
        %2599 = vmatpush2.bf16.msra.mxu0 0
        %2600 = vmatprep.subr.bf16.mxu0 0
        %2601 = vmatpush2.bf16.msra.mxu0 0
        %2602 = vmatprep.subr.bf16.mxu0 0
        %2603 = vmatpush2.bf16.msra.mxu0 0
        %2604 = vmatprep.mubr.bf16.mxu0 0
        %2605 = vmatmul.mubr.bf16.gmra.mxu0 %v2481
        %v2606 = vpop.f32.mrf.mxu0
        %v2607 = vadd.f32 0.0, %v2606
        %v2608 = vpop.f32.mrf.mxu0
        %v2609 = vadd.f32 0.0, %v2608
        %v2610 = vpop.f32.mrf.mxu0
        %v2611 = vadd.f32 0.0, %v2610
        %v2612 = vpop.f32.mrf.mxu0
        %v2613 = vadd.f32 0.0, %v2612
        %2614 = vmatprep.mubr.bf16.mxu0 0
        %2615 = vmatmul.mubr.bf16.gmra.mxu0 %v2489
        %v2616 = vpop.f32.mrf.mxu0
        %v2617 = vadd.f32 0.0, %v2616
        %v2618 = vpop.f32.mrf.mxu0
        %v2619 = vadd.f32 0.0, %v2618
        %v2620 = vpop.f32.mrf.mxu0
        %v2621 = vadd.f32 0.0, %v2620
        %v2622 = vpop.f32.mrf.mxu0
        %v2623 = vadd.f32 0.0, %v2622
        %2624 = vdwg.mxu0
        %v2643 = vunpack.c.l.b16 %v2424
        %v2644 = vunpack.c.h.b16 %v2424
        %v2645 = vunpack.c.l.b16 %v2425
        %v2646 = vunpack.c.h.b16 %v2425
        %v2647 = vunpack.c.l.b16 %v2426
        %v2648 = vunpack.c.h.b16 %v2426
        %v2649 = vunpack.c.l.b16 %v2427
        %v2650 = vunpack.c.h.b16 %v2427
        %v2651 = vunpack.c.l.b16 %v2428
        %v2652 = vunpack.c.h.b16 %v2428
        %v2653 = vunpack.c.l.b16 %v2429
        %v2654 = vunpack.c.h.b16 %v2429
        %v2655 = vunpack.c.l.b16 %v2430
        %v2656 = vunpack.c.h.b16 %v2430
        %v2657 = vunpack.c.l.b16 %v2431
        %v2658 = vunpack.c.h.b16 %v2431
        %v2659 = vunpack.c.l.b16 %v2432
        %v2660 = vunpack.c.h.b16 %v2432
        %v2661 = vunpack.c.l.b16 %v2433
        %v2662 = vunpack.c.h.b16 %v2433
        %v2663 = vunpack.c.l.b16 %v2434
        %v2664 = vunpack.c.h.b16 %v2434
        %v2665 = vunpack.c.l.b16 %v2435
        %v2666 = vunpack.c.h.b16 %v2435
        %v2667 = vunpack.c.l.b16 %v2436
        %v2668 = vunpack.c.h.b16 %v2436
        %v2669 = vunpack.c.l.b16 %v2437
        %v2670 = vunpack.c.h.b16 %v2437
        %v2671 = vunpack.c.l.b16 %v2438
        %v2672 = vunpack.c.h.b16 %v2438
        %v2673 = vunpack.c.l.b16 %v2439
        %v2674 = vunpack.c.h.b16 %v2439
        %v2675 = vpack.c.b16 %v2645, %v2643
        %v2676 = vpack.c.b16 %v2646, %v2644
        %v2677 = vpack.c.b16 %v2649, %v2647
        %v2678 = vpack.c.b16 %v2650, %v2648
        %v2679 = vpack.c.b16 %v2653, %v2651
        %v2680 = vpack.c.b16 %v2654, %v2652
        %v2681 = vpack.c.b16 %v2657, %v2655
        %v2682 = vpack.c.b16 %v2658, %v2656
        %v2683 = vpack.c.b16 %v2661, %v2659
        %v2684 = vpack.c.b16 %v2662, %v2660
        %v2685 = vpack.c.b16 %v2665, %v2663
        %v2686 = vpack.c.b16 %v2666, %v2664
        %v2687 = vpack.c.b16 %v2669, %v2667
        %v2688 = vpack.c.b16 %v2670, %v2668
        %v2689 = vpack.c.b16 %v2673, %v2671
        %v2690 = vpack.c.b16 %v2674, %v2672
        %2707 = vmatprep.subr.bf16.mxu0 %v2690
        %2708 = vmatpush1.bf16.msra.mxu0 %v2689
        %2709 = vmatprep.subr.bf16.mxu0 %v2688
        %2710 = vmatpush1.bf16.msra.mxu0 %v2687
        %2711 = vmatprep.subr.bf16.mxu0 %v2686
        %2712 = vmatpush1.bf16.msra.mxu0 %v2685
        %2713 = vmatprep.subr.bf16.mxu0 %v2684
        %2714 = vmatpush1.bf16.msra.mxu0 %v2683
        %2715 = vmatprep.subr.bf16.mxu0 %v2682
        %2716 = vmatpush1.bf16.msra.mxu0 %v2681
        %2717 = vmatprep.subr.bf16.mxu0 %v2680
        %2718 = vmatpush1.bf16.msra.mxu0 %v2679
        %2719 = vmatprep.subr.bf16.mxu0 %v2678
        %2720 = vmatpush1.bf16.msra.mxu0 %v2677
        %2721 = vmatprep.subr.bf16.mxu0 %v2676
        %2722 = vmatpush1.bf16.msra.mxu0 %v2675
        %2723 = vmatprep.subr.bf16.mxu0 0
        %2724 = vmatpush2.bf16.msra.mxu0 0
        %2725 = vmatprep.subr.bf16.mxu0 0
        %2726 = vmatpush2.bf16.msra.mxu0 0
        %2727 = vmatprep.subr.bf16.mxu0 0
        %2728 = vmatpush2.bf16.msra.mxu0 0
        %2729 = vmatprep.subr.bf16.mxu0 0
        %2730 = vmatpush2.bf16.msra.mxu0 0
        %2731 = vmatprep.subr.bf16.mxu0 0
        %2732 = vmatpush2.bf16.msra.mxu0 0
        %2733 = vmatprep.subr.bf16.mxu0 0
        %2734 = vmatpush2.bf16.msra.mxu0 0
        %2735 = vmatprep.subr.bf16.mxu0 0
        %2736 = vmatpush2.bf16.msra.mxu0 0
        %2737 = vmatprep.subr.bf16.mxu0 0
        %2738 = vmatpush2.bf16.msra.mxu0 0
        %2739 = vmatprep.mubr.bf16.mxu0 0
        %2740 = vmatmul.mubr.bf16.gmra.mxu0 %v2467
        %v2741 = vpop.f32.mrf.mxu0
        %v2742 = vadd.f32 %v2607, %v2741
        %v2743 = vpop.f32.mrf.mxu0
        %v2744 = vadd.f32 %v2609, %v2743
        %v2745 = vpop.f32.mrf.mxu0
        %v2746 = vadd.f32 %v2611, %v2745
        %v2747 = vpop.f32.mrf.mxu0
        %v2748 = vadd.f32 %v2613, %v2747
        %2749 = vmatprep.mubr.bf16.mxu0 0
        %2750 = vmatmul.mubr.bf16.gmra.mxu0 %v2468
        %v2751 = vpop.f32.mrf.mxu0
        %v2752 = vadd.f32 %v2617, %v2751
        %v2753 = vpop.f32.mrf.mxu0
        %v2754 = vadd.f32 %v2619, %v2753
        %v2755 = vpop.f32.mrf.mxu0
        %v2756 = vadd.f32 %v2621, %v2755
        %v2757 = vpop.f32.mrf.mxu0
        %v2758 = vadd.f32 %v2623, %v2757
        %2759 = vdwg.mxu0
        %s2760 = scalar_lea.vmem [#allocation10], 1408
        %v2761 = vld [vmem:[%s2760] sm:$0xff]
        %v2762 = vld [vmem:[%s2760 + $0x8] sm:$0xff]
        %v2763 = vld [vmem:[%s2760 + $0x10] sm:$0xff]
        %v2764 = vld [vmem:[%s2760 + $0x18] sm:$0xff]
        %v2765 = vld [vmem:[%s2760 + $0x20] sm:$0xff]
        %v2766 = vld [vmem:[%s2760 + $0x28] sm:$0xff]
        %v2767 = vld [vmem:[%s2760 + $0x30] sm:$0xff]
        %v2768 = vld [vmem:[%s2760 + $0x38] sm:$0xff]
        %v2769 = vld [vmem:[%s2760 + $0x40] sm:$0xff]
        %v2770 = vld [vmem:[%s2760 + $0x48] sm:$0xff]
        %v2771 = vld [vmem:[%s2760 + $0x50] sm:$0xff]
        %v2772 = vld [vmem:[%s2760 + $0x58] sm:$0xff]
        %v2773 = vld [vmem:[%s2760 + $0x60] sm:$0xff]
        %v2774 = vld [vmem:[%s2760 + $0x68] sm:$0xff]
        %v2775 = vld [vmem:[%s2760 + $0x70] sm:$0xff]
        %v2776 = vld [vmem:[%s2760 + $0x78] sm:$0xff]
        %v2778 = vunpack.c.l.b16 %v2422
        %v2779 = vpack.c.b16 %v2463, %v2778
        %v2780 = vrot.slane %v2779, 1
        %v2781 = vrot.slane %v2468, 1
        %v2782 = vsel %vm2074, %v2780, %v2781
        %v2783 = vrot.slane %v2469, 1
        %v2784 = vsel %vm2074, %v2781, %v2783
        %v2803 = vunpack.c.l.b16 %v2761
        %v2804 = vunpack.c.h.b16 %v2761
        %v2805 = vunpack.c.l.b16 %v2762
        %v2806 = vunpack.c.h.b16 %v2762
        %v2807 = vunpack.c.l.b16 %v2763
        %v2808 = vunpack.c.h.b16 %v2763
        %v2809 = vunpack.c.l.b16 %v2764
        %v2810 = vunpack.c.h.b16 %v2764
        %v2811 = vunpack.c.l.b16 %v2765
        %v2812 = vunpack.c.h.b16 %v2765
        %v2813 = vunpack.c.l.b16 %v2766
        %v2814 = vunpack.c.h.b16 %v2766
        %v2815 = vunpack.c.l.b16 %v2767
        %v2816 = vunpack.c.h.b16 %v2767
        %v2817 = vunpack.c.l.b16 %v2768
        %v2818 = vunpack.c.h.b16 %v2768
        %v2819 = vunpack.c.l.b16 %v2769
        %v2820 = vunpack.c.h.b16 %v2769
        %v2821 = vunpack.c.l.b16 %v2770
        %v2822 = vunpack.c.h.b16 %v2770
        %v2823 = vunpack.c.l.b16 %v2771
        %v2824 = vunpack.c.h.b16 %v2771
        %v2825 = vunpack.c.l.b16 %v2772
        %v2826 = vunpack.c.h.b16 %v2772
        %v2827 = vunpack.c.l.b16 %v2773
        %v2828 = vunpack.c.h.b16 %v2773
        %v2829 = vunpack.c.l.b16 %v2774
        %v2830 = vunpack.c.h.b16 %v2774
        %v2831 = vunpack.c.l.b16 %v2775
        %v2832 = vunpack.c.h.b16 %v2775
        %v2833 = vunpack.c.l.b16 %v2776
        %v2834 = vunpack.c.h.b16 %v2776
        %v2835 = vpack.c.b16 %v2805, %v2803
        %v2836 = vpack.c.b16 %v2806, %v2804
        %v2837 = vpack.c.b16 %v2809, %v2807
        %v2838 = vpack.c.b16 %v2810, %v2808
        %v2839 = vpack.c.b16 %v2813, %v2811
        %v2840 = vpack.c.b16 %v2814, %v2812
        %v2841 = vpack.c.b16 %v2817, %v2815
        %v2842 = vpack.c.b16 %v2818, %v2816
        %v2843 = vpack.c.b16 %v2821, %v2819
        %v2844 = vpack.c.b16 %v2822, %v2820
        %v2845 = vpack.c.b16 %v2825, %v2823
        %v2846 = vpack.c.b16 %v2826, %v2824
        %v2847 = vpack.c.b16 %v2829, %v2827
        %v2848 = vpack.c.b16 %v2830, %v2828
        %v2849 = vpack.c.b16 %v2833, %v2831
        %v2850 = vpack.c.b16 %v2834, %v2832
        %2867 = vmatprep.subr.bf16.mxu0 %v2850
        %2868 = vmatpush1.bf16.msra.mxu0 %v2849
        %2869 = vmatprep.subr.bf16.mxu0 %v2848
        %2870 = vmatpush1.bf16.msra.mxu0 %v2847
        %2871 = vmatprep.subr.bf16.mxu0 %v2846
        %2872 = vmatpush1.bf16.msra.mxu0 %v2845
        %2873 = vmatprep.subr.bf16.mxu0 %v2844
        %2874 = vmatpush1.bf16.msra.mxu0 %v2843
        %2875 = vmatprep.subr.bf16.mxu0 %v2842
        %2876 = vmatpush1.bf16.msra.mxu0 %v2841
        %2877 = vmatprep.subr.bf16.mxu0 %v2840
        %2878 = vmatpush1.bf16.msra.mxu0 %v2839
        %2879 = vmatprep.subr.bf16.mxu0 %v2838
        %2880 = vmatpush1.bf16.msra.mxu0 %v2837
        %2881 = vmatprep.subr.bf16.mxu0 %v2836
        %2882 = vmatpush1.bf16.msra.mxu0 %v2835
        %2883 = vmatprep.subr.bf16.mxu0 0
        %2884 = vmatpush2.bf16.msra.mxu0 0
        %2885 = vmatprep.subr.bf16.mxu0 0
        %2886 = vmatpush2.bf16.msra.mxu0 0
        %2887 = vmatprep.subr.bf16.mxu0 0
        %2888 = vmatpush2.bf16.msra.mxu0 0
        %2889 = vmatprep.subr.bf16.mxu0 0
        %2890 = vmatpush2.bf16.msra.mxu0 0
        %2891 = vmatprep.subr.bf16.mxu0 0
        %2892 = vmatpush2.bf16.msra.mxu0 0
        %2893 = vmatprep.subr.bf16.mxu0 0
        %2894 = vmatpush2.bf16.msra.mxu0 0
        %2895 = vmatprep.subr.bf16.mxu0 0
        %2896 = vmatpush2.bf16.msra.mxu0 0
        %2897 = vmatprep.subr.bf16.mxu0 0
        %2898 = vmatpush2.bf16.msra.mxu0 0
        %2899 = vmatprep.mubr.bf16.mxu0 0
        %2900 = vmatmul.mubr.bf16.gmra.mxu0 %v2782
        %v2901 = vpop.f32.mrf.mxu0
        %v2902 = vadd.f32 0.0, %v2901
        %v2903 = vpop.f32.mrf.mxu0
        %v2904 = vadd.f32 0.0, %v2903
        %v2905 = vpop.f32.mrf.mxu0
        %v2906 = vadd.f32 0.0, %v2905
        %v2907 = vpop.f32.mrf.mxu0
        %v2908 = vadd.f32 0.0, %v2907
        %2909 = vmatprep.mubr.bf16.mxu0 0
        %2910 = vmatmul.mubr.bf16.gmra.mxu0 %v2784
        %v2911 = vpop.f32.mrf.mxu0
        %v2912 = vadd.f32 0.0, %v2911
        %v2913 = vpop.f32.mrf.mxu0
        %v2914 = vadd.f32 0.0, %v2913
        %v2915 = vpop.f32.mrf.mxu0
        %v2916 = vadd.f32 0.0, %v2915
        %v2917 = vpop.f32.mrf.mxu0
        %v2918 = vadd.f32 0.0, %v2917
        %2919 = vdwg.mxu0
        %v2920 = vadd.f32 %v2742, %v2902
        %v2921 = vadd.f32 %v2744, %v2904
        %v2922 = vadd.f32 %v2746, %v2906
        %v2923 = vadd.f32 %v2748, %v2908
        %v2924 = vadd.f32 %v2752, %v2912
        %v2925 = vadd.f32 %v2754, %v2914
        %v2926 = vadd.f32 %v2756, %v2916
        %v2927 = vadd.f32 %v2758, %v2918
        %s2928 = scalar_lea.vmem %s6, 6
        %v2929 = vld [vmem:[%s2928] sm:$0x3]
        %v2931 = vlaneseq
        %v2932 = vshrl.u32 %v2931, 7
        %v2933 = vsub.s32 0, %v2932
        %v2934 = vrot.slane %v2929, %v2933
        %v2935 = vlaneseq
        %v2936 = vshrl.u32 %v2935, 7
        %v2937 = vsub.s32 1, %v2936
        %v2938 = vrot.slane %v2929, %v2937
        %v2941 = vadd.f32 %v2920, %v2934
        %v2942 = vadd.f32 %v2921, %v2938
        %v2943 = vadd.f32 %v2922, %v2934
        %v2944 = vadd.f32 %v2923, %v2938
        %v2945 = vadd.f32 %v2924, %v2934
        %v2946 = vadd.f32 %v2925, %v2938
        %v2947 = vadd.f32 %v2926, %v2934
        %v2948 = vadd.f32 %v2927, %v2938
        %v2949 = vmax.f32 %v2941, 0.0
        %v2950 = vmax.f32 %v2942, 0.0
        %v2951 = vmax.f32 %v2943, 0.0
        %v2952 = vmax.f32 %v2944, 0.0
        %v2953 = vmax.f32 %v2945, 0.0
        %v2954 = vmax.f32 %v2946, 0.0
        %v2955 = vmax.f32 %v2947, 0.0
        %v2956 = vmax.f32 %v2948, 0.0
        %v2957 = vpack.c.bf16 %v2951, %v2949
        %v2958 = vpack.c.bf16 %v2952, %v2950
        %v2959 = vpack.c.bf16 %v2955, %v2953
        %v2960 = vpack.c.bf16 %v2956, %v2954
        %v2962 = vunpack.c.l.b16 %v2957
        %v2963 = vpack.c.b16 %v2962, %v2962
        %v2965 = vshll.u32 %v2963, 16
        %v2968 = vld [vmem:[#allocation2] sm:$0x1]
        %v2969 = vsel %vm645, %v2965, %v2968
        %2970 = vst [vmem:[#allocation2] sm:$0x1] %v2969
        %v2972 = vunpack.c.l.b16 %v2958
        %v2973 = vpack.c.b16 %v2972, %v2972
        %v2974 = vrot.slane %v2973, 7
        %v2976 = vld [vmem:[#allocation2] sm:$0x2]
        %v2977 = vsel %vm656, %v2974, %v2976
        %2978 = vst [vmem:[#allocation2] sm:$0x2] %v2977
        %v2979 = vrot.slane %v2963, 7
        %v2981 = vld [vmem:[#allocation2] sm:$0x2]
        %v2982 = vsel %vm669, %v2979, %v2981
        %2983 = vst [vmem:[#allocation2] sm:$0x2] %v2982
        %v2985 = vshrl.u32 %v2973, 16
        %v2987 = vrot.slane %v2985, 6
        %v2989 = vld [vmem:[#allocation2] sm:$0x4]
        %v2990 = vsel %vm680, %v2987, %v2989
        %2991 = vst [vmem:[#allocation2] sm:$0x4] %v2990
        %v2992 = vrot.slane %v2965, 7
        %v2994 = vld [vmem:[#allocation2] sm:$0x4]
        %v2995 = vsel %vm1170, %v2992, %v2994
        %2996 = vst [vmem:[#allocation2] sm:$0x4] %v2995
        %v2997 = vrot.slane %v2973, 6
        %v2999 = vld [vmem:[#allocation2] sm:$0x8]
        %v3000 = vsel %vm1178, %v2997, %v2999
        %3001 = vst [vmem:[#allocation2] sm:$0x8] %v3000
        %v3002 = vrot.slane %v2963, 6
        %v3004 = vld [vmem:[#allocation2] sm:$0x8]
        %v3005 = vsel %vm1185, %v3002, %v3004
        %3006 = vst [vmem:[#allocation2] sm:$0x8] %v3005
        %v3007 = vrot.slane %v2985, 5
        %v3008 = vrot.slane %v3007, 4
        %v3010 = vld [vmem:[#allocation2 + $0x4] sm:$0x1]
        %v3011 = vsel %vm1193, %v3008, %v3010
        %3012 = vst [vmem:[#allocation2 + $0x4] sm:$0x1] %v3011
        %v3013 = vrot.slane %v2965, 6
        %v3014 = vrot.slane %v3013, 4
        %v3016 = vld [vmem:[#allocation2 + $0x4] sm:$0x1]
        %v3017 = vsel %vm645, %v3014, %v3016
        %3018 = vst [vmem:[#allocation2 + $0x4] sm:$0x1] %v3017
        %v3019 = vrot.slane %v2973, 5
        %v3020 = vrot.slane %v3019, 4
        %v3022 = vld [vmem:[#allocation2 + $0x4] sm:$0x2]
        %v3023 = vsel %vm656, %v3020, %v3022
        %3024 = vst [vmem:[#allocation2 + $0x4] sm:$0x2] %v3023
        %v3025 = vrot.slane %v2963, 5
        %v3026 = vrot.slane %v3025, 4
        %v3028 = vld [vmem:[#allocation2 + $0x4] sm:$0x2]
        %v3029 = vsel %vm669, %v3026, %v3028
        %3030 = vst [vmem:[#allocation2 + $0x4] sm:$0x2] %v3029
        %v3031 = vrot.slane %v2985, 4
        %v3032 = vrot.slane %v3031, 4
        %v3034 = vld [vmem:[#allocation2 + $0x4] sm:$0x4]
        %v3035 = vsel %vm680, %v3032, %v3034
        %3036 = vst [vmem:[#allocation2 + $0x4] sm:$0x4] %v3035
        %v3037 = vrot.slane %v2965, 5
        %v3038 = vrot.slane %v3037, 4
        %v3040 = vld [vmem:[#allocation2 + $0x4] sm:$0x4]
        %v3041 = vsel %vm1170, %v3038, %v3040
        %3042 = vst [vmem:[#allocation2 + $0x4] sm:$0x4] %v3041
        %v3043 = vld [vmem:[#allocation2 + $0x4] sm:$0x8]
        %v3044 = vsel %vm1178, %v2958, %v3043
        %3045 = vst [vmem:[#allocation2 + $0x4] sm:$0x8] %v3044
        %v3046 = vld [vmem:[#allocation2 + $0x4] sm:$0x8]
        %v3047 = vsel %vm1185, %v2957, %v3046
        %3048 = vst [vmem:[#allocation2 + $0x4] sm:$0x8] %v3047
        %v3049 = vrot.slane %v2985, 7
        %v3050 = vrot.slane %v3049, 4
        %v3052 = vld [vmem:[#allocation2 + $0x8] sm:$0x1]
        %v3053 = vsel %vm1193, %v3050, %v3052
        %3054 = vst [vmem:[#allocation2 + $0x8] sm:$0x1] %v3053
        %v3055 = vunpack.c.h.b16 %v2957
        %v3056 = vpack.c.b16 %v3055, %v3055
        %v3058 = vshll.u32 %v3056, 16
        %v3061 = vld [vmem:[#allocation2 + $0x8] sm:$0x1]
        %v3062 = vsel %vm645, %v3058, %v3061
        %3063 = vst [vmem:[#allocation2 + $0x8] sm:$0x1] %v3062
        %v3064 = vunpack.c.h.b16 %v2958
        %v3065 = vpack.c.b16 %v3064, %v3064
        %v3066 = vrot.slane %v3065, 7
        %v3068 = vld [vmem:[#allocation2 + $0x8] sm:$0x2]
        %v3069 = vsel %vm656, %v3066, %v3068
        %3070 = vst [vmem:[#allocation2 + $0x8] sm:$0x2] %v3069
        %v3071 = vrot.slane %v3056, 7
        %v3073 = vld [vmem:[#allocation2 + $0x8] sm:$0x2]
        %v3074 = vsel %vm669, %v3071, %v3073
        %3075 = vst [vmem:[#allocation2 + $0x8] sm:$0x2] %v3074
        %v3077 = vshrl.u32 %v3065, 16
        %v3079 = vrot.slane %v3077, 6
        %v3081 = vld [vmem:[#allocation2 + $0x8] sm:$0x4]
        %v3082 = vsel %vm680, %v3079, %v3081
        %3083 = vst [vmem:[#allocation2 + $0x8] sm:$0x4] %v3082
        %v3084 = vrot.slane %v3058, 7
        %v3086 = vld [vmem:[#allocation2 + $0x8] sm:$0x4]
        %v3087 = vsel %vm1170, %v3084, %v3086
        %3088 = vst [vmem:[#allocation2 + $0x8] sm:$0x4] %v3087
        %v3089 = vrot.slane %v3065, 6
        %v3091 = vld [vmem:[#allocation2 + $0x8] sm:$0x8]
        %v3092 = vsel %vm1178, %v3089, %v3091
        %3093 = vst [vmem:[#allocation2 + $0x8] sm:$0x8] %v3092
        %v3094 = vrot.slane %v3056, 6
        %v3096 = vld [vmem:[#allocation2 + $0x8] sm:$0x8]
        %v3097 = vsel %vm1185, %v3094, %v3096
        %3098 = vst [vmem:[#allocation2 + $0x8] sm:$0x8] %v3097
        %v3099 = vrot.slane %v3077, 5
        %v3100 = vrot.slane %v3099, 4
        %v3102 = vld [vmem:[#allocation2 + $0xc] sm:$0x1]
        %v3103 = vsel %vm1193, %v3100, %v3102
        %3104 = vst [vmem:[#allocation2 + $0xc] sm:$0x1] %v3103
        %v3105 = vrot.slane %v3058, 6
        %v3106 = vrot.slane %v3105, 4
        %v3108 = vld [vmem:[#allocation2 + $0xc] sm:$0x1]
        %v3109 = vsel %vm645, %v3106, %v3108
        %3110 = vst [vmem:[#allocation2 + $0xc] sm:$0x1] %v3109
        %v3111 = vrot.slane %v3065, 5
        %v3112 = vrot.slane %v3111, 4
        %v3114 = vld [vmem:[#allocation2 + $0xc] sm:$0x2]
        %v3115 = vsel %vm656, %v3112, %v3114
        %3116 = vst [vmem:[#allocation2 + $0xc] sm:$0x2] %v3115
        %v3117 = vrot.slane %v3056, 5
        %v3118 = vrot.slane %v3117, 4
        %v3120 = vld [vmem:[#allocation2 + $0xc] sm:$0x2]
        %v3121 = vsel %vm669, %v3118, %v3120
        %3122 = vst [vmem:[#allocation2 + $0xc] sm:$0x2] %v3121
        %v3123 = vrot.slane %v3077, 4
        %v3124 = vrot.slane %v3123, 4
        %v3126 = vld [vmem:[#allocation2 + $0xc] sm:$0x4]
        %v3127 = vsel %vm680, %v3124, %v3126
        %3128 = vst [vmem:[#allocation2 + $0xc] sm:$0x4] %v3127
        %v3129 = vrot.slane %v3058, 5
        %v3130 = vrot.slane %v3129, 4
        %v3132 = vld [vmem:[#allocation2 + $0xc] sm:$0x4]
        %v3133 = vsel %vm1170, %v3130, %v3132
        %3134 = vst [vmem:[#allocation2 + $0xc] sm:$0x4] %v3133
        %v3136 = vld [vmem:[#allocation2 + $0xc] sm:$0x8]
        %v3137 = vsel %vm1178, %v3065, %v3136
        %3138 = vst [vmem:[#allocation2 + $0xc] sm:$0x8] %v3137
        %v3140 = vld [vmem:[#allocation2 + $0xc] sm:$0x8]
        %v3141 = vsel %vm1185, %v3056, %v3140
        %3142 = vst [vmem:[#allocation2 + $0xc] sm:$0x8] %v3141
        %v3143 = vrot.slane %v3077, 7
        %v3144 = vrot.slane %v3143, 4
        %v3146 = vld [vmem:[#allocation2 + $0x10] sm:$0x1]
        %v3147 = vsel %vm1193, %v3144, %v3146
        %3148 = vst [vmem:[#allocation2 + $0x10] sm:$0x1] %v3147
        %v3150 = vunpack.c.l.b16 %v2959
        %v3151 = vpack.c.b16 %v3150, %v3150
        %v3153 = vshll.u32 %v3151, 16
        %v3156 = vld [vmem:[#allocation2 + $0x10] sm:$0x1]
        %v3157 = vsel %vm645, %v3153, %v3156
        %3158 = vst [vmem:[#allocation2 + $0x10] sm:$0x1] %v3157
        %v3160 = vunpack.c.l.b16 %v2960
        %v3161 = vpack.c.b16 %v3160, %v3160
        %v3162 = vrot.slane %v3161, 7
        %v3164 = vld [vmem:[#allocation2 + $0x10] sm:$0x2]
        %v3165 = vsel %vm656, %v3162, %v3164
        %3166 = vst [vmem:[#allocation2 + $0x10] sm:$0x2] %v3165
        %v3167 = vrot.slane %v3151, 7
        %v3169 = vld [vmem:[#allocation2 + $0x10] sm:$0x2]
        %v3170 = vsel %vm669, %v3167, %v3169
        %3171 = vst [vmem:[#allocation2 + $0x10] sm:$0x2] %v3170
        %v3173 = vshrl.u32 %v3161, 16
        %v3175 = vrot.slane %v3173, 6
        %v3177 = vld [vmem:[#allocation2 + $0x10] sm:$0x4]
        %v3178 = vsel %vm680, %v3175, %v3177
        %3179 = vst [vmem:[#allocation2 + $0x10] sm:$0x4] %v3178
        %v3180 = vrot.slane %v3153, 7
        %v3182 = vld [vmem:[#allocation2 + $0x10] sm:$0x4]
        %v3183 = vsel %vm1170, %v3180, %v3182
        %3184 = vst [vmem:[#allocation2 + $0x10] sm:$0x4] %v3183
        %v3185 = vrot.slane %v3161, 6
        %v3187 = vld [vmem:[#allocation2 + $0x10] sm:$0x8]
        %v3188 = vsel %vm1178, %v3185, %v3187
        %3189 = vst [vmem:[#allocation2 + $0x10] sm:$0x8] %v3188
        %v3190 = vrot.slane %v3151, 6
        %v3192 = vld [vmem:[#allocation2 + $0x10] sm:$0x8]
        %v3193 = vsel %vm1185, %v3190, %v3192
        %3194 = vst [vmem:[#allocation2 + $0x10] sm:$0x8] %v3193
        %v3195 = vrot.slane %v3173, 5
        %v3196 = vrot.slane %v3195, 4
        %v3198 = vld [vmem:[#allocation2 + $0x14] sm:$0x1]
        %v3199 = vsel %vm1193, %v3196, %v3198
        %3200 = vst [vmem:[#allocation2 + $0x14] sm:$0x1] %v3199
        %v3201 = vrot.slane %v3153, 6
        %v3202 = vrot.slane %v3201, 4
        %v3204 = vld [vmem:[#allocation2 + $0x14] sm:$0x1]
        %v3205 = vsel %vm645, %v3202, %v3204
        %3206 = vst [vmem:[#allocation2 + $0x14] sm:$0x1] %v3205
        %v3207 = vrot.slane %v3161, 5
        %v3208 = vrot.slane %v3207, 4
        %v3210 = vld [vmem:[#allocation2 + $0x14] sm:$0x2]
        %v3211 = vsel %vm656, %v3208, %v3210
        %3212 = vst [vmem:[#allocation2 + $0x14] sm:$0x2] %v3211
        %v3213 = vrot.slane %v3151, 5
        %v3214 = vrot.slane %v3213, 4
        %v3216 = vld [vmem:[#allocation2 + $0x14] sm:$0x2]
        %v3217 = vsel %vm669, %v3214, %v3216
        %3218 = vst [vmem:[#allocation2 + $0x14] sm:$0x2] %v3217
        %v3219 = vrot.slane %v3173, 4
        %v3220 = vrot.slane %v3219, 4
        %v3222 = vld [vmem:[#allocation2 + $0x14] sm:$0x4]
        %v3223 = vsel %vm680, %v3220, %v3222
        %3224 = vst [vmem:[#allocation2 + $0x14] sm:$0x4] %v3223
        %v3225 = vrot.slane %v3153, 5
        %v3226 = vrot.slane %v3225, 4
        %v3228 = vld [vmem:[#allocation2 + $0x14] sm:$0x4]
        %v3229 = vsel %vm1170, %v3226, %v3228
        %3230 = vst [vmem:[#allocation2 + $0x14] sm:$0x4] %v3229
        %v3231 = vld [vmem:[#allocation2 + $0x14] sm:$0x8]
        %v3232 = vsel %vm1178, %v2960, %v3231
        %3233 = vst [vmem:[#allocation2 + $0x14] sm:$0x8] %v3232
        %v3234 = vld [vmem:[#allocation2 + $0x14] sm:$0x8]
        %v3235 = vsel %vm1185, %v2959, %v3234
        %3236 = vst [vmem:[#allocation2 + $0x14] sm:$0x8] %v3235
        %v3237 = vrot.slane %v3173, 7
        %v3238 = vrot.slane %v3237, 4
        %v3240 = vld [vmem:[#allocation2 + $0x18] sm:$0x1]
        %v3241 = vsel %vm1193, %v3238, %v3240
        %3242 = vst [vmem:[#allocation2 + $0x18] sm:$0x1] %v3241
        %v3243 = vunpack.c.h.b16 %v2959
        %v3244 = vpack.c.b16 %v3243, %v3243
        %v3246 = vshll.u32 %v3244, 16
        %v3249 = vld [vmem:[#allocation2 + $0x18] sm:$0x1]
        %v3250 = vsel %vm645, %v3246, %v3249
        %3251 = vst [vmem:[#allocation2 + $0x18] sm:$0x1] %v3250
        %v3252 = vunpack.c.h.b16 %v2960
        %v3253 = vpack.c.b16 %v3252, %v3252
        %v3254 = vrot.slane %v3253, 7
        %v3256 = vld [vmem:[#allocation2 + $0x18] sm:$0x2]
        %v3257 = vsel %vm656, %v3254, %v3256
        %3258 = vst [vmem:[#allocation2 + $0x18] sm:$0x2] %v3257
        %v3259 = vrot.slane %v3244, 7
        %v3261 = vld [vmem:[#allocation2 + $0x18] sm:$0x2]
        %v3262 = vsel %vm669, %v3259, %v3261
        %3263 = vst [vmem:[#allocation2 + $0x18] sm:$0x2] %v3262
        %v3265 = vshrl.u32 %v3253, 16
        %v3267 = vrot.slane %v3265, 6
        %v3269 = vld [vmem:[#allocation2 + $0x18] sm:$0x4]
        %v3270 = vsel %vm680, %v3267, %v3269
        %3271 = vst [vmem:[#allocation2 + $0x18] sm:$0x4] %v3270
        %v3272 = vrot.slane %v3246, 7
        %v3274 = vld [vmem:[#allocation2 + $0x18] sm:$0x4]
        %v3275 = vsel %vm1170, %v3272, %v3274
        %3276 = vst [vmem:[#allocation2 + $0x18] sm:$0x4] %v3275
        %v3277 = vrot.slane %v3253, 6
        %v3279 = vld [vmem:[#allocation2 + $0x18] sm:$0x8]
        %v3280 = vsel %vm1178, %v3277, %v3279
        %3281 = vst [vmem:[#allocation2 + $0x18] sm:$0x8] %v3280
        %v3282 = vrot.slane %v3244, 6
        %v3284 = vld [vmem:[#allocation2 + $0x18] sm:$0x8]
        %v3285 = vsel %vm1185, %v3282, %v3284
        %3286 = vst [vmem:[#allocation2 + $0x18] sm:$0x8] %v3285
        %v3287 = vrot.slane %v3265, 5
        %v3288 = vrot.slane %v3287, 4
        %v3290 = vld [vmem:[#allocation2 + $0x1c] sm:$0x1]
        %v3291 = vsel %vm1193, %v3288, %v3290
        %3292 = vst [vmem:[#allocation2 + $0x1c] sm:$0x1] %v3291
        %v3293 = vrot.slane %v3246, 6
        %v3294 = vrot.slane %v3293, 4
        %v3296 = vld [vmem:[#allocation2 + $0x1c] sm:$0x1]
        %v3297 = vsel %vm645, %v3294, %v3296
        %3298 = vst [vmem:[#allocation2 + $0x1c] sm:$0x1] %v3297
        %v3299 = vrot.slane %v3253, 5
        %v3300 = vrot.slane %v3299, 4
        %v3302 = vld [vmem:[#allocation2 + $0x1c] sm:$0x2]
        %v3303 = vsel %vm656, %v3300, %v3302
        %3304 = vst [vmem:[#allocation2 + $0x1c] sm:$0x2] %v3303
        %v3305 = vrot.slane %v3244, 5
        %v3306 = vrot.slane %v3305, 4
        %v3308 = vld [vmem:[#allocation2 + $0x1c] sm:$0x2]
        %v3309 = vsel %vm669, %v3306, %v3308
        %3310 = vst [vmem:[#allocation2 + $0x1c] sm:$0x2] %v3309
        %v3311 = vrot.slane %v3265, 4
        %v3312 = vrot.slane %v3311, 4
        %v3314 = vld [vmem:[#allocation2 + $0x1c] sm:$0x4]
        %v3315 = vsel %vm680, %v3312, %v3314
        %3316 = vst [vmem:[#allocation2 + $0x1c] sm:$0x4] %v3315
        %v3317 = vrot.slane %v3246, 5
        %v3318 = vrot.slane %v3317, 4
        %v3320 = vld [vmem:[#allocation2 + $0x1c] sm:$0x4]
        %v3321 = vsel %vm1170, %v3318, %v3320
        %3322 = vst [vmem:[#allocation2 + $0x1c] sm:$0x4] %v3321
        %v3324 = vld [vmem:[#allocation2 + $0x1c] sm:$0x8]
        %v3325 = vsel %vm1178, %v3253, %v3324
        %3326 = vst [vmem:[#allocation2 + $0x1c] sm:$0x8] %v3325
        %v3328 = vld [vmem:[#allocation2 + $0x1c] sm:$0x8]
        %v3329 = vsel %vm1185, %v3244, %v3328
        %3330 = vst [vmem:[#allocation2 + $0x1c] sm:$0x8] %v3329
        %v3331 = vrot.slane %v3265, 7
        %v3332 = vrot.slane %v3331, 4
        %v3334 = vld [vmem:[#allocation2 + $0x20] sm:$0x1]
        %v3335 = vsel %vm1193, %v3332, %v3334
        %3336 = vst [vmem:[#allocation2 + $0x20] sm:$0x1] %v3335
        %v3337 = vld [vmem:[#allocation2] sm:$0xf]
        %v3338 = vld [vmem:[#allocation2 + $0x4] sm:$0xf]
        %v3339 = vld [vmem:[#allocation2 + $0x8] sm:$0xf]
        %v3340 = vld [vmem:[#allocation2 + $0xc] sm:$0xf]
        %v3341 = vld [vmem:[#allocation2 + $0x10] sm:$0xf]
        %v3342 = vld [vmem:[#allocation2 + $0x14] sm:$0xf]
        %v3343 = vld [vmem:[#allocation2 + $0x18] sm:$0xf]
        %v3344 = vld [vmem:[#allocation2 + $0x1c] sm:$0xf]
        %v3345 = vld [vmem:[#allocation2 + $0x20] sm:$0x1]
        %v3346 = vld [vmem:[#allocation2] sm:$0xe]
        %s3347 = scalar_lea.vmem [#allocation10], 1536
        %v3348 = vld [vmem:[%s3347] sm:$0xff]
        %v3349 = vld [vmem:[%s3347 + $0x8] sm:$0xff]
        %v3350 = vld [vmem:[%s3347 + $0x10] sm:$0xff]
        %v3351 = vld [vmem:[%s3347 + $0x18] sm:$0xff]
        %v3352 = vld [vmem:[%s3347 + $0x20] sm:$0xff]
        %v3353 = vld [vmem:[%s3347 + $0x28] sm:$0xff]
        %v3354 = vld [vmem:[%s3347 + $0x30] sm:$0xff]
        %v3355 = vld [vmem:[%s3347 + $0x38] sm:$0xff]
        %v3356 = vld [vmem:[%s3347 + $0x40] sm:$0xff]
        %v3357 = vld [vmem:[%s3347 + $0x48] sm:$0xff]
        %v3358 = vld [vmem:[%s3347 + $0x50] sm:$0xff]
        %v3359 = vld [vmem:[%s3347 + $0x58] sm:$0xff]
        %v3360 = vld [vmem:[%s3347 + $0x60] sm:$0xff]
        %v3361 = vld [vmem:[%s3347 + $0x68] sm:$0xff]
        %v3362 = vld [vmem:[%s3347 + $0x70] sm:$0xff]
        %v3363 = vld [vmem:[%s3347 + $0x78] sm:$0xff]
        %s3364 = scalar_lea.vmem [#allocation10], 1664
        %v3365 = vld [vmem:[%s3364] sm:$0xff]
        %v3366 = vld [vmem:[%s3364 + $0x8] sm:$0xff]
        %v3367 = vld [vmem:[%s3364 + $0x10] sm:$0xff]
        %v3368 = vld [vmem:[%s3364 + $0x18] sm:$0xff]
        %v3369 = vld [vmem:[%s3364 + $0x20] sm:$0xff]
        %v3370 = vld [vmem:[%s3364 + $0x28] sm:$0xff]
        %v3371 = vld [vmem:[%s3364 + $0x30] sm:$0xff]
        %v3372 = vld [vmem:[%s3364 + $0x38] sm:$0xff]
        %v3373 = vld [vmem:[%s3364 + $0x40] sm:$0xff]
        %v3374 = vld [vmem:[%s3364 + $0x48] sm:$0xff]
        %v3375 = vld [vmem:[%s3364 + $0x50] sm:$0xff]
        %v3376 = vld [vmem:[%s3364 + $0x58] sm:$0xff]
        %v3377 = vld [vmem:[%s3364 + $0x60] sm:$0xff]
        %v3378 = vld [vmem:[%s3364 + $0x68] sm:$0xff]
        %v3379 = vld [vmem:[%s3364 + $0x70] sm:$0xff]
        %v3380 = vld [vmem:[%s3364 + $0x78] sm:$0xff]
        %v3390 = vunpack.c.l.b16 %v3337
        %v3391 = vunpack.c.l.b16 %v3338
        %v3392 = vunpack.c.l.b16 %v3339
        %v3393 = vunpack.c.l.b16 %v3340
        %v3394 = vunpack.c.l.b16 %v3341
        %v3395 = vunpack.c.l.b16 %v3342
        %v3396 = vunpack.c.l.b16 %v3343
        %v3397 = vunpack.c.l.b16 %v3344
        %v3398 = vunpack.c.l.b16 %v3345
        %v3399 = vpack.c.b16 %v3391, %v3390
        %v3400 = vpack.c.b16 %v3393, %v3392
        %v3401 = vpack.c.b16 %v3395, %v3394
        %v3402 = vpack.c.b16 %v3397, %v3396
        %v3403 = vpack.c.b16 %v3398, %v3398
        %v3405 = vshrl.u32 %v3399, 16
        %v3407 = vshll.u32 %v3399, 16
        %v3409 = vrot.slane %v3407, 1
        %v3410 = vor.u32 %v3405, %v3409
        %v3412 = vshll.u32 %v3400, 16
        %v3414 = vrot.slane %v3412, 1
        %v3415 = vsel %vm1793, %v3410, %v3414
        %v3416 = vshrl.u32 %v3400, 16
        %v3418 = vor.u32 %v3416, %v3414
        %v3420 = vshll.u32 %v3401, 16
        %v3422 = vrot.slane %v3420, 1
        %v3423 = vsel %vm1793, %v3418, %v3422
        %v3424 = vshrl.u32 %v3401, 16
        %v3426 = vor.u32 %v3424, %v3422
        %v3428 = vshll.u32 %v3402, 16
        %v3430 = vrot.slane %v3428, 1
        %v3431 = vsel %vm1793, %v3426, %v3430
        %v3432 = vshrl.u32 %v3402, 16
        %v3434 = vor.u32 %v3432, %v3430
        %v3436 = vshll.u32 %v3403, 16
        %v3438 = vrot.slane %v3436, 1
        %v3439 = vsel %vm1793, %v3434, %v3438
        %v3460 = vunpack.c.l.b16 %v3365
        %v3461 = vunpack.c.h.b16 %v3365
        %v3462 = vunpack.c.l.b16 %v3366
        %v3463 = vunpack.c.h.b16 %v3366
        %v3464 = vunpack.c.l.b16 %v3367
        %v3465 = vunpack.c.h.b16 %v3367
        %v3466 = vunpack.c.l.b16 %v3368
        %v3467 = vunpack.c.h.b16 %v3368
        %v3468 = vunpack.c.l.b16 %v3369
        %v3469 = vunpack.c.h.b16 %v3369
        %v3470 = vunpack.c.l.b16 %v3370
        %v3471 = vunpack.c.h.b16 %v3370
        %v3472 = vunpack.c.l.b16 %v3371
        %v3473 = vunpack.c.h.b16 %v3371
        %v3474 = vunpack.c.l.b16 %v3372
        %v3475 = vunpack.c.h.b16 %v3372
        %v3476 = vunpack.c.l.b16 %v3373
        %v3477 = vunpack.c.h.b16 %v3373
        %v3478 = vunpack.c.l.b16 %v3374
        %v3479 = vunpack.c.h.b16 %v3374
        %v3480 = vunpack.c.l.b16 %v3375
        %v3481 = vunpack.c.h.b16 %v3375
        %v3482 = vunpack.c.l.b16 %v3376
        %v3483 = vunpack.c.h.b16 %v3376
        %v3484 = vunpack.c.l.b16 %v3377
        %v3485 = vunpack.c.h.b16 %v3377
        %v3486 = vunpack.c.l.b16 %v3378
        %v3487 = vunpack.c.h.b16 %v3378
        %v3488 = vunpack.c.l.b16 %v3379
        %v3489 = vunpack.c.h.b16 %v3379
        %v3490 = vunpack.c.l.b16 %v3380
        %v3491 = vunpack.c.h.b16 %v3380
        %v3492 = vpack.c.b16 %v3462, %v3460
        %v3493 = vpack.c.b16 %v3463, %v3461
        %v3494 = vpack.c.b16 %v3466, %v3464
        %v3495 = vpack.c.b16 %v3467, %v3465
        %v3496 = vpack.c.b16 %v3470, %v3468
        %v3497 = vpack.c.b16 %v3471, %v3469
        %v3498 = vpack.c.b16 %v3474, %v3472
        %v3499 = vpack.c.b16 %v3475, %v3473
        %v3500 = vpack.c.b16 %v3478, %v3476
        %v3501 = vpack.c.b16 %v3479, %v3477
        %v3502 = vpack.c.b16 %v3482, %v3480
        %v3503 = vpack.c.b16 %v3483, %v3481
        %v3504 = vpack.c.b16 %v3486, %v3484
        %v3505 = vpack.c.b16 %v3487, %v3485
        %v3506 = vpack.c.b16 %v3490, %v3488
        %v3507 = vpack.c.b16 %v3491, %v3489
        %3524 = vmatprep.subr.bf16.mxu0 %v3507
        %3525 = vmatpush1.bf16.msra.mxu0 %v3506
        %3526 = vmatprep.subr.bf16.mxu0 %v3505
        %3527 = vmatpush1.bf16.msra.mxu0 %v3504
        %3528 = vmatprep.subr.bf16.mxu0 %v3503
        %3529 = vmatpush1.bf16.msra.mxu0 %v3502
        %3530 = vmatprep.subr.bf16.mxu0 %v3501
        %3531 = vmatpush1.bf16.msra.mxu0 %v3500
        %3532 = vmatprep.subr.bf16.mxu0 %v3499
        %3533 = vmatpush1.bf16.msra.mxu0 %v3498
        %3534 = vmatprep.subr.bf16.mxu0 %v3497
        %3535 = vmatpush1.bf16.msra.mxu0 %v3496
        %3536 = vmatprep.subr.bf16.mxu0 %v3495
        %3537 = vmatpush1.bf16.msra.mxu0 %v3494
        %3538 = vmatprep.subr.bf16.mxu0 %v3493
        %3539 = vmatpush1.bf16.msra.mxu0 %v3492
        %3540 = vmatprep.subr.bf16.mxu0 0
        %3541 = vmatpush2.bf16.msra.mxu0 0
        %3542 = vmatprep.subr.bf16.mxu0 0
        %3543 = vmatpush2.bf16.msra.mxu0 0
        %3544 = vmatprep.subr.bf16.mxu0 0
        %3545 = vmatpush2.bf16.msra.mxu0 0
        %3546 = vmatprep.subr.bf16.mxu0 0
        %3547 = vmatpush2.bf16.msra.mxu0 0
        %3548 = vmatprep.subr.bf16.mxu0 0
        %3549 = vmatpush2.bf16.msra.mxu0 0
        %3550 = vmatprep.subr.bf16.mxu0 0
        %3551 = vmatpush2.bf16.msra.mxu0 0
        %3552 = vmatprep.subr.bf16.mxu0 0
        %3553 = vmatpush2.bf16.msra.mxu0 0
        %3554 = vmatprep.subr.bf16.mxu0 0
        %3555 = vmatpush2.bf16.msra.mxu0 0
        %3556 = vmatprep.mubr.bf16.mxu0 0
        %3557 = vmatmul.mubr.bf16.gmra.mxu0 %v3415
        %v3558 = vpop.f32.mrf.mxu0
        %v3559 = vadd.f32 0.0, %v3558
        %v3560 = vpop.f32.mrf.mxu0
        %v3561 = vadd.f32 0.0, %v3560
        %v3562 = vpop.f32.mrf.mxu0
        %v3563 = vadd.f32 0.0, %v3562
        %v3564 = vpop.f32.mrf.mxu0
        %v3565 = vadd.f32 0.0, %v3564
        %3566 = vmatprep.mubr.bf16.mxu0 0
        %3567 = vmatmul.mubr.bf16.gmra.mxu0 %v3423
        %v3568 = vpop.f32.mrf.mxu0
        %v3569 = vadd.f32 0.0, %v3568
        %v3570 = vpop.f32.mrf.mxu0
        %v3571 = vadd.f32 0.0, %v3570
        %v3572 = vpop.f32.mrf.mxu0
        %v3573 = vadd.f32 0.0, %v3572
        %v3574 = vpop.f32.mrf.mxu0
        %v3575 = vadd.f32 0.0, %v3574
        %3576 = vmatprep.mubr.bf16.mxu0 0
        %3577 = vmatmul.mubr.bf16.gmra.mxu0 %v3431
        %v3578 = vpop.f32.mrf.mxu0
        %v3579 = vadd.f32 0.0, %v3578
        %v3580 = vpop.f32.mrf.mxu0
        %v3581 = vadd.f32 0.0, %v3580
        %v3582 = vpop.f32.mrf.mxu0
        %v3583 = vadd.f32 0.0, %v3582
        %v3584 = vpop.f32.mrf.mxu0
        %v3585 = vadd.f32 0.0, %v3584
        %3586 = vmatprep.mubr.bf16.mxu0 0
        %3587 = vmatmul.mubr.bf16.gmra.mxu0 %v3439
        %v3588 = vpop.f32.mrf.mxu0
        %v3589 = vadd.f32 0.0, %v3588
        %v3590 = vpop.f32.mrf.mxu0
        %v3591 = vadd.f32 0.0, %v3590
        %v3592 = vpop.f32.mrf.mxu0
        %v3593 = vadd.f32 0.0, %v3592
        %v3594 = vpop.f32.mrf.mxu0
        %v3595 = vadd.f32 0.0, %v3594
        %3596 = vdwg.mxu0
        %v3617 = vunpack.c.l.b16 %v3348
        %v3618 = vunpack.c.h.b16 %v3348
        %v3619 = vunpack.c.l.b16 %v3349
        %v3620 = vunpack.c.h.b16 %v3349
        %v3621 = vunpack.c.l.b16 %v3350
        %v3622 = vunpack.c.h.b16 %v3350
        %v3623 = vunpack.c.l.b16 %v3351
        %v3624 = vunpack.c.h.b16 %v3351
        %v3625 = vunpack.c.l.b16 %v3352
        %v3626 = vunpack.c.h.b16 %v3352
        %v3627 = vunpack.c.l.b16 %v3353
        %v3628 = vunpack.c.h.b16 %v3353
        %v3629 = vunpack.c.l.b16 %v3354
        %v3630 = vunpack.c.h.b16 %v3354
        %v3631 = vunpack.c.l.b16 %v3355
        %v3632 = vunpack.c.h.b16 %v3355
        %v3633 = vunpack.c.l.b16 %v3356
        %v3634 = vunpack.c.h.b16 %v3356
        %v3635 = vunpack.c.l.b16 %v3357
        %v3636 = vunpack.c.h.b16 %v3357
        %v3637 = vunpack.c.l.b16 %v3358
        %v3638 = vunpack.c.h.b16 %v3358
        %v3639 = vunpack.c.l.b16 %v3359
        %v3640 = vunpack.c.h.b16 %v3359
        %v3641 = vunpack.c.l.b16 %v3360
        %v3642 = vunpack.c.h.b16 %v3360
        %v3643 = vunpack.c.l.b16 %v3361
        %v3644 = vunpack.c.h.b16 %v3361
        %v3645 = vunpack.c.l.b16 %v3362
        %v3646 = vunpack.c.h.b16 %v3362
        %v3647 = vunpack.c.l.b16 %v3363
        %v3648 = vunpack.c.h.b16 %v3363
        %v3649 = vpack.c.b16 %v3619, %v3617
        %v3650 = vpack.c.b16 %v3620, %v3618
        %v3651 = vpack.c.b16 %v3623, %v3621
        %v3652 = vpack.c.b16 %v3624, %v3622
        %v3653 = vpack.c.b16 %v3627, %v3625
        %v3654 = vpack.c.b16 %v3628, %v3626
        %v3655 = vpack.c.b16 %v3631, %v3629
        %v3656 = vpack.c.b16 %v3632, %v3630
        %v3657 = vpack.c.b16 %v3635, %v3633
        %v3658 = vpack.c.b16 %v3636, %v3634
        %v3659 = vpack.c.b16 %v3639, %v3637
        %v3660 = vpack.c.b16 %v3640, %v3638
        %v3661 = vpack.c.b16 %v3643, %v3641
        %v3662 = vpack.c.b16 %v3644, %v3642
        %v3663 = vpack.c.b16 %v3647, %v3645
        %v3664 = vpack.c.b16 %v3648, %v3646
        %3681 = vmatprep.subr.bf16.mxu0 %v3664
        %3682 = vmatpush1.bf16.msra.mxu0 %v3663
        %3683 = vmatprep.subr.bf16.mxu0 %v3662
        %3684 = vmatpush1.bf16.msra.mxu0 %v3661
        %3685 = vmatprep.subr.bf16.mxu0 %v3660
        %3686 = vmatpush1.bf16.msra.mxu0 %v3659
        %3687 = vmatprep.subr.bf16.mxu0 %v3658
        %3688 = vmatpush1.bf16.msra.mxu0 %v3657
        %3689 = vmatprep.subr.bf16.mxu0 %v3656
        %3690 = vmatpush1.bf16.msra.mxu0 %v3655
        %3691 = vmatprep.subr.bf16.mxu0 %v3654
        %3692 = vmatpush1.bf16.msra.mxu0 %v3653
        %3693 = vmatprep.subr.bf16.mxu0 %v3652
        %3694 = vmatpush1.bf16.msra.mxu0 %v3651
        %3695 = vmatprep.subr.bf16.mxu0 %v3650
        %3696 = vmatpush1.bf16.msra.mxu0 %v3649
        %3697 = vmatprep.subr.bf16.mxu0 0
        %3698 = vmatpush2.bf16.msra.mxu0 0
        %3699 = vmatprep.subr.bf16.mxu0 0
        %3700 = vmatpush2.bf16.msra.mxu0 0
        %3701 = vmatprep.subr.bf16.mxu0 0
        %3702 = vmatpush2.bf16.msra.mxu0 0
        %3703 = vmatprep.subr.bf16.mxu0 0
        %3704 = vmatpush2.bf16.msra.mxu0 0
        %3705 = vmatprep.subr.bf16.mxu0 0
        %3706 = vmatpush2.bf16.msra.mxu0 0
        %3707 = vmatprep.subr.bf16.mxu0 0
        %3708 = vmatpush2.bf16.msra.mxu0 0
        %3709 = vmatprep.subr.bf16.mxu0 0
        %3710 = vmatpush2.bf16.msra.mxu0 0
        %3711 = vmatprep.subr.bf16.mxu0 0
        %3712 = vmatpush2.bf16.msra.mxu0 0
        %3713 = vmatprep.mubr.bf16.mxu0 0
        %3714 = vmatmul.mubr.bf16.gmra.mxu0 %v3399
        %v3715 = vpop.f32.mrf.mxu0
        %v3716 = vadd.f32 %v3559, %v3715
        %v3717 = vpop.f32.mrf.mxu0
        %v3718 = vadd.f32 %v3561, %v3717
        %v3719 = vpop.f32.mrf.mxu0
        %v3720 = vadd.f32 %v3563, %v3719
        %v3721 = vpop.f32.mrf.mxu0
        %v3722 = vadd.f32 %v3565, %v3721
        %3723 = vmatprep.mubr.bf16.mxu0 0
        %3724 = vmatmul.mubr.bf16.gmra.mxu0 %v3400
        %v3725 = vpop.f32.mrf.mxu0
        %v3726 = vadd.f32 %v3569, %v3725
        %v3727 = vpop.f32.mrf.mxu0
        %v3728 = vadd.f32 %v3571, %v3727
        %v3729 = vpop.f32.mrf.mxu0
        %v3730 = vadd.f32 %v3573, %v3729
        %v3731 = vpop.f32.mrf.mxu0
        %v3732 = vadd.f32 %v3575, %v3731
        %3733 = vmatprep.mubr.bf16.mxu0 0
        %3734 = vmatmul.mubr.bf16.gmra.mxu0 %v3401
        %v3735 = vpop.f32.mrf.mxu0
        %v3736 = vadd.f32 %v3579, %v3735
        %v3737 = vpop.f32.mrf.mxu0
        %v3738 = vadd.f32 %v3581, %v3737
        %v3739 = vpop.f32.mrf.mxu0
        %v3740 = vadd.f32 %v3583, %v3739
        %v3741 = vpop.f32.mrf.mxu0
        %v3742 = vadd.f32 %v3585, %v3741
        %3743 = vmatprep.mubr.bf16.mxu0 0
        %3744 = vmatmul.mubr.bf16.gmra.mxu0 %v3402
        %v3745 = vpop.f32.mrf.mxu0
        %v3746 = vadd.f32 %v3589, %v3745
        %v3747 = vpop.f32.mrf.mxu0
        %v3748 = vadd.f32 %v3591, %v3747
        %v3749 = vpop.f32.mrf.mxu0
        %v3750 = vadd.f32 %v3593, %v3749
        %v3751 = vpop.f32.mrf.mxu0
        %v3752 = vadd.f32 %v3595, %v3751
        %3753 = vdwg.mxu0
        %s3754 = scalar_lea.vmem [#allocation10], 1792
        %v3755 = vld [vmem:[%s3754] sm:$0xff]
        %v3756 = vld [vmem:[%s3754 + $0x8] sm:$0xff]
        %v3757 = vld [vmem:[%s3754 + $0x10] sm:$0xff]
        %v3758 = vld [vmem:[%s3754 + $0x18] sm:$0xff]
        %v3759 = vld [vmem:[%s3754 + $0x20] sm:$0xff]
        %v3760 = vld [vmem:[%s3754 + $0x28] sm:$0xff]
        %v3761 = vld [vmem:[%s3754 + $0x30] sm:$0xff]
        %v3762 = vld [vmem:[%s3754 + $0x38] sm:$0xff]
        %v3763 = vld [vmem:[%s3754 + $0x40] sm:$0xff]
        %v3764 = vld [vmem:[%s3754 + $0x48] sm:$0xff]
        %v3765 = vld [vmem:[%s3754 + $0x50] sm:$0xff]
        %v3766 = vld [vmem:[%s3754 + $0x58] sm:$0xff]
        %v3767 = vld [vmem:[%s3754 + $0x60] sm:$0xff]
        %v3768 = vld [vmem:[%s3754 + $0x68] sm:$0xff]
        %v3769 = vld [vmem:[%s3754 + $0x70] sm:$0xff]
        %v3770 = vld [vmem:[%s3754 + $0x78] sm:$0xff]
        %v3772 = vunpack.c.l.b16 %v3346
        %v3773 = vpack.c.b16 %v3391, %v3772
        %v3774 = vrot.slane %v3773, 1
        %v3775 = vrot.slane %v3400, 1
        %v3776 = vsel %vm2074, %v3774, %v3775
        %v3777 = vrot.slane %v3401, 1
        %v3778 = vsel %vm2074, %v3775, %v3777
        %v3779 = vrot.slane %v3402, 1
        %v3780 = vsel %vm2074, %v3777, %v3779
        %v3781 = vrot.slane %v3403, 1
        %v3782 = vsel %vm2074, %v3779, %v3781
        %v3803 = vunpack.c.l.b16 %v3755
        %v3804 = vunpack.c.h.b16 %v3755
        %v3805 = vunpack.c.l.b16 %v3756
        %v3806 = vunpack.c.h.b16 %v3756
        %v3807 = vunpack.c.l.b16 %v3757
        %v3808 = vunpack.c.h.b16 %v3757
        %v3809 = vunpack.c.l.b16 %v3758
        %v3810 = vunpack.c.h.b16 %v3758
        %v3811 = vunpack.c.l.b16 %v3759
        %v3812 = vunpack.c.h.b16 %v3759
        %v3813 = vunpack.c.l.b16 %v3760
        %v3814 = vunpack.c.h.b16 %v3760
        %v3815 = vunpack.c.l.b16 %v3761
        %v3816 = vunpack.c.h.b16 %v3761
        %v3817 = vunpack.c.l.b16 %v3762
        %v3818 = vunpack.c.h.b16 %v3762
        %v3819 = vunpack.c.l.b16 %v3763
        %v3820 = vunpack.c.h.b16 %v3763
        %v3821 = vunpack.c.l.b16 %v3764
        %v3822 = vunpack.c.h.b16 %v3764
        %v3823 = vunpack.c.l.b16 %v3765
        %v3824 = vunpack.c.h.b16 %v3765
        %v3825 = vunpack.c.l.b16 %v3766
        %v3826 = vunpack.c.h.b16 %v3766
        %v3827 = vunpack.c.l.b16 %v3767
        %v3828 = vunpack.c.h.b16 %v3767
        %v3829 = vunpack.c.l.b16 %v3768
        %v3830 = vunpack.c.h.b16 %v3768
        %v3831 = vunpack.c.l.b16 %v3769
        %v3832 = vunpack.c.h.b16 %v3769
        %v3833 = vunpack.c.l.b16 %v3770
        %v3834 = vunpack.c.h.b16 %v3770
        %v3835 = vpack.c.b16 %v3805, %v3803
        %v3836 = vpack.c.b16 %v3806, %v3804
        %v3837 = vpack.c.b16 %v3809, %v3807
        %v3838 = vpack.c.b16 %v3810, %v3808
        %v3839 = vpack.c.b16 %v3813, %v3811
        %v3840 = vpack.c.b16 %v3814, %v3812
        %v3841 = vpack.c.b16 %v3817, %v3815
        %v3842 = vpack.c.b16 %v3818, %v3816
        %v3843 = vpack.c.b16 %v3821, %v3819
        %v3844 = vpack.c.b16 %v3822, %v3820
        %v3845 = vpack.c.b16 %v3825, %v3823
        %v3846 = vpack.c.b16 %v3826, %v3824
        %v3847 = vpack.c.b16 %v3829, %v3827
        %v3848 = vpack.c.b16 %v3830, %v3828
        %v3849 = vpack.c.b16 %v3833, %v3831
        %v3850 = vpack.c.b16 %v3834, %v3832
        %3867 = vmatprep.subr.bf16.mxu0 %v3850
        %3868 = vmatpush1.bf16.msra.mxu0 %v3849
        %3869 = vmatprep.subr.bf16.mxu0 %v3848
        %3870 = vmatpush1.bf16.msra.mxu0 %v3847
        %3871 = vmatprep.subr.bf16.mxu0 %v3846
        %3872 = vmatpush1.bf16.msra.mxu0 %v3845
        %3873 = vmatprep.subr.bf16.mxu0 %v3844
        %3874 = vmatpush1.bf16.msra.mxu0 %v3843
        %3875 = vmatprep.subr.bf16.mxu0 %v3842
        %3876 = vmatpush1.bf16.msra.mxu0 %v3841
        %3877 = vmatprep.subr.bf16.mxu0 %v3840
        %3878 = vmatpush1.bf16.msra.mxu0 %v3839
        %3879 = vmatprep.subr.bf16.mxu0 %v3838
        %3880 = vmatpush1.bf16.msra.mxu0 %v3837
        %3881 = vmatprep.subr.bf16.mxu0 %v3836
        %3882 = vmatpush1.bf16.msra.mxu0 %v3835
        %3883 = vmatprep.subr.bf16.mxu0 0
        %3884 = vmatpush2.bf16.msra.mxu0 0
        %3885 = vmatprep.subr.bf16.mxu0 0
        %3886 = vmatpush2.bf16.msra.mxu0 0
        %3887 = vmatprep.subr.bf16.mxu0 0
        %3888 = vmatpush2.bf16.msra.mxu0 0
        %3889 = vmatprep.subr.bf16.mxu0 0
        %3890 = vmatpush2.bf16.msra.mxu0 0
        %3891 = vmatprep.subr.bf16.mxu0 0
        %3892 = vmatpush2.bf16.msra.mxu0 0
        %3893 = vmatprep.subr.bf16.mxu0 0
        %3894 = vmatpush2.bf16.msra.mxu0 0
        %3895 = vmatprep.subr.bf16.mxu0 0
        %3896 = vmatpush2.bf16.msra.mxu0 0
        %3897 = vmatprep.subr.bf16.mxu0 0
        %3898 = vmatpush2.bf16.msra.mxu0 0
        %3899 = vmatprep.mubr.bf16.mxu0 0
        %3900 = vmatmul.mubr.bf16.gmra.mxu0 %v3776
        %v3901 = vpop.f32.mrf.mxu0
        %v3902 = vadd.f32 0.0, %v3901
        %v3903 = vpop.f32.mrf.mxu0
        %v3904 = vadd.f32 0.0, %v3903
        %v3905 = vpop.f32.mrf.mxu0
        %v3906 = vadd.f32 0.0, %v3905
        %v3907 = vpop.f32.mrf.mxu0
        %v3908 = vadd.f32 0.0, %v3907
        %3909 = vmatprep.mubr.bf16.mxu0 0
        %3910 = vmatmul.mubr.bf16.gmra.mxu0 %v3778
        %v3911 = vpop.f32.mrf.mxu0
        %v3912 = vadd.f32 0.0, %v3911
        %v3913 = vpop.f32.mrf.mxu0
        %v3914 = vadd.f32 0.0, %v3913
        %v3915 = vpop.f32.mrf.mxu0
        %v3916 = vadd.f32 0.0, %v3915
        %v3917 = vpop.f32.mrf.mxu0
        %v3918 = vadd.f32 0.0, %v3917
        %3919 = vmatprep.mubr.bf16.mxu0 0
        %3920 = vmatmul.mubr.bf16.gmra.mxu0 %v3780
        %v3921 = vpop.f32.mrf.mxu0
        %v3922 = vadd.f32 0.0, %v3921
        %v3923 = vpop.f32.mrf.mxu0
        %v3924 = vadd.f32 0.0, %v3923
        %v3925 = vpop.f32.mrf.mxu0
        %v3926 = vadd.f32 0.0, %v3925
        %v3927 = vpop.f32.mrf.mxu0
        %v3928 = vadd.f32 0.0, %v3927
        %3929 = vmatprep.mubr.bf16.mxu0 0
        %3930 = vmatmul.mubr.bf16.gmra.mxu0 %v3782
        %v3931 = vpop.f32.mrf.mxu0
        %v3932 = vadd.f32 0.0, %v3931
        %v3933 = vpop.f32.mrf.mxu0
        %v3934 = vadd.f32 0.0, %v3933
        %v3935 = vpop.f32.mrf.mxu0
        %v3936 = vadd.f32 0.0, %v3935
        %v3937 = vpop.f32.mrf.mxu0
        %v3938 = vadd.f32 0.0, %v3937
        %3939 = vdwg.mxu0
        %v3940 = vadd.f32 %v3716, %v3902
        %v3941 = vadd.f32 %v3718, %v3904
        %v3942 = vadd.f32 %v3720, %v3906
        %v3943 = vadd.f32 %v3722, %v3908
        %v3944 = vadd.f32 %v3726, %v3912
        %v3945 = vadd.f32 %v3728, %v3914
        %v3946 = vadd.f32 %v3730, %v3916
        %v3947 = vadd.f32 %v3732, %v3918
        %v3948 = vadd.f32 %v3736, %v3922
        %v3949 = vadd.f32 %v3738, %v3924
        %v3950 = vadd.f32 %v3740, %v3926
        %v3951 = vadd.f32 %v3742, %v3928
        %v3952 = vadd.f32 %v3746, %v3932
        %v3953 = vadd.f32 %v3748, %v3934
        %v3954 = vadd.f32 %v3750, %v3936
        %v3955 = vadd.f32 %v3752, %v3938
        %s3956 = scalar_lea.vmem %s6, 8
        %v3957 = vld [vmem:[%s3956] sm:$0x3]
        %v3959 = vlaneseq
        %v3960 = vshrl.u32 %v3959, 7
        %v3961 = vsub.s32 0, %v3960
        %v3962 = vrot.slane %v3957, %v3961
        %v3963 = vlaneseq
        %v3964 = vshrl.u32 %v3963, 7
        %v3965 = vsub.s32 1, %v3964
        %v3966 = vrot.slane %v3957, %v3965
        %v3969 = vadd.f32 %v3940, %v3962
        %v3970 = vadd.f32 %v3941, %v3966
        %v3971 = vadd.f32 %v3942, %v3962
        %v3972 = vadd.f32 %v3943, %v3966
        %v3973 = vadd.f32 %v3944, %v3962
        %v3974 = vadd.f32 %v3945, %v3966
        %v3975 = vadd.f32 %v3946, %v3962
        %v3976 = vadd.f32 %v3947, %v3966
        %v3977 = vadd.f32 %v3948, %v3962
        %v3978 = vadd.f32 %v3949, %v3966
        %v3979 = vadd.f32 %v3950, %v3962
        %v3980 = vadd.f32 %v3951, %v3966
        %v3981 = vadd.f32 %v3952, %v3962
        %v3982 = vadd.f32 %v3953, %v3966
        %v3983 = vadd.f32 %v3954, %v3962
        %v3984 = vadd.f32 %v3955, %v3966
        %v3985 = vtanh.pop %v3969
        %v3986 = vtanh.pop %v3970
        %v3987 = vtanh.pop %v3971
        %v3988 = vtanh.pop %v3972
        %v3989 = vtanh.pop %v3973
        %v3990 = vtanh.pop %v3974
        %v3991 = vtanh.pop %v3975
        %v3992 = vtanh.pop %v3976
        %v3993 = vtanh.pop %v3977
        %v3994 = vtanh.pop %v3978
        %v3995 = vtanh.pop %v3979
        %v3996 = vtanh.pop %v3980
        %v3997 = vtanh.pop %v3981
        %v3998 = vtanh.pop %v3982
        %v3999 = vtanh.pop %v3983
        %v4000 = vtanh.pop %v3984
        %4001 = vst [vmem:[%s348] sm:$0xff] %v3985
        %4002 = vst [vmem:[%s348 + $0x8] sm:$0xff] %v3986
        %4003 = vst [vmem:[%s348 + $0x10] sm:$0xff] %v3987
        %4004 = vst [vmem:[%s348 + $0x18] sm:$0xff] %v3988
        %4005 = vst [vmem:[%s348 + $0x20] sm:$0xff] %v3989
        %4006 = vst [vmem:[%s348 + $0x28] sm:$0xff] %v3990
        %4007 = vst [vmem:[%s348 + $0x30] sm:$0xff] %v3991
        %4008 = vst [vmem:[%s348 + $0x38] sm:$0xff] %v3992
        %4009 = vst [vmem:[%s348 + $0x40] sm:$0xff] %v3993
        %4010 = vst [vmem:[%s348 + $0x48] sm:$0xff] %v3994
        %4011 = vst [vmem:[%s348 + $0x50] sm:$0xff] %v3995
        %4012 = vst [vmem:[%s348 + $0x58] sm:$0xff] %v3996
        %4013 = vst [vmem:[%s348 + $0x60] sm:$0xff] %v3997
        %4014 = vst [vmem:[%s348 + $0x68] sm:$0xff] %v3998
        %4015 = vst [vmem:[%s348 + $0x70] sm:$0xff] %v3999
        %4016 = vst [vmem:[%s348 + $0x78] sm:$0xff] %v4000
        %p4017 = scmp.lt.s32.totalorder %s23, 1
        %s4018 = scalar_select %p4017, %s23, 1
        %s4019 = smul.addr %s4018, 16
        %s4020 = smul.addr %s4019, 8
        %s4021 = scalar_lea.vmem %s7, %s4020
        // Predicated region
        $region69: #{_lambda_.1} parent=47 // pred_check
          %p4022 = pneg %p193
        $region70: #{_lambda_.1} parent=47 // pred_check_branch
          %4024 = sbr.rel (%p4022) target = $region72
        $region71: #{_lambda_.1} parent=47 // pred_region
          _
        $region72: #{_lambda_.1} parent=47 // pred_fallthru
          _
      $region48: #{_lambda_.1} parent=5 // pred_fallthru
        _
      %p4025 = scmp.le.s32.totalorder 2, %s18
      // Predicated region
      $region73: #{_lambda_.1} parent=5 // pred_check
        %p4026 = pneg %p4025
      $region74: #{_lambda_.1} parent=5 // pred_check_branch
        %4028 = sbr.rel (%p4026) target = $region76
      $region75: #{_lambda_.1} parent=5 // pred_region
        %s4029 = ssub.s32 %s18, 2
        // Predicated region
        $region77: #{_lambda_.1} parent=75 // pred_check
          %p4030 = pneg %p199
        $region78: #{_lambda_.1} parent=75 // pred_check_branch
          %4032 = sbr.rel (%p4030) target = $region80
        $region79: #{_lambda_.1} parent=75 // pred_region
          %p4033 = scmp.lt.s32.totalorder %s24, 1
          %s4034 = scalar_select %p4033, %s24, 1
          %s4035 = smul.addr %s4034, 16
          %s4036 = smul.addr %s4035, 8
          %s4037 = scalar_lea.vmem %s7, %s4036
        $region80: #{_lambda_.1} parent=75 // pred_fallthru
          _
      $region76: #{_lambda_.1} parent=5 // pred_fallthru
        _
    $region6: #{_lambda_.1} parent=1 // loop_footer
      %s22 = sadd.s32 1, %s18
    $region7: #{_lambda_.1} parent=1 // loop_footer_branch
      %17 = sbr.rel target = $region3
    $region8: #{_lambda_.1} parent=1 // loop_exit
      _
    %4038 = vsyncpa [#allocation4], 1
    %s4039 = scalar_lea.sflag [#allocation4], 1
    %4040 = vsyncpa %s4039, 1
    %4041 = vsyncpa [#allocation6], 1
    %4042 = vsyncpa [#allocation9], 1

</llo_original>
